<compile_context>
chip_gen: v7x
topology: tpu7x:2x2x1
jax: 0.10.0
libtpu: 0.0.40
codegen_flags: <defaults>
</compile_context>

<pallas_src>
import functools

import jax
import jax.numpy as jnp
from jax.experimental import pallas as pl
from jax.experimental.pallas import tpu as pltpu


def _affine_injector_kernel(
    x_ref, c_ref,
    w1_ref, b1_ref, w2_ref, b2_ref,      # fused (pre-negated) transform-net params
    out_ref, ssum_ref,
):
    C = out_ref.shape[-1]

    # I/O may be bf16; all math is f32.
    x = x_ref[...].astype(jnp.float32)                         # (tm, C)
    c = c_ref[...].astype(jnp.float32)                         # (tm, Cc)

    # Fused scale_net + bias_net: Linear -> ReLU -> Linear (2 MXU matmuls).
    h = jnp.maximum(
        jnp.dot(c, w1_ref[...], preferred_element_type=jnp.float32)
        + b1_ref[...], 0.0)                                    # (tm, 2H)
    sb = (jnp.dot(h, w2_ref[...], preferred_element_type=jnp.float32)
          + b2_ref[...])                                       # (tm, 2C) = [-scale | bias]

    neg_scale = sb[:, :C]                                      # (tm, C)  == -scale
    bias = sb[:, C:]                                           # (tm, C)

    # Affine injection elementwise hot path (exp already gets -scale).
    out_ref[...] = ((x - bias) * jnp.exp(neg_scale)).astype(out_ref.dtype)

    # Per-tile partial sum of (-scale), broadcast over one full native (8,128)
    # tile so the store is an unmasked, min-tile-legal VMEM store.  The
    # per-batch log-det reduction is finished in the wrapper.
    ts = jnp.sum(neg_scale, axis=1, keepdims=True)             # (tm, 1)
    ts = jnp.sum(ts, axis=0, keepdims=True)                    # (1, 1)
    ssum_ref[...] = jnp.broadcast_to(ts, ssum_ref.shape)       # (8, 128)


def _pick_tile(n_per_batch: int, total_rows: int, tm_max: int) -> int:
    """Largest multiple of 8 that divides N and is <= tm_max, preferring a
    choice that leaves grid = total_rows // tile >= 2 (keeps both v7x
    TensorCores busy under dimension_semantics=('parallel',))."""
    cap = min(tm_max, n_per_batch)
    cands = [t for t in range(8, cap + 1, 8) if n_per_batch % t == 0]
    assert cands, "N (points per batch) must be a multiple of 8"
    good = [t for t in cands if total_rows // t >= 2]
    return max(good) if good else max(cands)


@functools.partial(jax.jit, static_argnames=("tm_max",))
def affine_injector_forward(x, c, params, *, tm_max=4096):
    """x: (B, N, C), c: (B, N, Cc)  ->  (x_out (B,N,C), log_det_J (B,)).

    x/c may be float32 or bfloat16; compute is float32, x_out matches x.dtype.
    """
    B, N, C = x.shape
    Cc = c.shape[-1]
    H = params["ws1"].shape[1]
    M = B * N

    tile = _pick_tile(N, M, tm_max)
    grid = M // tile                     # = B * (N // tile)
    tiles_per_batch = N // tile

    f32 = jnp.float32
    ws1, bs1 = params["ws1"].astype(f32), params["bs1"].astype(f32)
    ws2, bs2 = params["ws2"].astype(f32), params["bs2"].astype(f32)
    wb1, bb1 = params["wb1"].astype(f32), params["bb1"].astype(f32)
    wb2, bb2 = params["wb2"].astype(f32), params["bb2"].astype(f32)

    # ---- fuse the two transform nets, pre-negating the scale branch --------
    w1 = jnp.concatenate([ws1, wb1], axis=1)                        # (Cc, 2H)
    b1 = jnp.concatenate([bs1, bb1], axis=1)                        # (1, 2H)
    w2 = (jnp.zeros((2 * H, 2 * C), f32)
          .at[:H, :C].set(-ws2)                                     # -> -scale
          .at[H:, C:].set(wb2))                                     # ->  bias
    b2 = jnp.concatenate([-bs2, bb2], axis=1)                       # (1, 2C)

    x2 = x.reshape(M, C)
    c2 = c.reshape(M, Cc)

    row = lambda w: pl.BlockSpec((tile, w), lambda i: (i, 0))
    resident = lambda shape: pl.BlockSpec(shape, lambda i: (0, 0))  # weights stay in VMEM

    cost = pl.CostEstimate(
        flops=2 * M * (Cc * 2 * H + 2 * H * 2 * C) + 3 * M * C,
        transcendentals=M * C,
        bytes_accessed=(x2.dtype.itemsize * 2 * M * C
                        + c2.dtype.itemsize * M * Cc
                        + 4 * (Cc * 2 * H + 2 * H + 2 * H * 2 * C + 2 * C)
                        + 4 * 8 * 128 * grid),
    )

    out2, ssum = pl.pallas_call(
        _affine_injector_kernel,
        grid=(grid,),
        in_specs=[
            row(C), row(Cc),
            resident((Cc, 2 * H)), resident((1, 2 * H)),
            resident((2 * H, 2 * C)), resident((1, 2 * C)),
        ],
        out_specs=[
            pl.BlockSpec((tile, C), lambda i: (i, 0)),
            pl.BlockSpec((8, 128), lambda i: (i, 0)),   # one legal native tile / step
        ],
        out_shape=[
            jax.ShapeDtypeStruct((M, C), x.dtype),
            jax.ShapeDtypeStruct((8 * grid, 128), jnp.float32),
        ],
        compiler_params=pltpu.CompilerParams(
            dimension_semantics=("parallel",),           # shards across v7x's 2 TCs
            vmem_limit_bytes=48 * 1024 * 1024),
        cost_estimate=cost,
    )(x2, c2, w1, b1, w2, b2)

    x_out = out2.reshape(B, N, C)
    # Each tile lies inside one batch (tile | N); every element of a tile's
    # (8,128) ssum block carries the same partial sum of (-scale).
    tile_sums = ssum.reshape(grid, 8, 128)[:, 0, 0]                 # (grid,)
    log_det_J = jnp.sum(tile_sums.reshape(B, tiles_per_batch), axis=1)
    return x_out, log_det_J


# ------------------------------ reference -----------------------------------
def _mlp_ref(c2, w1, b1, w2, b2):
    return jnp.maximum(c2 @ w1 + b1, 0.0) @ w2 + b2


def _reference_forward(x, c, p):
    B, N, C = x.shape
    c2 = c.reshape(B * N, -1)
    scale = _mlp_ref(c2, p["ws1"], p["bs1"], p["ws2"], p["bs2"]).reshape(B, N, C)
    bias = _mlp_ref(c2, p["wb1"], p["bb1"], p["wb2"], p["bb2"]).reshape(B, N, C)
    x_out = (x - bias) * jnp.exp(-scale)
    ldj = -jnp.sum(scale.reshape(B, -1), axis=1)
    return x_out, ldj


if __name__ == "__main__":
    # Small shapes; M = B*N = 2048 -> tile = 1024, grid = 2 (even, >= 2).
    B, N, C, Cc, H = 2, 1024, 8, 16, 32

    key = jax.random.PRNGKey(0)
    keys = jax.random.split(key, 10)

    # Deterministic synthetic parameters (transform_net = per-point 2-layer MLP).
    params = {
        "ws1": jax.random.normal(keys[0], (Cc, H), jnp.float32) * 0.1,
        "bs1": jax.random.normal(keys[1], (1, H), jnp.float32) * 0.1,
        "ws2": jax.random.normal(keys[2], (H, C), jnp.float32) * 0.1,
        "bs2": jax.random.normal(keys[3], (1, C), jnp.float32) * 0.1,
        "wb1": jax.random.normal(keys[4], (Cc, H), jnp.float32) * 0.1,
        "bb1": jax.random.normal(keys[5], (1, H), jnp.float32) * 0.1,
        "wb2": jax.random.normal(keys[6], (H, C), jnp.float32) * 0.1,
        "bb2": jax.random.normal(keys[7], (1, C), jnp.float32) * 0.1,
    }

    x = jax.random.normal(keys[8], (B, N, C), jnp.float32)
    c = jax.random.normal(keys[9], (B, N, Cc), jnp.float32)

    x_out, ldj = affine_injector_forward(x, c, params)
    jax.block_until_ready((x_out, ldj))

    x_exp, ldj_exp = _reference_forward(x, c, params)
    assert jnp.allclose(x_out, x_exp, atol=1e-5, rtol=1e-5)
    assert jnp.allclose(ldj, ldj_exp, atol=1e-3, rtol=1e-4)

    print("KERNEL_OK")
</pallas_src>

<mosaic_0001>
module attributes {stable_mosaic.version = 11 : i64} {
  func.func @_affine_injector_kernel(%arg0: i32, %arg1: memref<1024x8xf32, #tpu.memory_space<vmem>>, %arg2: memref<1024x16xf32, #tpu.memory_space<vmem>>, %arg3: memref<16x64xf32, #tpu.memory_space<vmem>>, %arg4: memref<1x64xf32, #tpu.memory_space<vmem>>, %arg5: memref<64x16xf32, #tpu.memory_space<vmem>>, %arg6: memref<1x16xf32, #tpu.memory_space<vmem>>, %arg7: memref<1024x8xf32, #tpu.memory_space<vmem>>, %arg8: memref<8x128xf32, #tpu.memory_space<vmem>>) attributes {dimension_semantics = [#tpu.dimension_semantics<parallel>], iteration_bounds = array<i64: 2>, scalar_prefetch = 0 : i64, scratch_operands = 0 : i64, tpu.core_type = #tpu.core_type<tc>, window_params = [{transform_indices = @transform_0, window_bounds = array<i64: 1024, 8>}, {transform_indices = @transform_1, window_bounds = array<i64: 1024, 16>}, {pipeline_mode = #tpu.pipeline_mode<synchronous>, transform_indices = @transform_2, window_bounds = array<i64: 16, 64>}, {pipeline_mode = #tpu.pipeline_mode<synchronous>, transform_indices = @transform_3, window_bounds = array<i64: 1, 64>}, {pipeline_mode = #tpu.pipeline_mode<synchronous>, transform_indices = @transform_4, window_bounds = array<i64: 64, 16>}, {pipeline_mode = #tpu.pipeline_mode<synchronous>, transform_indices = @transform_5, window_bounds = array<i64: 1, 16>}, {transform_indices = @transform_6, window_bounds = array<i64: 1024, 8>}, {transform_indices = @transform_7, window_bounds = array<i64: 8, 128>}]} {
    %c0 = arith.constant 0 : index
    %c0_0 = arith.constant 0 : index
    %0 = vector.load %arg1[%c0, %c0_0] : memref<1024x8xf32, #tpu.memory_space<vmem>>, vector<1024x8xf32>
    %c0_1 = arith.constant 0 : index
    %c0_2 = arith.constant 0 : index
    %1 = vector.load %arg2[%c0_1, %c0_2] : memref<1024x16xf32, #tpu.memory_space<vmem>>, vector<1024x16xf32>
    %c0_3 = arith.constant 0 : index
    %c0_4 = arith.constant 0 : index
    %2 = vector.load %arg3[%c0_3, %c0_4] : memref<16x64xf32, #tpu.memory_space<vmem>>, vector<16x64xf32>
    %cst = arith.constant dense<0.000000e+00> : vector<1024x64xf32>
    %3 = tpu.matmul %1, %2, %cst {dimension_numbers = #tpu.dot_dimension_numbers<[1], [0], [0], [1], [0, 0, 1, 1], [], []>} : vector<1024x16xf32>, vector<16x64xf32>, vector<1024x64xf32> -> vector<1024x64xf32>
    %c0_5 = arith.constant 0 : index
    %c0_6 = arith.constant 0 : index
    %4 = vector.load %arg4[%c0_5, %c0_6] : memref<1x64xf32, #tpu.memory_space<vmem>>, vector<1x64xf32>
    %5 = vector.broadcast %4 : vector<1x64xf32> to vector<1024x64xf32>
    %6 = arith.addf %3, %5 : vector<1024x64xf32>
    %cst_7 = arith.constant 0.000000e+00 : f32
    %7 = vector.broadcast %cst_7 : f32 to vector<1024x64xf32>
    %8 = arith.maximumf %6, %7 : vector<1024x64xf32>
    %c0_8 = arith.constant 0 : index
    %c0_9 = arith.constant 0 : index
    %9 = vector.load %arg5[%c0_8, %c0_9] : memref<64x16xf32, #tpu.memory_space<vmem>>, vector<64x16xf32>
    %cst_10 = arith.constant dense<0.000000e+00> : vector<1024x16xf32>
    %10 = tpu.matmul %8, %9, %cst_10 {dimension_numbers = #tpu.dot_dimension_numbers<[1], [0], [0], [1], [0, 0, 1, 1], [], []>} : vector<1024x64xf32>, vector<64x16xf32>, vector<1024x16xf32> -> vector<1024x16xf32>
    %c0_11 = arith.constant 0 : index
    %c0_12 = arith.constant 0 : index
    %11 = vector.load %arg6[%c0_11, %c0_12] : memref<1x16xf32, #tpu.memory_space<vmem>>, vector<1x16xf32>
    %12 = vector.broadcast %11 : vector<1x16xf32> to vector<1024x16xf32>
    %13 = arith.addf %10, %12 : vector<1024x16xf32>
    %14 = vector.extract_strided_slice %13 {offsets = [0, 0], sizes = [1024, 8], strides = [1, 1]} : vector<1024x16xf32> to vector<1024x8xf32>
    %15 = vector.extract_strided_slice %13 {offsets = [0, 8], sizes = [1024, 8], strides = [1, 1]} : vector<1024x16xf32> to vector<1024x8xf32>
    %16 = arith.subf %0, %15 : vector<1024x8xf32>
    %17 = math.exp %14 : vector<1024x8xf32>
    %18 = arith.mulf %16, %17 : vector<1024x8xf32>
    %c0_13 = arith.constant 0 : index
    %c0_14 = arith.constant 0 : index
    %19 = vector.load %arg7[%c0_13, %c0_14] : memref<1024x8xf32, #tpu.memory_space<vmem>>, vector<1024x8xf32>
    tpu.vector_store %arg7[%c0_13, %c0_14], %18 {strides = array<i32>} : memref<1024x8xf32, #tpu.memory_space<vmem>>, vector<1024x8xf32>,
    %cst_15 = arith.constant dense<0.000000e+00> : vector<1024xf32>
    %20 = vector.multi_reduction <add>, %14, %cst_15 [1] : vector<1024x8xf32> to vector<1024xf32>
    %21 = vector.shape_cast %20 : vector<1024xf32> to vector<1024x1xf32>
    %cst_16 = arith.constant dense<0.000000e+00> : vector<1xf32>
    %22 = vector.multi_reduction <add>, %21, %cst_16 [0] : vector<1024x1xf32> to vector<1xf32>
    %23 = vector.shape_cast %22 : vector<1xf32> to vector<1x1xf32>
    %24 = vector.shape_cast %23 : vector<1x1xf32> to vector<1x1xf32>
    %25 = vector.broadcast %24 : vector<1x1xf32> to vector<8x128xf32>
    %c0_17 = arith.constant 0 : index
    %c0_18 = arith.constant 0 : index
    %26 = vector.load %arg8[%c0_17, %c0_18] : memref<8x128xf32, #tpu.memory_space<vmem>>, vector<8x128xf32>
    tpu.vector_store %arg8[%c0_17, %c0_18], %25 {strides = array<i32>} : memref<8x128xf32, #tpu.memory_space<vmem>>, vector<8x128xf32>,
    return
  }
  func.func @transform_0(%arg0: i32) -> (i32, i32) {
    %c0_i32 = arith.constant 0 : i32
    %c0_i32_0 = arith.constant 0 : i32
    return %arg0, %c0_i32 : i32, i32
  }
  func.func @transform_1(%arg0: i32) -> (i32, i32) {
    %c0_i32 = arith.constant 0 : i32
    %c0_i32_0 = arith.constant 0 : i32
    return %arg0, %c0_i32 : i32, i32
  }
  func.func @transform_2(%arg0: i32) -> (i32, i32) {
    %c0_i32 = arith.constant 0 : i32
    %c0_i32_0 = arith.constant 0 : i32
    %c0_i32_1 = arith.constant 0 : i32
    return %c0_i32, %c0_i32_0 : i32, i32
  }
  func.func @transform_3(%arg0: i32) -> (i32, i32) {
    %c0_i32 = arith.constant 0 : i32
    %c0_i32_0 = arith.constant 0 : i32
    %c0_i32_1 = arith.constant 0 : i32
    return %c0_i32, %c0_i32_0 : i32, i32
  }
  func.func @transform_4(%arg0: i32) -> (i32, i32) {
    %c0_i32 = arith.constant 0 : i32
    %c0_i32_0 = arith.constant 0 : i32
    %c0_i32_1 = arith.constant 0 : i32
    return %c0_i32, %c0_i32_0 : i32, i32
  }
  func.func @transform_5(%arg0: i32) -> (i32, i32) {
    %c0_i32 = arith.constant 0 : i32
    %c0_i32_0 = arith.constant 0 : i32
    %c0_i32_1 = arith.constant 0 : i32
    return %c0_i32, %c0_i32_0 : i32, i32
  }
  func.func @transform_6(%arg0: i32) -> (i32, i32) {
    %c0_i32 = arith.constant 0 : i32
    %c0_i32_0 = arith.constant 0 : i32
    return %arg0, %c0_i32 : i32, i32
  }
  func.func @transform_7(%arg0: i32) -> (i32, i32) {
    %c0_i32 = arith.constant 0 : i32
    %c0_i32_0 = arith.constant 0 : i32
    return %arg0, %c0_i32 : i32, i32
  }
}

</mosaic_0001>

<llo_original>
// kernel: neg.2
$region0: #{neg.2}
  #allocation0 [shape = 's32[1]{0}', space=sflag, size = 0x4, scoped, tag = 'scoped memory for neg.2']
  %s0 = inlined_call_operand.vmem [shape: f32[32,8], index: 0, kind: input, shape index: {}]
  %s1 = inlined_call_operand.vmem [shape: f32[32,8], index: 1, kind: output, shape index: {}]
  %v2 = vld [vmem:[%s0] sm:$0xff]
  %3 = xla_tuple %v2
  %4 = xla_tuple %3
  %v5 = vxor.u32 %v2, 2147483648
  %6 = xla_tuple %v5
  %7 = vst [vmem:[%s1] sm:$0xff] %v5

// kernel: neg.3
$region0: #{neg.3}
  #allocation0 [shape = 's32[1]{0}', space=sflag, size = 0x4, scoped, tag = 'scoped memory for neg.3']
  %s0 = inlined_call_operand.vmem [shape: f32[1,8], index: 0, kind: input, shape index: {}]
  %s1 = inlined_call_operand.vmem [shape: f32[1,8], index: 1, kind: output, shape index: {}]
  %v2 = vld [vmem:[%s0] sm:$0x1]
  %3 = xla_tuple %v2
  %4 = xla_tuple %3
  %v5 = vxor.u32 %v2, 2147483648
  %6 = xla_tuple %v5
  %7 = vst [vmem:[%s1] sm:$0x1] %v5

// kernel: affine_injector_forward.1
$region0: #{affine_injector_forward.1}
  #allocation0 [shape = 'u32[]', space=smem, size = 0x4, offset = 0x4, fixed_abs, tag = 'smem constant byte address 0x4 - core index']
  #allocation1 [shape = 'u32[144,128]{1,0:T(1,128)}', space=vmem, size = 0x12000, scoped, tag = 'internal scratch']
  %s0 = inlined_call_operand.vmem [shape: f32[2048,8], index: 0, kind: input, shape index: {}]
  %s1 = inlined_call_operand.vmem [shape: f32[2048,16], index: 1, kind: input, shape index: {}]
  %s2 = inlined_call_operand.vmem [shape: f32[16,64], index: 2, kind: input, shape index: {}]
  %s3 = inlined_call_operand.vmem [shape: f32[1,64], index: 3, kind: input, shape index: {}]
  %s4 = inlined_call_operand.vmem [shape: f32[64,16], index: 4, kind: input, shape index: {}]
  %s5 = inlined_call_operand.vmem [shape: f32[1,16], index: 5, kind: input, shape index: {}]
  %s6 = inlined_call_operand.vmem [shape: f32[2048,8], index: 6, kind: output, shape index: {0}]
  %s7 = inlined_call_operand.vmem [shape: f32[16,128], index: 7, kind: output, shape index: {1}]
  %8 = xla_tuple %s6, %s7
  %s9 = sld [smem:[#allocation0]]
  $region65: #{affine_injector_forward.1} parent=0
    _
  %s11 = ssub.s32 1, %s9
  %s12 = scalar_select 0, %s11, %s9
  loop: start=0, step=1, limit=4
  $region2: #{affine_injector_forward.1} parent=0 // loop_pre_header
    _
  $region3: #{affine_injector_forward.1} parent=0 // loop_header
    %s14 = sphi 0, %s18
    %p15 = scmp.ge.s32.totalorder %s14, 4
    %s24 = sphi 0, %s26
    %s27 = sphi 0, %s24
    %s28 = sphi 0, %s27
    %s44 = sphi 0, %s28
    %s50 = sphi 0, %s52
    %s53 = sphi 0, %s50
    %s54 = sphi 0, %s53
    %s70 = sphi 0, %s54
    %s74 = sphi 0, %s74
    %s76 = sphi 0, %s74
    %s77 = sphi 0, %s76
    %s91 = sphi 0, %s77
    %s95 = sphi 0, %s95
    %s97 = sphi 0, %s95
    %s98 = sphi 0, %s97
    %s112 = sphi 0, %s98
    %s116 = sphi 0, %s116
    %s118 = sphi 0, %s116
    %s119 = sphi 0, %s118
    %s133 = sphi 0, %s119
    %s137 = sphi 0, %s137
    %s139 = sphi 0, %s137
    %s140 = sphi 0, %s139
    %s154 = sphi 0, %s140
    %s160 = sphi 0, %s162
    %s163 = sphi 0, %s160
    %s164 = sphi 0, %s163
    %s180 = sphi 0, %s164
    %s186 = sphi 0, %s188
    %s189 = sphi 0, %s186
    %s190 = sphi 0, %s189
    %s206 = sphi 0, %s190
  $region4: #{affine_injector_forward.1} parent=0 // loop_header_branch
    %17 = sbr.rel (%p15) target = $region8
  $region5: #{affine_injector_forward.1} parent=0 // loop_body
    %s19 = ssub.s32 %s14, 1
    %s20 = ssub.s32 %s14, 2
    %s21 = sadd.s32 %s14, 1
    %s22 = ssub.s32 %s14, %s21
    %p23 = scmp.eq.s32.totalorder %s22, 0
    %s25 = sadd.s32 %s24, 1
    %s26 = scalar_select %p23, %s24, %s25
    %p29 = pneg %p23
    %p30 = scmp.eq.s32.totalorder %s14, 1
    %p31 = por %p29, %p30
    %p32 = scmp.ne.s32.totalorder %s24, %s27
    %p33 = scmp.eq.s32.totalorder %s14, 0
    %p34 = por %p32, %p33
    %p35 = scmp.ne.s32.totalorder %s24, %s27
    %p36 = scmp.eq.s32.totalorder %s19, 1
    %p37 = por %p35, %p36
    %p38 = scmp.ne.s32.totalorder %s27, %s28
    %p39 = scmp.eq.s32.totalorder %s19, 0
    %p40 = por %p38, %p39
    %p41 = scmp.ne.s32.totalorder %s27, %s28
    %p42 = scmp.eq.s32.totalorder %s20, 1
    %p43 = por %p41, %p42
    %p45 = scmp.ne.s32.totalorder %s28, %s44
    %p46 = scmp.eq.s32.totalorder %s20, 0
    %p47 = por %p45, %p46
    %s48 = ssub.s32 %s14, %s21
    %p49 = scmp.eq.s32.totalorder %s48, 0
    %s51 = sadd.s32 %s50, 1
    %s52 = scalar_select %p49, %s50, %s51
    %p55 = pneg %p49
    %p56 = scmp.eq.s32.totalorder %s14, 1
    %p57 = por %p55, %p56
    %p58 = scmp.ne.s32.totalorder %s50, %s53
    %p59 = scmp.eq.s32.totalorder %s14, 0
    %p60 = por %p58, %p59
    %p61 = scmp.ne.s32.totalorder %s50, %s53
    %p62 = scmp.eq.s32.totalorder %s19, 1
    %p63 = por %p61, %p62
    %p64 = scmp.ne.s32.totalorder %s53, %s54
    %p65 = scmp.eq.s32.totalorder %s19, 0
    %p66 = por %p64, %p65
    %p67 = scmp.ne.s32.totalorder %s53, %s54
    %p68 = scmp.eq.s32.totalorder %s20, 1
    %p69 = por %p67, %p68
    %p71 = scmp.ne.s32.totalorder %s54, %s70
    %p72 = scmp.eq.s32.totalorder %s20, 0
    %p73 = por %p71, %p72
    %s75 = sadd.s32 %s74, 1
    %p78 = scmp.eq.s32.totalorder %s14, 1
    %p79 = scmp.ne.s32.totalorder %s74, %s76
    %p80 = scmp.eq.s32.totalorder %s14, 0
    %p81 = por %p79, %p80
    %p82 = scmp.ne.s32.totalorder %s74, %s76
    %p83 = scmp.eq.s32.totalorder %s19, 1
    %p84 = por %p82, %p83
    %p85 = scmp.ne.s32.totalorder %s76, %s77
    %p86 = scmp.eq.s32.totalorder %s19, 0
    %p87 = por %p85, %p86
    %p88 = scmp.ne.s32.totalorder %s76, %s77
    %p89 = scmp.eq.s32.totalorder %s20, 1
    %p90 = por %p88, %p89
    %p92 = scmp.ne.s32.totalorder %s77, %s91
    %p93 = scmp.eq.s32.totalorder %s20, 0
    %p94 = por %p92, %p93
    %s96 = sadd.s32 %s95, 1
    %p99 = scmp.eq.s32.totalorder %s14, 1
    %p100 = scmp.ne.s32.totalorder %s95, %s97
    %p101 = scmp.eq.s32.totalorder %s14, 0
    %p102 = por %p100, %p101
    %p103 = scmp.ne.s32.totalorder %s95, %s97
    %p104 = scmp.eq.s32.totalorder %s19, 1
    %p105 = por %p103, %p104
    %p106 = scmp.ne.s32.totalorder %s97, %s98
    %p107 = scmp.eq.s32.totalorder %s19, 0
    %p108 = por %p106, %p107
    %p109 = scmp.ne.s32.totalorder %s97, %s98
    %p110 = scmp.eq.s32.totalorder %s20, 1
    %p111 = por %p109, %p110
    %p113 = scmp.ne.s32.totalorder %s98, %s112
    %p114 = scmp.eq.s32.totalorder %s20, 0
    %p115 = por %p113, %p114
    %s117 = sadd.s32 %s116, 1
    %p120 = scmp.eq.s32.totalorder %s14, 1
    %p121 = scmp.ne.s32.totalorder %s116, %s118
    %p122 = scmp.eq.s32.totalorder %s14, 0
    %p123 = por %p121, %p122
    %p124 = scmp.ne.s32.totalorder %s116, %s118
    %p125 = scmp.eq.s32.totalorder %s19, 1
    %p126 = por %p124, %p125
    %p127 = scmp.ne.s32.totalorder %s118, %s119
    %p128 = scmp.eq.s32.totalorder %s19, 0
    %p129 = por %p127, %p128
    %p130 = scmp.ne.s32.totalorder %s118, %s119
    %p131 = scmp.eq.s32.totalorder %s20, 1
    %p132 = por %p130, %p131
    %p134 = scmp.ne.s32.totalorder %s119, %s133
    %p135 = scmp.eq.s32.totalorder %s20, 0
    %p136 = por %p134, %p135
    %s138 = sadd.s32 %s137, 1
    %p141 = scmp.eq.s32.totalorder %s14, 1
    %p142 = scmp.ne.s32.totalorder %s137, %s139
    %p143 = scmp.eq.s32.totalorder %s14, 0
    %p144 = por %p142, %p143
    %p145 = scmp.ne.s32.totalorder %s137, %s139
    %p146 = scmp.eq.s32.totalorder %s19, 1
    %p147 = por %p145, %p146
    %p148 = scmp.ne.s32.totalorder %s139, %s140
    %p149 = scmp.eq.s32.totalorder %s19, 0
    %p150 = por %p148, %p149
    %p151 = scmp.ne.s32.totalorder %s139, %s140
    %p152 = scmp.eq.s32.totalorder %s20, 1
    %p153 = por %p151, %p152
    %p155 = scmp.ne.s32.totalorder %s140, %s154
    %p156 = scmp.eq.s32.totalorder %s20, 0
    %p157 = por %p155, %p156
    %s158 = ssub.s32 %s14, %s21
    %p159 = scmp.eq.s32.totalorder %s158, 0
    %s161 = sadd.s32 %s160, 1
    %s162 = scalar_select %p159, %s160, %s161
    %p165 = pneg %p159
    %p166 = scmp.eq.s32.totalorder %s14, 1
    %p167 = por %p165, %p166
    %p168 = scmp.ne.s32.totalorder %s160, %s163
    %p169 = scmp.eq.s32.totalorder %s14, 0
    %p170 = por %p168, %p169
    %p171 = scmp.ne.s32.totalorder %s160, %s163
    %p172 = scmp.eq.s32.totalorder %s19, 1
    %p173 = por %p171, %p172
    %p174 = scmp.ne.s32.totalorder %s163, %s164
    %p175 = scmp.eq.s32.totalorder %s19, 0
    %p176 = por %p174, %p175
    %p177 = scmp.ne.s32.totalorder %s163, %s164
    %p178 = scmp.eq.s32.totalorder %s20, 1
    %p179 = por %p177, %p178
    %p181 = scmp.ne.s32.totalorder %s164, %s180
    %p182 = scmp.eq.s32.totalorder %s20, 0
    %p183 = por %p181, %p182
    %s184 = ssub.s32 %s14, %s21
    %p185 = scmp.eq.s32.totalorder %s184, 0
    %s187 = sadd.s32 %s186, 1
    %s188 = scalar_select %p185, %s186, %s187
    %p191 = pneg %p185
    %p192 = scmp.eq.s32.totalorder %s14, 1
    %p193 = por %p191, %p192
    %p194 = scmp.ne.s32.totalorder %s186, %s189
    %p195 = scmp.eq.s32.totalorder %s14, 0
    %p196 = por %p194, %p195
    %p197 = scmp.ne.s32.totalorder %s186, %s189
    %p198 = scmp.eq.s32.totalorder %s19, 1
    %p199 = por %p197, %p198
    %p200 = scmp.ne.s32.totalorder %s189, %s190
    %p201 = scmp.eq.s32.totalorder %s19, 0
    %p202 = por %p200, %p201
    %p203 = scmp.ne.s32.totalorder %s189, %s190
    %p204 = scmp.eq.s32.totalorder %s20, 1
    %p205 = por %p203, %p204
    %p207 = scmp.ne.s32.totalorder %s190, %s206
    %p208 = scmp.eq.s32.totalorder %s20, 0
    %p209 = por %p207, %p208
    %p210 = scmp.le.s32.totalorder 1, %s14
    %p211 = scmp.lt.s32.totalorder %s14, 3
    %p212 = pnand %p210, %p211
    %p213 = pneg %p212
    // Predicated region
    $region9: #{affine_injector_forward.1} parent=5 // pred_check
      _
    $region10: #{affine_injector_forward.1} parent=5 // pred_check_branch
      %215 = sbr.rel (%p212) target = $region12
    $region11: #{affine_injector_forward.1} parent=5 // pred_region
      %s216 = ssub.s32 %s14, 1
      // Predicated region
      $region13: #{affine_injector_forward.1} parent=11 // pred_check
        %p217 = pneg %p87
      $region14: #{affine_injector_forward.1} parent=11 // pred_check_branch
        %219 = sbr.rel (%p217) target = $region16
      $region15: #{affine_injector_forward.1} parent=11 // pred_region
        _
      $region16: #{affine_injector_forward.1} parent=11 // pred_fallthru
        _
      // Predicated region
      $region17: #{affine_injector_forward.1} parent=11 // pred_check
        %p220 = pneg %p108
      $region18: #{affine_injector_forward.1} parent=11 // pred_check_branch
        %222 = sbr.rel (%p220) target = $region20
      $region19: #{affine_injector_forward.1} parent=11 // pred_region
        _
      $region20: #{affine_injector_forward.1} parent=11 // pred_fallthru
        _
      // Predicated region
      $region21: #{affine_injector_forward.1} parent=11 // pred_check
        %p223 = pneg %p129
      $region22: #{affine_injector_forward.1} parent=11 // pred_check_branch
        %225 = sbr.rel (%p223) target = $region24
      $region23: #{affine_injector_forward.1} parent=11 // pred_region
        _
      $region24: #{affine_injector_forward.1} parent=11 // pred_fallthru
        _
      // Predicated region
      $region25: #{affine_injector_forward.1} parent=11 // pred_check
        %p226 = pneg %p150
      $region26: #{affine_injector_forward.1} parent=11 // pred_check_branch
        %228 = sbr.rel (%p226) target = $region28
      $region27: #{affine_injector_forward.1} parent=11 // pred_region
        _
      $region28: #{affine_injector_forward.1} parent=11 // pred_fallthru
        _
    $region12: #{affine_injector_forward.1} parent=5 // pred_fallthru
      _
    %p229 = scmp.lt.s32.totalorder %s14, 2
    // Predicated region
    $region29: #{affine_injector_forward.1} parent=5 // pred_check
      %p230 = pneg %p229
    $region30: #{affine_injector_forward.1} parent=5 // pred_check_branch
      %232 = sbr.rel (%p230) target = $region32
    $region31: #{affine_injector_forward.1} parent=5 // pred_region
      // Predicated region
      $region33: #{affine_injector_forward.1} parent=31 // pred_check
        %p233 = pneg %p34
      $region34: #{affine_injector_forward.1} parent=31 // pred_check_branch
        %235 = sbr.rel (%p233) target = $region36
      $region35: #{affine_injector_forward.1} parent=31 // pred_region
        %s236 = smul.u32 128, %s14
        %p237 = scmp.lt.s32.totalorder %s236, 255
        %s238 = scalar_select %p237, %s236, 255
        %s239 = smul.addr %s238, 8
        %s240 = scalar_lea.vmem %s0, %s239
        %s241 = smul.u32 128, %s14
      $region36: #{affine_injector_forward.1} parent=31 // pred_fallthru
        _
      // Predicated region
      $region37: #{affine_injector_forward.1} parent=31 // pred_check
        %p242 = pneg %p60
      $region38: #{affine_injector_forward.1} parent=31 // pred_check_branch
        %244 = sbr.rel (%p242) target = $region40
      $region39: #{affine_injector_forward.1} parent=31 // pred_region
        %s245 = smul.u32 128, %s14
        %p246 = scmp.lt.s32.totalorder %s245, 255
        %s247 = scalar_select %p246, %s245, 255
        %s248 = smul.addr %s247, 8
        %s249 = scalar_lea.vmem %s1, %s248
        %s250 = smul.u32 128, %s14
      $region40: #{affine_injector_forward.1} parent=31 // pred_fallthru
        _
    $region32: #{affine_injector_forward.1} parent=5 // pred_fallthru
      _
    %p251 = scmp.le.s32.totalorder 1, %s14
    %p252 = scmp.lt.s32.totalorder %s14, 3
    %p253 = pnand %p251, %p252
    %p254 = pneg %p253
    // Predicated region
    $region41: #{affine_injector_forward.1} parent=5 // pred_check
      _
    $region42: #{affine_injector_forward.1} parent=5 // pred_check_branch
      %256 = sbr.rel (%p253) target = $region44
    $region43: #{affine_injector_forward.1} parent=5 // pred_region
      %s257 = ssub.s32 %s14, 1
      %s258 = smul.u32 128, %s19
      %p259 = scmp.lt.s32.totalorder %s258, 255
      %s260 = scalar_select %p259, %s258, 255
      %s261 = smul.addr %s260, 8
      %s262 = scalar_lea.vmem %s0, %s261
      %p263 = pneg %p40
      %p264 = pneg %p37
      %s265 = smul.u32 128, %s19
      %p266 = scmp.lt.s32.totalorder %s265, 255
      %s267 = scalar_select %p266, %s265, 255
      %s268 = smul.addr %s267, 8
      %s269 = scalar_lea.vmem %s1, %s268
      %p270 = pneg %p66
      %p271 = pneg %p63
      %p272 = pneg %p87
      %p273 = pneg %p84
      %p274 = pneg %p108
      %p275 = pneg %p105
      %p276 = pneg %p129
      %p277 = pneg %p126
      %p278 = pneg %p150
      %p279 = pneg %p147
      %p280 = pneg %p176
      %p281 = pneg %p173
      %s282 = smul.u32 128, %s19
      %p283 = scmp.lt.s32.totalorder %s282, 255
      %s284 = scalar_select %p283, %s282, 255
      %s285 = smul.addr %s284, 8
      %s286 = scalar_lea.vmem %s6, %s285
      %p287 = pneg %p202
      %p288 = pneg %p199
      %p289 = scmp.lt.s32.totalorder %s19, 1
      %s290 = scalar_select %p289, %s19, 1
      %s291 = smul.addr %s290, 8
      %s292 = scalar_lea.vmem %s7, %s291
      %s293 = smul.u32 128, %s19
      %p294 = scmp.lt.s32.totalorder %s293, 255
      %s295 = scalar_select %p294, %s293, 255
      %s296 = smul.addr %s295, 8
      %s297 = scalar_lea.vmem %s0, %s296
      %s298 = smul.u32 128, %s19
      %s299 = smul.u32 128, %s19
      %p300 = scmp.lt.s32.totalorder %s299, 255
      %s301 = scalar_select %p300, %s299, 255
      %s302 = smul.addr %s301, 8
      %s303 = scalar_lea.vmem %s1, %s302
      %s304 = smul.u32 128, %s19
      %s305 = smul.u32 128, %s19
      %p306 = scmp.lt.s32.totalorder %s305, 255
      %s307 = scalar_select %p306, %s305, 255
      %s308 = smul.addr %s307, 8
      %s309 = scalar_lea.vmem %s6, %s308
      %s310 = smul.u32 128, %s19
      %p311 = scmp.lt.s32.totalorder %s19, 1
      %s312 = scalar_select %p311, %s19, 1
      %s313 = smul.addr %s312, 8
      %s314 = scalar_lea.vmem %s7, %s313
      %v315 = vld [vmem:[%s297] sm:$0xff]
      %v316 = vld [vmem:[%s297 + $0x8] sm:$0xff]
      %v317 = vld [vmem:[%s297 + $0x10] sm:$0xff]
      %v318 = vld [vmem:[%s297 + $0x18] sm:$0xff]
      %v319 = vld [vmem:[%s297 + $0x20] sm:$0xff]
      %v320 = vld [vmem:[%s297 + $0x28] sm:$0xff]
      %v321 = vld [vmem:[%s297 + $0x30] sm:$0xff]
      %v322 = vld [vmem:[%s297 + $0x38] sm:$0xff]
      %v323 = vld [vmem:[%s297 + $0x40] sm:$0xff]
      %v324 = vld [vmem:[%s297 + $0x48] sm:$0xff]
      %v325 = vld [vmem:[%s297 + $0x50] sm:$0xff]
      %v326 = vld [vmem:[%s297 + $0x58] sm:$0xff]
      %v327 = vld [vmem:[%s297 + $0x60] sm:$0xff]
      %v328 = vld [vmem:[%s297 + $0x68] sm:$0xff]
      %v329 = vld [vmem:[%s297 + $0x70] sm:$0xff]
      %v330 = vld [vmem:[%s297 + $0x78] sm:$0xff]
      %v331 = vld [vmem:[%s297 + $0x80] sm:$0xff]
      %v332 = vld [vmem:[%s297 + $0x88] sm:$0xff]
      %v333 = vld [vmem:[%s297 + $0x90] sm:$0xff]
      %v334 = vld [vmem:[%s297 + $0x98] sm:$0xff]
      %v335 = vld [vmem:[%s297 + $0xa0] sm:$0xff]
      %v336 = vld [vmem:[%s297 + $0xa8] sm:$0xff]
      %v337 = vld [vmem:[%s297 + $0xb0] sm:$0xff]
      %v338 = vld [vmem:[%s297 + $0xb8] sm:$0xff]
      %v339 = vld [vmem:[%s297 + $0xc0] sm:$0xff]
      %v340 = vld [vmem:[%s297 + $0xc8] sm:$0xff]
      %v341 = vld [vmem:[%s297 + $0xd0] sm:$0xff]
      %v342 = vld [vmem:[%s297 + $0xd8] sm:$0xff]
      %v343 = vld [vmem:[%s297 + $0xe0] sm:$0xff]
      %v344 = vld [vmem:[%s297 + $0xe8] sm:$0xff]
      %v345 = vld [vmem:[%s297 + $0xf0] sm:$0xff]
      %v346 = vld [vmem:[%s297 + $0xf8] sm:$0xff]
      %v347 = vld [vmem:[%s297 + $0x100] sm:$0xff]
      %v348 = vld [vmem:[%s297 + $0x108] sm:$0xff]
      %v349 = vld [vmem:[%s297 + $0x110] sm:$0xff]
      %v350 = vld [vmem:[%s297 + $0x118] sm:$0xff]
      %v351 = vld [vmem:[%s297 + $0x120] sm:$0xff]
      %v352 = vld [vmem:[%s297 + $0x128] sm:$0xff]
      %v353 = vld [vmem:[%s297 + $0x130] sm:$0xff]
      %v354 = vld [vmem:[%s297 + $0x138] sm:$0xff]
      %v355 = vld [vmem:[%s297 + $0x140] sm:$0xff]
      %v356 = vld [vmem:[%s297 + $0x148] sm:$0xff]
      %v357 = vld [vmem:[%s297 + $0x150] sm:$0xff]
      %v358 = vld [vmem:[%s297 + $0x158] sm:$0xff]
      %v359 = vld [vmem:[%s297 + $0x160] sm:$0xff]
      %v360 = vld [vmem:[%s297 + $0x168] sm:$0xff]
      %v361 = vld [vmem:[%s297 + $0x170] sm:$0xff]
      %v362 = vld [vmem:[%s297 + $0x178] sm:$0xff]
      %v363 = vld [vmem:[%s297 + $0x180] sm:$0xff]
      %v364 = vld [vmem:[%s297 + $0x188] sm:$0xff]
      %v365 = vld [vmem:[%s297 + $0x190] sm:$0xff]
      %v366 = vld [vmem:[%s297 + $0x198] sm:$0xff]
      %v367 = vld [vmem:[%s297 + $0x1a0] sm:$0xff]
      %v368 = vld [vmem:[%s297 + $0x1a8] sm:$0xff]
      %v369 = vld [vmem:[%s297 + $0x1b0] sm:$0xff]
      %v370 = vld [vmem:[%s297 + $0x1b8] sm:$0xff]
      %v371 = vld [vmem:[%s297 + $0x1c0] sm:$0xff]
      %v372 = vld [vmem:[%s297 + $0x1c8] sm:$0xff]
      %v373 = vld [vmem:[%s297 + $0x1d0] sm:$0xff]
      %v374 = vld [vmem:[%s297 + $0x1d8] sm:$0xff]
      %v375 = vld [vmem:[%s297 + $0x1e0] sm:$0xff]
      %v376 = vld [vmem:[%s297 + $0x1e8] sm:$0xff]
      %v377 = vld [vmem:[%s297 + $0x1f0] sm:$0xff]
      %v378 = vld [vmem:[%s297 + $0x1f8] sm:$0xff]
      %v379 = vld [vmem:[%s297 + $0x200] sm:$0xff]
      %v380 = vld [vmem:[%s297 + $0x208] sm:$0xff]
      %v381 = vld [vmem:[%s297 + $0x210] sm:$0xff]
      %v382 = vld [vmem:[%s297 + $0x218] sm:$0xff]
      %v383 = vld [vmem:[%s297 + $0x220] sm:$0xff]
      %v384 = vld [vmem:[%s297 + $0x228] sm:$0xff]
      %v385 = vld [vmem:[%s297 + $0x230] sm:$0xff]
      %v386 = vld [vmem:[%s297 + $0x238] sm:$0xff]
      %v387 = vld [vmem:[%s297 + $0x240] sm:$0xff]
      %v388 = vld [vmem:[%s297 + $0x248] sm:$0xff]
      %v389 = vld [vmem:[%s297 + $0x250] sm:$0xff]
      %v390 = vld [vmem:[%s297 + $0x258] sm:$0xff]
      %v391 = vld [vmem:[%s297 + $0x260] sm:$0xff]
      %v392 = vld [vmem:[%s297 + $0x268] sm:$0xff]
      %v393 = vld [vmem:[%s297 + $0x270] sm:$0xff]
      %v394 = vld [vmem:[%s297 + $0x278] sm:$0xff]
      %v395 = vld [vmem:[%s297 + $0x280] sm:$0xff]
      %v396 = vld [vmem:[%s297 + $0x288] sm:$0xff]
      %v397 = vld [vmem:[%s297 + $0x290] sm:$0xff]
      %v398 = vld [vmem:[%s297 + $0x298] sm:$0xff]
      %v399 = vld [vmem:[%s297 + $0x2a0] sm:$0xff]
      %v400 = vld [vmem:[%s297 + $0x2a8] sm:$0xff]
      %v401 = vld [vmem:[%s297 + $0x2b0] sm:$0xff]
      %v402 = vld [vmem:[%s297 + $0x2b8] sm:$0xff]
      %v403 = vld [vmem:[%s297 + $0x2c0] sm:$0xff]
      %v404 = vld [vmem:[%s297 + $0x2c8] sm:$0xff]
      %v405 = vld [vmem:[%s297 + $0x2d0] sm:$0xff]
      %v406 = vld [vmem:[%s297 + $0x2d8] sm:$0xff]
      %v407 = vld [vmem:[%s297 + $0x2e0] sm:$0xff]
      %v408 = vld [vmem:[%s297 + $0x2e8] sm:$0xff]
      %v409 = vld [vmem:[%s297 + $0x2f0] sm:$0xff]
      %v410 = vld [vmem:[%s297 + $0x2f8] sm:$0xff]
      %v411 = vld [vmem:[%s297 + $0x300] sm:$0xff]
      %v412 = vld [vmem:[%s297 + $0x308] sm:$0xff]
      %v413 = vld [vmem:[%s297 + $0x310] sm:$0xff]
      %v414 = vld [vmem:[%s297 + $0x318] sm:$0xff]
      %v415 = vld [vmem:[%s297 + $0x320] sm:$0xff]
      %v416 = vld [vmem:[%s297 + $0x328] sm:$0xff]
      %v417 = vld [vmem:[%s297 + $0x330] sm:$0xff]
      %v418 = vld [vmem:[%s297 + $0x338] sm:$0xff]
      %v419 = vld [vmem:[%s297 + $0x340] sm:$0xff]
      %v420 = vld [vmem:[%s297 + $0x348] sm:$0xff]
      %v421 = vld [vmem:[%s297 + $0x350] sm:$0xff]
      %v422 = vld [vmem:[%s297 + $0x358] sm:$0xff]
      %v423 = vld [vmem:[%s297 + $0x360] sm:$0xff]
      %v424 = vld [vmem:[%s297 + $0x368] sm:$0xff]
      %v425 = vld [vmem:[%s297 + $0x370] sm:$0xff]
      %v426 = vld [vmem:[%s297 + $0x378] sm:$0xff]
      %v427 = vld [vmem:[%s297 + $0x380] sm:$0xff]
      %v428 = vld [vmem:[%s297 + $0x388] sm:$0xff]
      %v429 = vld [vmem:[%s297 + $0x390] sm:$0xff]
      %v430 = vld [vmem:[%s297 + $0x398] sm:$0xff]
      %v431 = vld [vmem:[%s297 + $0x3a0] sm:$0xff]
      %v432 = vld [vmem:[%s297 + $0x3a8] sm:$0xff]
      %v433 = vld [vmem:[%s297 + $0x3b0] sm:$0xff]
      %v434 = vld [vmem:[%s297 + $0x3b8] sm:$0xff]
      %v435 = vld [vmem:[%s297 + $0x3c0] sm:$0xff]
      %v436 = vld [vmem:[%s297 + $0x3c8] sm:$0xff]
      %v437 = vld [vmem:[%s297 + $0x3d0] sm:$0xff]
      %v438 = vld [vmem:[%s297 + $0x3d8] sm:$0xff]
      %v439 = vld [vmem:[%s297 + $0x3e0] sm:$0xff]
      %v440 = vld [vmem:[%s297 + $0x3e8] sm:$0xff]
      %v441 = vld [vmem:[%s297 + $0x3f0] sm:$0xff]
      %v442 = vld [vmem:[%s297 + $0x3f8] sm:$0xff]
      %v443 = vld [vmem:[%s303] sm:$0xff]
      %v444 = vld [vmem:[%s303 + $0x8] sm:$0xff]
      %v445 = vld [vmem:[%s303 + $0x10] sm:$0xff]
      %v446 = vld [vmem:[%s303 + $0x18] sm:$0xff]
      %v447 = vld [vmem:[%s303 + $0x20] sm:$0xff]
      %v448 = vld [vmem:[%s303 + $0x28] sm:$0xff]
      %v449 = vld [vmem:[%s303 + $0x30] sm:$0xff]
      %v450 = vld [vmem:[%s303 + $0x38] sm:$0xff]
      %v451 = vld [vmem:[%s303 + $0x40] sm:$0xff]
      %v452 = vld [vmem:[%s303 + $0x48] sm:$0xff]
      %v453 = vld [vmem:[%s303 + $0x50] sm:$0xff]
      %v454 = vld [vmem:[%s303 + $0x58] sm:$0xff]
      %v455 = vld [vmem:[%s303 + $0x60] sm:$0xff]
      %v456 = vld [vmem:[%s303 + $0x68] sm:$0xff]
      %v457 = vld [vmem:[%s303 + $0x70] sm:$0xff]
      %v458 = vld [vmem:[%s303 + $0x78] sm:$0xff]
      %v459 = vld [vmem:[%s303 + $0x80] sm:$0xff]
      %v460 = vld [vmem:[%s303 + $0x88] sm:$0xff]
      %v461 = vld [vmem:[%s303 + $0x90] sm:$0xff]
      %v462 = vld [vmem:[%s303 + $0x98] sm:$0xff]
      %v463 = vld [vmem:[%s303 + $0xa0] sm:$0xff]
      %v464 = vld [vmem:[%s303 + $0xa8] sm:$0xff]
      %v465 = vld [vmem:[%s303 + $0xb0] sm:$0xff]
      %v466 = vld [vmem:[%s303 + $0xb8] sm:$0xff]
      %v467 = vld [vmem:[%s303 + $0xc0] sm:$0xff]
      %v468 = vld [vmem:[%s303 + $0xc8] sm:$0xff]
      %v469 = vld [vmem:[%s303 + $0xd0] sm:$0xff]
      %v470 = vld [vmem:[%s303 + $0xd8] sm:$0xff]
      %v471 = vld [vmem:[%s303 + $0xe0] sm:$0xff]
      %v472 = vld [vmem:[%s303 + $0xe8] sm:$0xff]
      %v473 = vld [vmem:[%s303 + $0xf0] sm:$0xff]
      %v474 = vld [vmem:[%s303 + $0xf8] sm:$0xff]
      %v475 = vld [vmem:[%s303 + $0x100] sm:$0xff]
      %v476 = vld [vmem:[%s303 + $0x108] sm:$0xff]
      %v477 = vld [vmem:[%s303 + $0x110] sm:$0xff]
      %v478 = vld [vmem:[%s303 + $0x118] sm:$0xff]
      %v479 = vld [vmem:[%s303 + $0x120] sm:$0xff]
      %v480 = vld [vmem:[%s303 + $0x128] sm:$0xff]
      %v481 = vld [vmem:[%s303 + $0x130] sm:$0xff]
      %v482 = vld [vmem:[%s303 + $0x138] sm:$0xff]
      %v483 = vld [vmem:[%s303 + $0x140] sm:$0xff]
      %v484 = vld [vmem:[%s303 + $0x148] sm:$0xff]
      %v485 = vld [vmem:[%s303 + $0x150] sm:$0xff]
      %v486 = vld [vmem:[%s303 + $0x158] sm:$0xff]
      %v487 = vld [vmem:[%s303 + $0x160] sm:$0xff]
      %v488 = vld [vmem:[%s303 + $0x168] sm:$0xff]
      %v489 = vld [vmem:[%s303 + $0x170] sm:$0xff]
      %v490 = vld [vmem:[%s303 + $0x178] sm:$0xff]
      %v491 = vld [vmem:[%s303 + $0x180] sm:$0xff]
      %v492 = vld [vmem:[%s303 + $0x188] sm:$0xff]
      %v493 = vld [vmem:[%s303 + $0x190] sm:$0xff]
      %v494 = vld [vmem:[%s303 + $0x198] sm:$0xff]
      %v495 = vld [vmem:[%s303 + $0x1a0] sm:$0xff]
      %v496 = vld [vmem:[%s303 + $0x1a8] sm:$0xff]
      %v497 = vld [vmem:[%s303 + $0x1b0] sm:$0xff]
      %v498 = vld [vmem:[%s303 + $0x1b8] sm:$0xff]
      %v499 = vld [vmem:[%s303 + $0x1c0] sm:$0xff]
      %v500 = vld [vmem:[%s303 + $0x1c8] sm:$0xff]
      %v501 = vld [vmem:[%s303 + $0x1d0] sm:$0xff]
      %v502 = vld [vmem:[%s303 + $0x1d8] sm:$0xff]
      %v503 = vld [vmem:[%s303 + $0x1e0] sm:$0xff]
      %v504 = vld [vmem:[%s303 + $0x1e8] sm:$0xff]
      %v505 = vld [vmem:[%s303 + $0x1f0] sm:$0xff]
      %v506 = vld [vmem:[%s303 + $0x1f8] sm:$0xff]
      %v507 = vld [vmem:[%s303 + $0x200] sm:$0xff]
      %v508 = vld [vmem:[%s303 + $0x208] sm:$0xff]
      %v509 = vld [vmem:[%s303 + $0x210] sm:$0xff]
      %v510 = vld [vmem:[%s303 + $0x218] sm:$0xff]
      %v511 = vld [vmem:[%s303 + $0x220] sm:$0xff]
      %v512 = vld [vmem:[%s303 + $0x228] sm:$0xff]
      %v513 = vld [vmem:[%s303 + $0x230] sm:$0xff]
      %v514 = vld [vmem:[%s303 + $0x238] sm:$0xff]
      %v515 = vld [vmem:[%s303 + $0x240] sm:$0xff]
      %v516 = vld [vmem:[%s303 + $0x248] sm:$0xff]
      %v517 = vld [vmem:[%s303 + $0x250] sm:$0xff]
      %v518 = vld [vmem:[%s303 + $0x258] sm:$0xff]
      %v519 = vld [vmem:[%s303 + $0x260] sm:$0xff]
      %v520 = vld [vmem:[%s303 + $0x268] sm:$0xff]
      %v521 = vld [vmem:[%s303 + $0x270] sm:$0xff]
      %v522 = vld [vmem:[%s303 + $0x278] sm:$0xff]
      %v523 = vld [vmem:[%s303 + $0x280] sm:$0xff]
      %v524 = vld [vmem:[%s303 + $0x288] sm:$0xff]
      %v525 = vld [vmem:[%s303 + $0x290] sm:$0xff]
      %v526 = vld [vmem:[%s303 + $0x298] sm:$0xff]
      %v527 = vld [vmem:[%s303 + $0x2a0] sm:$0xff]
      %v528 = vld [vmem:[%s303 + $0x2a8] sm:$0xff]
      %v529 = vld [vmem:[%s303 + $0x2b0] sm:$0xff]
      %v530 = vld [vmem:[%s303 + $0x2b8] sm:$0xff]
      %v531 = vld [vmem:[%s303 + $0x2c0] sm:$0xff]
      %v532 = vld [vmem:[%s303 + $0x2c8] sm:$0xff]
      %v533 = vld [vmem:[%s303 + $0x2d0] sm:$0xff]
      %v534 = vld [vmem:[%s303 + $0x2d8] sm:$0xff]
      %v535 = vld [vmem:[%s303 + $0x2e0] sm:$0xff]
      %v536 = vld [vmem:[%s303 + $0x2e8] sm:$0xff]
      %v537 = vld [vmem:[%s303 + $0x2f0] sm:$0xff]
      %v538 = vld [vmem:[%s303 + $0x2f8] sm:$0xff]
      %v539 = vld [vmem:[%s303 + $0x300] sm:$0xff]
      %v540 = vld [vmem:[%s303 + $0x308] sm:$0xff]
      %v541 = vld [vmem:[%s303 + $0x310] sm:$0xff]
      %v542 = vld [vmem:[%s303 + $0x318] sm:$0xff]
      %v543 = vld [vmem:[%s303 + $0x320] sm:$0xff]
      %v544 = vld [vmem:[%s303 + $0x328] sm:$0xff]
      %v545 = vld [vmem:[%s303 + $0x330] sm:$0xff]
      %v546 = vld [vmem:[%s303 + $0x338] sm:$0xff]
      %v547 = vld [vmem:[%s303 + $0x340] sm:$0xff]
      %v548 = vld [vmem:[%s303 + $0x348] sm:$0xff]
      %v549 = vld [vmem:[%s303 + $0x350] sm:$0xff]
      %v550 = vld [vmem:[%s303 + $0x358] sm:$0xff]
      %v551 = vld [vmem:[%s303 + $0x360] sm:$0xff]
      %v552 = vld [vmem:[%s303 + $0x368] sm:$0xff]
      %v553 = vld [vmem:[%s303 + $0x370] sm:$0xff]
      %v554 = vld [vmem:[%s303 + $0x378] sm:$0xff]
      %v555 = vld [vmem:[%s303 + $0x380] sm:$0xff]
      %v556 = vld [vmem:[%s303 + $0x388] sm:$0xff]
      %v557 = vld [vmem:[%s303 + $0x390] sm:$0xff]
      %v558 = vld [vmem:[%s303 + $0x398] sm:$0xff]
      %v559 = vld [vmem:[%s303 + $0x3a0] sm:$0xff]
      %v560 = vld [vmem:[%s303 + $0x3a8] sm:$0xff]
      %v561 = vld [vmem:[%s303 + $0x3b0] sm:$0xff]
      %v562 = vld [vmem:[%s303 + $0x3b8] sm:$0xff]
      %v563 = vld [vmem:[%s303 + $0x3c0] sm:$0xff]
      %v564 = vld [vmem:[%s303 + $0x3c8] sm:$0xff]
      %v565 = vld [vmem:[%s303 + $0x3d0] sm:$0xff]
      %v566 = vld [vmem:[%s303 + $0x3d8] sm:$0xff]
      %v567 = vld [vmem:[%s303 + $0x3e0] sm:$0xff]
      %v568 = vld [vmem:[%s303 + $0x3e8] sm:$0xff]
      %v569 = vld [vmem:[%s303 + $0x3f0] sm:$0xff]
      %v570 = vld [vmem:[%s303 + $0x3f8] sm:$0xff]
      %v571 = vld [vmem:[%s2] sm:$0xff]
      %v572 = vld [vmem:[%s2 + $0x8] sm:$0xff]
      %v573 = vld [vmem:[%s3] sm:$0x1]
      %v575 = vlaneseq
      %v576 = vshrl.u32 %v575, 7
      %v577 = vsub.s32 0, %v576
      %v578 = vrot.slane %v573, %v577
      %vm580 = vcmask 130048
      %v582 = vsel %vm580, %v443, 0
      %v585 = vsel %vm580, %v444, 0
      %v588 = vsel %vm580, %v445, 0
      %v591 = vsel %vm580, %v446, 0
      %v594 = vsel %vm580, %v447, 0
      %v597 = vsel %vm580, %v448, 0
      %v600 = vsel %vm580, %v449, 0
      %v603 = vsel %vm580, %v450, 0
      %v606 = vsel %vm580, %v451, 0
      %v609 = vsel %vm580, %v452, 0
      %v612 = vsel %vm580, %v453, 0
      %v615 = vsel %vm580, %v454, 0
      %v618 = vsel %vm580, %v455, 0
      %v621 = vsel %vm580, %v456, 0
      %v624 = vsel %vm580, %v457, 0
      %v627 = vsel %vm580, %v458, 0
      %v630 = vsel %vm580, %v459, 0
      %v633 = vsel %vm580, %v460, 0
      %v636 = vsel %vm580, %v461, 0
      %v639 = vsel %vm580, %v462, 0
      %v642 = vsel %vm580, %v463, 0
      %v645 = vsel %vm580, %v464, 0
      %v648 = vsel %vm580, %v465, 0
      %v651 = vsel %vm580, %v466, 0
      %v654 = vsel %vm580, %v467, 0
      %v657 = vsel %vm580, %v468, 0
      %v660 = vsel %vm580, %v469, 0
      %v663 = vsel %vm580, %v470, 0
      %v666 = vsel %vm580, %v471, 0
      %v669 = vsel %vm580, %v472, 0
      %v672 = vsel %vm580, %v473, 0
      %v675 = vsel %vm580, %v474, 0
      %v678 = vsel %vm580, %v475, 0
      %v681 = vsel %vm580, %v476, 0
      %v684 = vsel %vm580, %v477, 0
      %v687 = vsel %vm580, %v478, 0
      %v690 = vsel %vm580, %v479, 0
      %v693 = vsel %vm580, %v480, 0
      %v696 = vsel %vm580, %v481, 0
      %v699 = vsel %vm580, %v482, 0
      %v702 = vsel %vm580, %v483, 0
      %v705 = vsel %vm580, %v484, 0
      %v708 = vsel %vm580, %v485, 0
      %v711 = vsel %vm580, %v486, 0
      %v714 = vsel %vm580, %v487, 0
      %v717 = vsel %vm580, %v488, 0
      %v720 = vsel %vm580, %v489, 0
      %v723 = vsel %vm580, %v490, 0
      %v726 = vsel %vm580, %v491, 0
      %v729 = vsel %vm580, %v492, 0
      %v732 = vsel %vm580, %v493, 0
      %v735 = vsel %vm580, %v494, 0
      %v738 = vsel %vm580, %v495, 0
      %v741 = vsel %vm580, %v496, 0
      %v744 = vsel %vm580, %v497, 0
      %v747 = vsel %vm580, %v498, 0
      %v750 = vsel %vm580, %v499, 0
      %v753 = vsel %vm580, %v500, 0
      %v756 = vsel %vm580, %v501, 0
      %v759 = vsel %vm580, %v502, 0
      %v762 = vsel %vm580, %v503, 0
      %v765 = vsel %vm580, %v504, 0
      %v768 = vsel %vm580, %v505, 0
      %v771 = vsel %vm580, %v506, 0
      %v774 = vsel %vm580, %v507, 0
      %v777 = vsel %vm580, %v508, 0
      %v780 = vsel %vm580, %v509, 0
      %v783 = vsel %vm580, %v510, 0
      %v786 = vsel %vm580, %v511, 0
      %v789 = vsel %vm580, %v512, 0
      %v792 = vsel %vm580, %v513, 0
      %v795 = vsel %vm580, %v514, 0
      %v798 = vsel %vm580, %v515, 0
      %v801 = vsel %vm580, %v516, 0
      %v804 = vsel %vm580, %v517, 0
      %v807 = vsel %vm580, %v518, 0
      %v810 = vsel %vm580, %v519, 0
      %v813 = vsel %vm580, %v520, 0
      %v816 = vsel %vm580, %v521, 0
      %v819 = vsel %vm580, %v522, 0
      %v822 = vsel %vm580, %v523, 0
      %v825 = vsel %vm580, %v524, 0
      %v828 = vsel %vm580, %v525, 0
      %v831 = vsel %vm580, %v526, 0
      %v834 = vsel %vm580, %v527, 0
      %v837 = vsel %vm580, %v528, 0
      %v840 = vsel %vm580, %v529, 0
      %v843 = vsel %vm580, %v530, 0
      %v846 = vsel %vm580, %v531, 0
      %v849 = vsel %vm580, %v532, 0
      %v852 = vsel %vm580, %v533, 0
      %v855 = vsel %vm580, %v534, 0
      %v858 = vsel %vm580, %v535, 0
      %v861 = vsel %vm580, %v536, 0
      %v864 = vsel %vm580, %v537, 0
      %v867 = vsel %vm580, %v538, 0
      %v870 = vsel %vm580, %v539, 0
      %v873 = vsel %vm580, %v540, 0
      %v876 = vsel %vm580, %v541, 0
      %v879 = vsel %vm580, %v542, 0
      %v882 = vsel %vm580, %v543, 0
      %v885 = vsel %vm580, %v544, 0
      %v888 = vsel %vm580, %v545, 0
      %v891 = vsel %vm580, %v546, 0
      %v894 = vsel %vm580, %v547, 0
      %v897 = vsel %vm580, %v548, 0
      %v900 = vsel %vm580, %v549, 0
      %v903 = vsel %vm580, %v550, 0
      %v906 = vsel %vm580, %v551, 0
      %v909 = vsel %vm580, %v552, 0
      %v912 = vsel %vm580, %v553, 0
      %v915 = vsel %vm580, %v554, 0
      %v918 = vsel %vm580, %v555, 0
      %v921 = vsel %vm580, %v556, 0
      %v924 = vsel %vm580, %v557, 0
      %v927 = vsel %vm580, %v558, 0
      %v930 = vsel %vm580, %v559, 0
      %v933 = vsel %vm580, %v560, 0
      %v936 = vsel %vm580, %v561, 0
      %v939 = vsel %vm580, %v562, 0
      %v942 = vsel %vm580, %v563, 0
      %v945 = vsel %vm580, %v564, 0
      %v948 = vsel %vm580, %v565, 0
      %v951 = vsel %vm580, %v566, 0
      %v954 = vsel %vm580, %v567, 0
      %v957 = vsel %vm580, %v568, 0
      %v960 = vsel %vm580, %v569, 0
      %v963 = vsel %vm580, %v570, 0
      %965 = vmatprep.subr.mxu0 0.0
      %966 = vmatpush1.msra.mxu0 %v571
      %967 = vmatprep.subr.mxu0 0.0
      %968 = vmatpush1.msra.mxu0 %v572
      %969 = vmatprep.subr.mxu0 0.0
      %970 = vmatpush1.msra.mxu0 0.0
      %971 = vmatprep.subr.mxu0 0.0
      %972 = vmatpush1.msra.mxu0 0.0
      %973 = vmatprep.subr.mxu0 0.0
      %974 = vmatpush1.msra.mxu0 0.0
      %975 = vmatprep.subr.mxu0 0.0
      %976 = vmatpush1.msra.mxu0 0.0
      %977 = vmatprep.subr.mxu0 0.0
      %978 = vmatpush1.msra.mxu0 0.0
      %979 = vmatprep.subr.mxu0 0.0
      %980 = vmatpush1.msra.mxu0 0.0
      %981 = vmatprep.subr.mxu0 0.0
      %982 = vmatpush1.msra.mxu0 0.0
      %983 = vmatprep.subr.mxu0 0.0
      %984 = vmatpush1.msra.mxu0 0.0
      %985 = vmatprep.subr.mxu0 0.0
      %986 = vmatpush1.msra.mxu0 0.0
      %987 = vmatprep.subr.mxu0 0.0
      %988 = vmatpush1.msra.mxu0 0.0
      %989 = vmatprep.subr.mxu0 0.0
      %990 = vmatpush1.msra.mxu0 0.0
      %991 = vmatprep.subr.mxu0 0.0
      %992 = vmatpush1.msra.mxu0 0.0
      %993 = vmatprep.subr.mxu0 0.0
      %994 = vmatpush1.msra.mxu0 0.0
      %995 = vmatprep.subr.mxu0 0.0
      %996 = vmatpush1.msra.mxu0 0.0
      %997 = vmatprep.subr.mxu0 0.0
      %998 = vmatpush1.msra.mxu0 0.0
      %999 = vmatprep.subr.mxu0 0.0
      %1000 = vmatpush1.msra.mxu0 0.0
      %1001 = vmatprep.subr.mxu0 0.0
      %1002 = vmatpush1.msra.mxu0 0.0
      %1003 = vmatprep.subr.mxu0 0.0
      %1004 = vmatpush1.msra.mxu0 0.0
      %1005 = vmatprep.subr.mxu0 0.0
      %1006 = vmatpush1.msra.mxu0 0.0
      %1007 = vmatprep.subr.mxu0 0.0
      %1008 = vmatpush1.msra.mxu0 0.0
      %1009 = vmatprep.subr.mxu0 0.0
      %1010 = vmatpush1.msra.mxu0 0.0
      %1011 = vmatprep.subr.mxu0 0.0
      %1012 = vmatpush1.msra.mxu0 0.0
      %1013 = vmatprep.subr.mxu0 0.0
      %1014 = vmatpush1.msra.mxu0 0.0
      %1015 = vmatprep.subr.mxu0 0.0
      %1016 = vmatpush1.msra.mxu0 0.0
      %1017 = vmatprep.subr.mxu0 0.0
      %1018 = vmatpush1.msra.mxu0 0.0
      %1019 = vmatprep.subr.mxu0 0.0
      %1020 = vmatpush1.msra.mxu0 0.0
      %1021 = vmatprep.subr.mxu0 0.0
      %1022 = vmatpush1.msra.mxu0 0.0
      %1023 = vmatprep.subr.mxu0 0.0
      %1024 = vmatpush1.msra.mxu0 0.0
      %1025 = vmatprep.subr.mxu0 0.0
      %1026 = vmatpush1.msra.mxu0 0.0
      %1027 = vmatprep.subr.mxu0 0.0
      %1028 = vmatpush1.msra.mxu0 0.0
      %1029 = vmatprep.mubr.f32.mxu0 0.0
      %1030 = vmatmul.mubr.f32.gmra.mrb[0].mxu0 %v582
      %v1031 = vpop.f32.mrb[0].mxu0
      %v1032 = vadd.f32 %v578, %v1031
      %v1033 = vpop.f32.mrb[0].mxu0
      %1034 = vmatprep.mubr.f32.mxu0 0.0
      %1035 = vmatmul.mubr.f32.gmra.mrb[0].mxu0 %v585
      %v1036 = vpop.f32.mrb[0].mxu0
      %v1037 = vadd.f32 %v578, %v1036
      %v1038 = vpop.f32.mrb[0].mxu0
      %1039 = vmatprep.mubr.f32.mxu0 0.0
      %1040 = vmatmul.mubr.f32.gmra.mrb[0].mxu0 %v588
      %v1041 = vpop.f32.mrb[0].mxu0
      %v1042 = vadd.f32 %v578, %v1041
      %v1043 = vpop.f32.mrb[0].mxu0
      %1044 = vmatprep.mubr.f32.mxu0 0.0
      %1045 = vmatmul.mubr.f32.gmra.mrb[0].mxu0 %v591
      %v1046 = vpop.f32.mrb[0].mxu0
      %v1047 = vadd.f32 %v578, %v1046
      %v1048 = vpop.f32.mrb[0].mxu0
      %1049 = vmatprep.mubr.f32.mxu0 0.0
      %1050 = vmatmul.mubr.f32.gmra.mrb[0].mxu0 %v594
      %v1051 = vpop.f32.mrb[0].mxu0
      %v1052 = vadd.f32 %v578, %v1051
      %v1053 = vpop.f32.mrb[0].mxu0
      %1054 = vmatprep.mubr.f32.mxu0 0.0
      %1055 = vmatmul.mubr.f32.gmra.mrb[0].mxu0 %v597
      %v1056 = vpop.f32.mrb[0].mxu0
      %v1057 = vadd.f32 %v578, %v1056
      %v1058 = vpop.f32.mrb[0].mxu0
      %1059 = vmatprep.mubr.f32.mxu0 0.0
      %1060 = vmatmul.mubr.f32.gmra.mrb[0].mxu0 %v600
      %v1061 = vpop.f32.mrb[0].mxu0
      %v1062 = vadd.f32 %v578, %v1061
      %v1063 = vpop.f32.mrb[0].mxu0
      %1064 = vmatprep.mubr.f32.mxu0 0.0
      %1065 = vmatmul.mubr.f32.gmra.mrb[0].mxu0 %v603
      %v1066 = vpop.f32.mrb[0].mxu0
      %v1067 = vadd.f32 %v578, %v1066
      %v1068 = vpop.f32.mrb[0].mxu0
      %1069 = vmatprep.mubr.f32.mxu0 0.0
      %1070 = vmatmul.mubr.f32.gmra.mrb[0].mxu0 %v606
      %v1071 = vpop.f32.mrb[0].mxu0
      %v1072 = vadd.f32 %v578, %v1071
      %v1073 = vpop.f32.mrb[0].mxu0
      %1074 = vmatprep.mubr.f32.mxu0 0.0
      %1075 = vmatmul.mubr.f32.gmra.mrb[0].mxu0 %v609
      %v1076 = vpop.f32.mrb[0].mxu0
      %v1077 = vadd.f32 %v578, %v1076
      %v1078 = vpop.f32.mrb[0].mxu0
      %1079 = vmatprep.mubr.f32.mxu0 0.0
      %1080 = vmatmul.mubr.f32.gmra.mrb[0].mxu0 %v612
      %v1081 = vpop.f32.mrb[0].mxu0
      %v1082 = vadd.f32 %v578, %v1081
      %v1083 = vpop.f32.mrb[0].mxu0
      %1084 = vmatprep.mubr.f32.mxu0 0.0
      %1085 = vmatmul.mubr.f32.gmra.mrb[0].mxu0 %v615
      %v1086 = vpop.f32.mrb[0].mxu0
      %v1087 = vadd.f32 %v578, %v1086
      %v1088 = vpop.f32.mrb[0].mxu0
      %1089 = vmatprep.mubr.f32.mxu0 0.0
      %1090 = vmatmul.mubr.f32.gmra.mrb[0].mxu0 %v618
      %v1091 = vpop.f32.mrb[0].mxu0
      %v1092 = vadd.f32 %v578, %v1091
      %v1093 = vpop.f32.mrb[0].mxu0
      %1094 = vmatprep.mubr.f32.mxu0 0.0
      %1095 = vmatmul.mubr.f32.gmra.mrb[0].mxu0 %v621
      %v1096 = vpop.f32.mrb[0].mxu0
      %v1097 = vadd.f32 %v578, %v1096
      %v1098 = vpop.f32.mrb[0].mxu0
      %1099 = vmatprep.mubr.f32.mxu0 0.0
      %1100 = vmatmul.mubr.f32.gmra.mrb[0].mxu0 %v624
      %v1101 = vpop.f32.mrb[0].mxu0
      %v1102 = vadd.f32 %v578, %v1101
      %v1103 = vpop.f32.mrb[0].mxu0
      %1104 = vmatprep.mubr.f32.mxu0 0.0
      %1105 = vmatmul.mubr.f32.gmra.mrb[0].mxu0 %v627
      %v1106 = vpop.f32.mrb[0].mxu0
      %v1107 = vadd.f32 %v578, %v1106
      %v1108 = vpop.f32.mrb[0].mxu0
      %1109 = vmatprep.mubr.f32.mxu0 0.0
      %1110 = vmatmul.mubr.f32.gmra.mrb[0].mxu0 %v630
      %v1111 = vpop.f32.mrb[0].mxu0
      %v1112 = vadd.f32 %v578, %v1111
      %v1113 = vpop.f32.mrb[0].mxu0
      %1114 = vmatprep.mubr.f32.mxu0 0.0
      %1115 = vmatmul.mubr.f32.gmra.mrb[0].mxu0 %v633
      %v1116 = vpop.f32.mrb[0].mxu0
      %v1117 = vadd.f32 %v578, %v1116
      %v1118 = vpop.f32.mrb[0].mxu0
      %1119 = vmatprep.mubr.f32.mxu0 0.0
      %1120 = vmatmul.mubr.f32.gmra.mrb[0].mxu0 %v636
      %v1121 = vpop.f32.mrb[0].mxu0
      %v1122 = vadd.f32 %v578, %v1121
      %v1123 = vpop.f32.mrb[0].mxu0
      %1124 = vmatprep.mubr.f32.mxu0 0.0
      %1125 = vmatmul.mubr.f32.gmra.mrb[0].mxu0 %v639
      %v1126 = vpop.f32.mrb[0].mxu0
      %v1127 = vadd.f32 %v578, %v1126
      %v1128 = vpop.f32.mrb[0].mxu0
      %1129 = vmatprep.mubr.f32.mxu0 0.0
      %1130 = vmatmul.mubr.f32.gmra.mrb[0].mxu0 %v642
      %v1131 = vpop.f32.mrb[0].mxu0
      %v1132 = vadd.f32 %v578, %v1131
      %v1133 = vpop.f32.mrb[0].mxu0
      %1134 = vmatprep.mubr.f32.mxu0 0.0
      %1135 = vmatmul.mubr.f32.gmra.mrb[0].mxu0 %v645
      %v1136 = vpop.f32.mrb[0].mxu0
      %v1137 = vadd.f32 %v578, %v1136
      %v1138 = vpop.f32.mrb[0].mxu0
      %1139 = vmatprep.mubr.f32.mxu0 0.0
      %1140 = vmatmul.mubr.f32.gmra.mrb[0].mxu0 %v648
      %v1141 = vpop.f32.mrb[0].mxu0
      %v1142 = vadd.f32 %v578, %v1141
      %v1143 = vpop.f32.mrb[0].mxu0
      %1144 = vmatprep.mubr.f32.mxu0 0.0
      %1145 = vmatmul.mubr.f32.gmra.mrb[0].mxu0 %v651
      %v1146 = vpop.f32.mrb[0].mxu0
      %v1147 = vadd.f32 %v578, %v1146
      %v1148 = vpop.f32.mrb[0].mxu0
      %1149 = vmatprep.mubr.f32.mxu0 0.0
      %1150 = vmatmul.mubr.f32.gmra.mrb[0].mxu0 %v654
      %v1151 = vpop.f32.mrb[0].mxu0
      %v1152 = vadd.f32 %v578, %v1151
      %v1153 = vpop.f32.mrb[0].mxu0
      %1154 = vmatprep.mubr.f32.mxu0 0.0
      %1155 = vmatmul.mubr.f32.gmra.mrb[0].mxu0 %v657
      %v1156 = vpop.f32.mrb[0].mxu0
      %v1157 = vadd.f32 %v578, %v1156
      %v1158 = vpop.f32.mrb[0].mxu0
      %1159 = vmatprep.mubr.f32.mxu0 0.0
      %1160 = vmatmul.mubr.f32.gmra.mrb[0].mxu0 %v660
      %v1161 = vpop.f32.mrb[0].mxu0
      %v1162 = vadd.f32 %v578, %v1161
      %v1163 = vpop.f32.mrb[0].mxu0
      %1164 = vmatprep.mubr.f32.mxu0 0.0
      %1165 = vmatmul.mubr.f32.gmra.mrb[0].mxu0 %v663
      %v1166 = vpop.f32.mrb[0].mxu0
      %v1167 = vadd.f32 %v578, %v1166
      %v1168 = vpop.f32.mrb[0].mxu0
      %1169 = vmatprep.mubr.f32.mxu0 0.0
      %1170 = vmatmul.mubr.f32.gmra.mrb[0].mxu0 %v666
      %v1171 = vpop.f32.mrb[0].mxu0
      %v1172 = vadd.f32 %v578, %v1171
      %v1173 = vpop.f32.mrb[0].mxu0
      %1174 = vmatprep.mubr.f32.mxu0 0.0
      %1175 = vmatmul.mubr.f32.gmra.mrb[0].mxu0 %v669
      %v1176 = vpop.f32.mrb[0].mxu0
      %v1177 = vadd.f32 %v578, %v1176
      %v1178 = vpop.f32.mrb[0].mxu0
      %1179 = vmatprep.mubr.f32.mxu0 0.0
      %1180 = vmatmul.mubr.f32.gmra.mrb[0].mxu0 %v672
      %v1181 = vpop.f32.mrb[0].mxu0
      %v1182 = vadd.f32 %v578, %v1181
      %v1183 = vpop.f32.mrb[0].mxu0
      %1184 = vmatprep.mubr.f32.mxu0 0.0
      %1185 = vmatmul.mubr.f32.gmra.mrb[0].mxu0 %v675
      %v1186 = vpop.f32.mrb[0].mxu0
      %v1187 = vadd.f32 %v578, %v1186
      %v1188 = vpop.f32.mrb[0].mxu0
      %1189 = vmatprep.mubr.f32.mxu0 0.0
      %1190 = vmatmul.mubr.f32.gmra.mrb[0].mxu0 %v678
      %v1191 = vpop.f32.mrb[0].mxu0
      %v1192 = vadd.f32 %v578, %v1191
      %v1193 = vpop.f32.mrb[0].mxu0
      %1194 = vmatprep.mubr.f32.mxu0 0.0
      %1195 = vmatmul.mubr.f32.gmra.mrb[0].mxu0 %v681
      %v1196 = vpop.f32.mrb[0].mxu0
      %v1197 = vadd.f32 %v578, %v1196
      %v1198 = vpop.f32.mrb[0].mxu0
      %1199 = vmatprep.mubr.f32.mxu0 0.0
      %1200 = vmatmul.mubr.f32.gmra.mrb[0].mxu0 %v684
      %v1201 = vpop.f32.mrb[0].mxu0
      %v1202 = vadd.f32 %v578, %v1201
      %v1203 = vpop.f32.mrb[0].mxu0
      %1204 = vmatprep.mubr.f32.mxu0 0.0
      %1205 = vmatmul.mubr.f32.gmra.mrb[0].mxu0 %v687
      %v1206 = vpop.f32.mrb[0].mxu0
      %v1207 = vadd.f32 %v578, %v1206
      %v1208 = vpop.f32.mrb[0].mxu0
      %1209 = vmatprep.mubr.f32.mxu0 0.0
      %1210 = vmatmul.mubr.f32.gmra.mrb[0].mxu0 %v690
      %v1211 = vpop.f32.mrb[0].mxu0
      %v1212 = vadd.f32 %v578, %v1211
      %v1213 = vpop.f32.mrb[0].mxu0
      %1214 = vmatprep.mubr.f32.mxu0 0.0
      %1215 = vmatmul.mubr.f32.gmra.mrb[0].mxu0 %v693
      %v1216 = vpop.f32.mrb[0].mxu0
      %v1217 = vadd.f32 %v578, %v1216
      %v1218 = vpop.f32.mrb[0].mxu0
      %1219 = vmatprep.mubr.f32.mxu0 0.0
      %1220 = vmatmul.mubr.f32.gmra.mrb[0].mxu0 %v696
      %v1221 = vpop.f32.mrb[0].mxu0
      %v1222 = vadd.f32 %v578, %v1221
      %v1223 = vpop.f32.mrb[0].mxu0
      %1224 = vmatprep.mubr.f32.mxu0 0.0
      %1225 = vmatmul.mubr.f32.gmra.mrb[0].mxu0 %v699
      %v1226 = vpop.f32.mrb[0].mxu0
      %v1227 = vadd.f32 %v578, %v1226
      %v1228 = vpop.f32.mrb[0].mxu0
      %1229 = vmatprep.mubr.f32.mxu0 0.0
      %1230 = vmatmul.mubr.f32.gmra.mrb[0].mxu0 %v702
      %v1231 = vpop.f32.mrb[0].mxu0
      %v1232 = vadd.f32 %v578, %v1231
      %v1233 = vpop.f32.mrb[0].mxu0
      %1234 = vmatprep.mubr.f32.mxu0 0.0
      %1235 = vmatmul.mubr.f32.gmra.mrb[0].mxu0 %v705
      %v1236 = vpop.f32.mrb[0].mxu0
      %v1237 = vadd.f32 %v578, %v1236
      %v1238 = vpop.f32.mrb[0].mxu0
      %1239 = vmatprep.mubr.f32.mxu0 0.0
      %1240 = vmatmul.mubr.f32.gmra.mrb[0].mxu0 %v708
      %v1241 = vpop.f32.mrb[0].mxu0
      %v1242 = vadd.f32 %v578, %v1241
      %v1243 = vpop.f32.mrb[0].mxu0
      %1244 = vmatprep.mubr.f32.mxu0 0.0
      %1245 = vmatmul.mubr.f32.gmra.mrb[0].mxu0 %v711
      %v1246 = vpop.f32.mrb[0].mxu0
      %v1247 = vadd.f32 %v578, %v1246
      %v1248 = vpop.f32.mrb[0].mxu0
      %1249 = vmatprep.mubr.f32.mxu0 0.0
      %1250 = vmatmul.mubr.f32.gmra.mrb[0].mxu0 %v714
      %v1251 = vpop.f32.mrb[0].mxu0
      %v1252 = vadd.f32 %v578, %v1251
      %v1253 = vpop.f32.mrb[0].mxu0
      %1254 = vmatprep.mubr.f32.mxu0 0.0
      %1255 = vmatmul.mubr.f32.gmra.mrb[0].mxu0 %v717
      %v1256 = vpop.f32.mrb[0].mxu0
      %v1257 = vadd.f32 %v578, %v1256
      %v1258 = vpop.f32.mrb[0].mxu0
      %1259 = vmatprep.mubr.f32.mxu0 0.0
      %1260 = vmatmul.mubr.f32.gmra.mrb[0].mxu0 %v720
      %v1261 = vpop.f32.mrb[0].mxu0
      %v1262 = vadd.f32 %v578, %v1261
      %v1263 = vpop.f32.mrb[0].mxu0
      %1264 = vmatprep.mubr.f32.mxu0 0.0
      %1265 = vmatmul.mubr.f32.gmra.mrb[0].mxu0 %v723
      %v1266 = vpop.f32.mrb[0].mxu0
      %v1267 = vadd.f32 %v578, %v1266
      %v1268 = vpop.f32.mrb[0].mxu0
      %1269 = vmatprep.mubr.f32.mxu0 0.0
      %1270 = vmatmul.mubr.f32.gmra.mrb[0].mxu0 %v726
      %v1271 = vpop.f32.mrb[0].mxu0
      %v1272 = vadd.f32 %v578, %v1271
      %v1273 = vpop.f32.mrb[0].mxu0
      %1274 = vmatprep.mubr.f32.mxu0 0.0
      %1275 = vmatmul.mubr.f32.gmra.mrb[0].mxu0 %v729
      %v1276 = vpop.f32.mrb[0].mxu0
      %v1277 = vadd.f32 %v578, %v1276
      %v1278 = vpop.f32.mrb[0].mxu0
      %1279 = vmatprep.mubr.f32.mxu0 0.0
      %1280 = vmatmul.mubr.f32.gmra.mrb[0].mxu0 %v732
      %v1281 = vpop.f32.mrb[0].mxu0
      %v1282 = vadd.f32 %v578, %v1281
      %v1283 = vpop.f32.mrb[0].mxu0
      %1284 = vmatprep.mubr.f32.mxu0 0.0
      %1285 = vmatmul.mubr.f32.gmra.mrb[0].mxu0 %v735
      %v1286 = vpop.f32.mrb[0].mxu0
      %v1287 = vadd.f32 %v578, %v1286
      %v1288 = vpop.f32.mrb[0].mxu0
      %1289 = vmatprep.mubr.f32.mxu0 0.0
      %1290 = vmatmul.mubr.f32.gmra.mrb[0].mxu0 %v738
      %v1291 = vpop.f32.mrb[0].mxu0
      %v1292 = vadd.f32 %v578, %v1291
      %v1293 = vpop.f32.mrb[0].mxu0
      %1294 = vmatprep.mubr.f32.mxu0 0.0
      %1295 = vmatmul.mubr.f32.gmra.mrb[0].mxu0 %v741
      %v1296 = vpop.f32.mrb[0].mxu0
      %v1297 = vadd.f32 %v578, %v1296
      %v1298 = vpop.f32.mrb[0].mxu0
      %1299 = vmatprep.mubr.f32.mxu0 0.0
      %1300 = vmatmul.mubr.f32.gmra.mrb[0].mxu0 %v744
      %v1301 = vpop.f32.mrb[0].mxu0
      %v1302 = vadd.f32 %v578, %v1301
      %v1303 = vpop.f32.mrb[0].mxu0
      %1304 = vmatprep.mubr.f32.mxu0 0.0
      %1305 = vmatmul.mubr.f32.gmra.mrb[0].mxu0 %v747
      %v1306 = vpop.f32.mrb[0].mxu0
      %v1307 = vadd.f32 %v578, %v1306
      %v1308 = vpop.f32.mrb[0].mxu0
      %1309 = vmatprep.mubr.f32.mxu0 0.0
      %1310 = vmatmul.mubr.f32.gmra.mrb[0].mxu0 %v750
      %v1311 = vpop.f32.mrb[0].mxu0
      %v1312 = vadd.f32 %v578, %v1311
      %v1313 = vpop.f32.mrb[0].mxu0
      %1314 = vmatprep.mubr.f32.mxu0 0.0
      %1315 = vmatmul.mubr.f32.gmra.mrb[0].mxu0 %v753
      %v1316 = vpop.f32.mrb[0].mxu0
      %v1317 = vadd.f32 %v578, %v1316
      %v1318 = vpop.f32.mrb[0].mxu0
      %1319 = vmatprep.mubr.f32.mxu0 0.0
      %1320 = vmatmul.mubr.f32.gmra.mrb[0].mxu0 %v756
      %v1321 = vpop.f32.mrb[0].mxu0
      %v1322 = vadd.f32 %v578, %v1321
      %v1323 = vpop.f32.mrb[0].mxu0
      %1324 = vmatprep.mubr.f32.mxu0 0.0
      %1325 = vmatmul.mubr.f32.gmra.mrb[0].mxu0 %v759
      %v1326 = vpop.f32.mrb[0].mxu0
      %v1327 = vadd.f32 %v578, %v1326
      %v1328 = vpop.f32.mrb[0].mxu0
      %1329 = vmatprep.mubr.f32.mxu0 0.0
      %1330 = vmatmul.mubr.f32.gmra.mrb[0].mxu0 %v762
      %v1331 = vpop.f32.mrb[0].mxu0
      %v1332 = vadd.f32 %v578, %v1331
      %v1333 = vpop.f32.mrb[0].mxu0
      %1334 = vmatprep.mubr.f32.mxu0 0.0
      %1335 = vmatmul.mubr.f32.gmra.mrb[0].mxu0 %v765
      %v1336 = vpop.f32.mrb[0].mxu0
      %v1337 = vadd.f32 %v578, %v1336
      %v1338 = vpop.f32.mrb[0].mxu0
      %1339 = vmatprep.mubr.f32.mxu0 0.0
      %1340 = vmatmul.mubr.f32.gmra.mrb[0].mxu0 %v768
      %v1341 = vpop.f32.mrb[0].mxu0
      %v1342 = vadd.f32 %v578, %v1341
      %v1343 = vpop.f32.mrb[0].mxu0
      %1344 = vmatprep.mubr.f32.mxu0 0.0
      %1345 = vmatmul.mubr.f32.gmra.mrb[0].mxu0 %v771
      %v1346 = vpop.f32.mrb[0].mxu0
      %v1347 = vadd.f32 %v578, %v1346
      %v1348 = vpop.f32.mrb[0].mxu0
      %1349 = vmatprep.mubr.f32.mxu0 0.0
      %1350 = vmatmul.mubr.f32.gmra.mrb[0].mxu0 %v774
      %v1351 = vpop.f32.mrb[0].mxu0
      %v1352 = vadd.f32 %v578, %v1351
      %v1353 = vpop.f32.mrb[0].mxu0
      %1354 = vmatprep.mubr.f32.mxu0 0.0
      %1355 = vmatmul.mubr.f32.gmra.mrb[0].mxu0 %v777
      %v1356 = vpop.f32.mrb[0].mxu0
      %v1357 = vadd.f32 %v578, %v1356
      %v1358 = vpop.f32.mrb[0].mxu0
      %1359 = vmatprep.mubr.f32.mxu0 0.0
      %1360 = vmatmul.mubr.f32.gmra.mrb[0].mxu0 %v780
      %v1361 = vpop.f32.mrb[0].mxu0
      %v1362 = vadd.f32 %v578, %v1361
      %v1363 = vpop.f32.mrb[0].mxu0
      %1364 = vmatprep.mubr.f32.mxu0 0.0
      %1365 = vmatmul.mubr.f32.gmra.mrb[0].mxu0 %v783
      %v1366 = vpop.f32.mrb[0].mxu0
      %v1367 = vadd.f32 %v578, %v1366
      %v1368 = vpop.f32.mrb[0].mxu0
      %1369 = vmatprep.mubr.f32.mxu0 0.0
      %1370 = vmatmul.mubr.f32.gmra.mrb[0].mxu0 %v786
      %v1371 = vpop.f32.mrb[0].mxu0
      %v1372 = vadd.f32 %v578, %v1371
      %v1373 = vpop.f32.mrb[0].mxu0
      %1374 = vmatprep.mubr.f32.mxu0 0.0
      %1375 = vmatmul.mubr.f32.gmra.mrb[0].mxu0 %v789
      %v1376 = vpop.f32.mrb[0].mxu0
      %v1377 = vadd.f32 %v578, %v1376
      %v1378 = vpop.f32.mrb[0].mxu0
      %1379 = vmatprep.mubr.f32.mxu0 0.0
      %1380 = vmatmul.mubr.f32.gmra.mrb[0].mxu0 %v792
      %v1381 = vpop.f32.mrb[0].mxu0
      %v1382 = vadd.f32 %v578, %v1381
      %v1383 = vpop.f32.mrb[0].mxu0
      %1384 = vmatprep.mubr.f32.mxu0 0.0
      %1385 = vmatmul.mubr.f32.gmra.mrb[0].mxu0 %v795
      %v1386 = vpop.f32.mrb[0].mxu0
      %v1387 = vadd.f32 %v578, %v1386
      %v1388 = vpop.f32.mrb[0].mxu0
      %1389 = vmatprep.mubr.f32.mxu0 0.0
      %1390 = vmatmul.mubr.f32.gmra.mrb[0].mxu0 %v798
      %v1391 = vpop.f32.mrb[0].mxu0
      %v1392 = vadd.f32 %v578, %v1391
      %v1393 = vpop.f32.mrb[0].mxu0
      %1394 = vmatprep.mubr.f32.mxu0 0.0
      %1395 = vmatmul.mubr.f32.gmra.mrb[0].mxu0 %v801
      %v1396 = vpop.f32.mrb[0].mxu0
      %v1397 = vadd.f32 %v578, %v1396
      %v1398 = vpop.f32.mrb[0].mxu0
      %1399 = vmatprep.mubr.f32.mxu0 0.0
      %1400 = vmatmul.mubr.f32.gmra.mrb[0].mxu0 %v804
      %v1401 = vpop.f32.mrb[0].mxu0
      %v1402 = vadd.f32 %v578, %v1401
      %v1403 = vpop.f32.mrb[0].mxu0
      %1404 = vmatprep.mubr.f32.mxu0 0.0
      %1405 = vmatmul.mubr.f32.gmra.mrb[0].mxu0 %v807
      %v1406 = vpop.f32.mrb[0].mxu0
      %v1407 = vadd.f32 %v578, %v1406
      %v1408 = vpop.f32.mrb[0].mxu0
      %1409 = vmatprep.mubr.f32.mxu0 0.0
      %1410 = vmatmul.mubr.f32.gmra.mrb[0].mxu0 %v810
      %v1411 = vpop.f32.mrb[0].mxu0
      %v1412 = vadd.f32 %v578, %v1411
      %v1413 = vpop.f32.mrb[0].mxu0
      %1414 = vmatprep.mubr.f32.mxu0 0.0
      %1415 = vmatmul.mubr.f32.gmra.mrb[0].mxu0 %v813
      %v1416 = vpop.f32.mrb[0].mxu0
      %v1417 = vadd.f32 %v578, %v1416
      %v1418 = vpop.f32.mrb[0].mxu0
      %1419 = vmatprep.mubr.f32.mxu0 0.0
      %1420 = vmatmul.mubr.f32.gmra.mrb[0].mxu0 %v816
      %v1421 = vpop.f32.mrb[0].mxu0
      %v1422 = vadd.f32 %v578, %v1421
      %v1423 = vpop.f32.mrb[0].mxu0
      %1424 = vmatprep.mubr.f32.mxu0 0.0
      %1425 = vmatmul.mubr.f32.gmra.mrb[0].mxu0 %v819
      %v1426 = vpop.f32.mrb[0].mxu0
      %v1427 = vadd.f32 %v578, %v1426
      %v1428 = vpop.f32.mrb[0].mxu0
      %1429 = vmatprep.mubr.f32.mxu0 0.0
      %1430 = vmatmul.mubr.f32.gmra.mrb[0].mxu0 %v822
      %v1431 = vpop.f32.mrb[0].mxu0
      %v1432 = vadd.f32 %v578, %v1431
      %v1433 = vpop.f32.mrb[0].mxu0
      %1434 = vmatprep.mubr.f32.mxu0 0.0
      %1435 = vmatmul.mubr.f32.gmra.mrb[0].mxu0 %v825
      %v1436 = vpop.f32.mrb[0].mxu0
      %v1437 = vadd.f32 %v578, %v1436
      %v1438 = vpop.f32.mrb[0].mxu0
      %1439 = vmatprep.mubr.f32.mxu0 0.0
      %1440 = vmatmul.mubr.f32.gmra.mrb[0].mxu0 %v828
      %v1441 = vpop.f32.mrb[0].mxu0
      %v1442 = vadd.f32 %v578, %v1441
      %v1443 = vpop.f32.mrb[0].mxu0
      %1444 = vmatprep.mubr.f32.mxu0 0.0
      %1445 = vmatmul.mubr.f32.gmra.mrb[0].mxu0 %v831
      %v1446 = vpop.f32.mrb[0].mxu0
      %v1447 = vadd.f32 %v578, %v1446
      %v1448 = vpop.f32.mrb[0].mxu0
      %1449 = vmatprep.mubr.f32.mxu0 0.0
      %1450 = vmatmul.mubr.f32.gmra.mrb[0].mxu0 %v834
      %v1451 = vpop.f32.mrb[0].mxu0
      %v1452 = vadd.f32 %v578, %v1451
      %v1453 = vpop.f32.mrb[0].mxu0
      %1454 = vmatprep.mubr.f32.mxu0 0.0
      %1455 = vmatmul.mubr.f32.gmra.mrb[0].mxu0 %v837
      %v1456 = vpop.f32.mrb[0].mxu0
      %v1457 = vadd.f32 %v578, %v1456
      %v1458 = vpop.f32.mrb[0].mxu0
      %1459 = vmatprep.mubr.f32.mxu0 0.0
      %1460 = vmatmul.mubr.f32.gmra.mrb[0].mxu0 %v840
      %v1461 = vpop.f32.mrb[0].mxu0
      %v1462 = vadd.f32 %v578, %v1461
      %v1463 = vpop.f32.mrb[0].mxu0
      %1464 = vmatprep.mubr.f32.mxu0 0.0
      %1465 = vmatmul.mubr.f32.gmra.mrb[0].mxu0 %v843
      %v1466 = vpop.f32.mrb[0].mxu0
      %v1467 = vadd.f32 %v578, %v1466
      %v1468 = vpop.f32.mrb[0].mxu0
      %1469 = vmatprep.mubr.f32.mxu0 0.0
      %1470 = vmatmul.mubr.f32.gmra.mrb[0].mxu0 %v846
      %v1471 = vpop.f32.mrb[0].mxu0
      %v1472 = vadd.f32 %v578, %v1471
      %v1473 = vpop.f32.mrb[0].mxu0
      %1474 = vmatprep.mubr.f32.mxu0 0.0
      %1475 = vmatmul.mubr.f32.gmra.mrb[0].mxu0 %v849
      %v1476 = vpop.f32.mrb[0].mxu0
      %v1477 = vadd.f32 %v578, %v1476
      %v1478 = vpop.f32.mrb[0].mxu0
      %1479 = vmatprep.mubr.f32.mxu0 0.0
      %1480 = vmatmul.mubr.f32.gmra.mrb[0].mxu0 %v852
      %v1481 = vpop.f32.mrb[0].mxu0
      %v1482 = vadd.f32 %v578, %v1481
      %v1483 = vpop.f32.mrb[0].mxu0
      %1484 = vmatprep.mubr.f32.mxu0 0.0
      %1485 = vmatmul.mubr.f32.gmra.mrb[0].mxu0 %v855
      %v1486 = vpop.f32.mrb[0].mxu0
      %v1487 = vadd.f32 %v578, %v1486
      %v1488 = vpop.f32.mrb[0].mxu0
      %1489 = vmatprep.mubr.f32.mxu0 0.0
      %1490 = vmatmul.mubr.f32.gmra.mrb[0].mxu0 %v858
      %v1491 = vpop.f32.mrb[0].mxu0
      %v1492 = vadd.f32 %v578, %v1491
      %v1493 = vpop.f32.mrb[0].mxu0
      %1494 = vmatprep.mubr.f32.mxu0 0.0
      %1495 = vmatmul.mubr.f32.gmra.mrb[0].mxu0 %v861
      %v1496 = vpop.f32.mrb[0].mxu0
      %v1497 = vadd.f32 %v578, %v1496
      %v1498 = vpop.f32.mrb[0].mxu0
      %1499 = vmatprep.mubr.f32.mxu0 0.0
      %1500 = vmatmul.mubr.f32.gmra.mrb[0].mxu0 %v864
      %v1501 = vpop.f32.mrb[0].mxu0
      %v1502 = vadd.f32 %v578, %v1501
      %v1503 = vpop.f32.mrb[0].mxu0
      %1504 = vmatprep.mubr.f32.mxu0 0.0
      %1505 = vmatmul.mubr.f32.gmra.mrb[0].mxu0 %v867
      %v1506 = vpop.f32.mrb[0].mxu0
      %v1507 = vadd.f32 %v578, %v1506
      %v1508 = vpop.f32.mrb[0].mxu0
      %1509 = vmatprep.mubr.f32.mxu0 0.0
      %1510 = vmatmul.mubr.f32.gmra.mrb[0].mxu0 %v870
      %v1511 = vpop.f32.mrb[0].mxu0
      %v1512 = vadd.f32 %v578, %v1511
      %v1513 = vpop.f32.mrb[0].mxu0
      %1514 = vmatprep.mubr.f32.mxu0 0.0
      %1515 = vmatmul.mubr.f32.gmra.mrb[0].mxu0 %v873
      %v1516 = vpop.f32.mrb[0].mxu0
      %v1517 = vadd.f32 %v578, %v1516
      %v1518 = vpop.f32.mrb[0].mxu0
      %1519 = vmatprep.mubr.f32.mxu0 0.0
      %1520 = vmatmul.mubr.f32.gmra.mrb[0].mxu0 %v876
      %v1521 = vpop.f32.mrb[0].mxu0
      %v1522 = vadd.f32 %v578, %v1521
      %v1523 = vpop.f32.mrb[0].mxu0
      %1524 = vmatprep.mubr.f32.mxu0 0.0
      %1525 = vmatmul.mubr.f32.gmra.mrb[0].mxu0 %v879
      %v1526 = vpop.f32.mrb[0].mxu0
      %v1527 = vadd.f32 %v578, %v1526
      %v1528 = vpop.f32.mrb[0].mxu0
      %1529 = vmatprep.mubr.f32.mxu0 0.0
      %1530 = vmatmul.mubr.f32.gmra.mrb[0].mxu0 %v882
      %v1531 = vpop.f32.mrb[0].mxu0
      %v1532 = vadd.f32 %v578, %v1531
      %v1533 = vpop.f32.mrb[0].mxu0
      %1534 = vmatprep.mubr.f32.mxu0 0.0
      %1535 = vmatmul.mubr.f32.gmra.mrb[0].mxu0 %v885
      %v1536 = vpop.f32.mrb[0].mxu0
      %v1537 = vadd.f32 %v578, %v1536
      %v1538 = vpop.f32.mrb[0].mxu0
      %1539 = vmatprep.mubr.f32.mxu0 0.0
      %1540 = vmatmul.mubr.f32.gmra.mrb[0].mxu0 %v888
      %v1541 = vpop.f32.mrb[0].mxu0
      %v1542 = vadd.f32 %v578, %v1541
      %v1543 = vpop.f32.mrb[0].mxu0
      %1544 = vmatprep.mubr.f32.mxu0 0.0
      %1545 = vmatmul.mubr.f32.gmra.mrb[0].mxu0 %v891
      %v1546 = vpop.f32.mrb[0].mxu0
      %v1547 = vadd.f32 %v578, %v1546
      %v1548 = vpop.f32.mrb[0].mxu0
      %1549 = vmatprep.mubr.f32.mxu0 0.0
      %1550 = vmatmul.mubr.f32.gmra.mrb[0].mxu0 %v894
      %v1551 = vpop.f32.mrb[0].mxu0
      %v1552 = vadd.f32 %v578, %v1551
      %v1553 = vpop.f32.mrb[0].mxu0
      %1554 = vmatprep.mubr.f32.mxu0 0.0
      %1555 = vmatmul.mubr.f32.gmra.mrb[0].mxu0 %v897
      %v1556 = vpop.f32.mrb[0].mxu0
      %v1557 = vadd.f32 %v578, %v1556
      %v1558 = vpop.f32.mrb[0].mxu0
      %1559 = vmatprep.mubr.f32.mxu0 0.0
      %1560 = vmatmul.mubr.f32.gmra.mrb[0].mxu0 %v900
      %v1561 = vpop.f32.mrb[0].mxu0
      %v1562 = vadd.f32 %v578, %v1561
      %v1563 = vpop.f32.mrb[0].mxu0
      %1564 = vmatprep.mubr.f32.mxu0 0.0
      %1565 = vmatmul.mubr.f32.gmra.mrb[0].mxu0 %v903
      %v1566 = vpop.f32.mrb[0].mxu0
      %v1567 = vadd.f32 %v578, %v1566
      %v1568 = vpop.f32.mrb[0].mxu0
      %1569 = vmatprep.mubr.f32.mxu0 0.0
      %1570 = vmatmul.mubr.f32.gmra.mrb[0].mxu0 %v906
      %v1571 = vpop.f32.mrb[0].mxu0
      %v1572 = vadd.f32 %v578, %v1571
      %v1573 = vpop.f32.mrb[0].mxu0
      %1574 = vmatprep.mubr.f32.mxu0 0.0
      %1575 = vmatmul.mubr.f32.gmra.mrb[0].mxu0 %v909
      %v1576 = vpop.f32.mrb[0].mxu0
      %v1577 = vadd.f32 %v578, %v1576
      %v1578 = vpop.f32.mrb[0].mxu0
      %1579 = vmatprep.mubr.f32.mxu0 0.0
      %1580 = vmatmul.mubr.f32.gmra.mrb[0].mxu0 %v912
      %v1581 = vpop.f32.mrb[0].mxu0
      %v1582 = vadd.f32 %v578, %v1581
      %v1583 = vpop.f32.mrb[0].mxu0
      %1584 = vmatprep.mubr.f32.mxu0 0.0
      %1585 = vmatmul.mubr.f32.gmra.mrb[0].mxu0 %v915
      %v1586 = vpop.f32.mrb[0].mxu0
      %v1587 = vadd.f32 %v578, %v1586
      %v1588 = vpop.f32.mrb[0].mxu0
      %1589 = vmatprep.mubr.f32.mxu0 0.0
      %1590 = vmatmul.mubr.f32.gmra.mrb[0].mxu0 %v918
      %v1591 = vpop.f32.mrb[0].mxu0
      %v1592 = vadd.f32 %v578, %v1591
      %v1593 = vpop.f32.mrb[0].mxu0
      %1594 = vmatprep.mubr.f32.mxu0 0.0
      %1595 = vmatmul.mubr.f32.gmra.mrb[0].mxu0 %v921
      %v1596 = vpop.f32.mrb[0].mxu0
      %v1597 = vadd.f32 %v578, %v1596
      %v1598 = vpop.f32.mrb[0].mxu0
      %1599 = vmatprep.mubr.f32.mxu0 0.0
      %1600 = vmatmul.mubr.f32.gmra.mrb[0].mxu0 %v924
      %v1601 = vpop.f32.mrb[0].mxu0
      %v1602 = vadd.f32 %v578, %v1601
      %v1603 = vpop.f32.mrb[0].mxu0
      %1604 = vmatprep.mubr.f32.mxu0 0.0
      %1605 = vmatmul.mubr.f32.gmra.mrb[0].mxu0 %v927
      %v1606 = vpop.f32.mrb[0].mxu0
      %v1607 = vadd.f32 %v578, %v1606
      %v1608 = vpop.f32.mrb[0].mxu0
      %1609 = vmatprep.mubr.f32.mxu0 0.0
      %1610 = vmatmul.mubr.f32.gmra.mrb[0].mxu0 %v930
      %v1611 = vpop.f32.mrb[0].mxu0
      %v1612 = vadd.f32 %v578, %v1611
      %v1613 = vpop.f32.mrb[0].mxu0
      %1614 = vmatprep.mubr.f32.mxu0 0.0
      %1615 = vmatmul.mubr.f32.gmra.mrb[0].mxu0 %v933
      %v1616 = vpop.f32.mrb[0].mxu0
      %v1617 = vadd.f32 %v578, %v1616
      %v1618 = vpop.f32.mrb[0].mxu0
      %1619 = vmatprep.mubr.f32.mxu0 0.0
      %1620 = vmatmul.mubr.f32.gmra.mrb[0].mxu0 %v936
      %v1621 = vpop.f32.mrb[0].mxu0
      %v1622 = vadd.f32 %v578, %v1621
      %v1623 = vpop.f32.mrb[0].mxu0
      %1624 = vmatprep.mubr.f32.mxu0 0.0
      %1625 = vmatmul.mubr.f32.gmra.mrb[0].mxu0 %v939
      %v1626 = vpop.f32.mrb[0].mxu0
      %v1627 = vadd.f32 %v578, %v1626
      %v1628 = vpop.f32.mrb[0].mxu0
      %1629 = vmatprep.mubr.f32.mxu0 0.0
      %1630 = vmatmul.mubr.f32.gmra.mrb[0].mxu0 %v942
      %v1631 = vpop.f32.mrb[0].mxu0
      %v1632 = vadd.f32 %v578, %v1631
      %v1633 = vpop.f32.mrb[0].mxu0
      %1634 = vmatprep.mubr.f32.mxu0 0.0
      %1635 = vmatmul.mubr.f32.gmra.mrb[0].mxu0 %v945
      %v1636 = vpop.f32.mrb[0].mxu0
      %v1637 = vadd.f32 %v578, %v1636
      %v1638 = vpop.f32.mrb[0].mxu0
      %1639 = vmatprep.mubr.f32.mxu0 0.0
      %1640 = vmatmul.mubr.f32.gmra.mrb[0].mxu0 %v948
      %v1641 = vpop.f32.mrb[0].mxu0
      %v1642 = vadd.f32 %v578, %v1641
      %v1643 = vpop.f32.mrb[0].mxu0
      %1644 = vmatprep.mubr.f32.mxu0 0.0
      %1645 = vmatmul.mubr.f32.gmra.mrb[0].mxu0 %v951
      %v1646 = vpop.f32.mrb[0].mxu0
      %v1647 = vadd.f32 %v578, %v1646
      %v1648 = vpop.f32.mrb[0].mxu0
      %1649 = vmatprep.mubr.f32.mxu0 0.0
      %1650 = vmatmul.mubr.f32.gmra.mrb[0].mxu0 %v954
      %v1651 = vpop.f32.mrb[0].mxu0
      %v1652 = vadd.f32 %v578, %v1651
      %v1653 = vpop.f32.mrb[0].mxu0
      %1654 = vmatprep.mubr.f32.mxu0 0.0
      %1655 = vmatmul.mubr.f32.gmra.mrb[0].mxu0 %v957
      %v1656 = vpop.f32.mrb[0].mxu0
      %v1657 = vadd.f32 %v578, %v1656
      %v1658 = vpop.f32.mrb[0].mxu0
      %1659 = vmatprep.mubr.f32.mxu0 0.0
      %1660 = vmatmul.mubr.f32.gmra.mrb[0].mxu0 %v960
      %v1661 = vpop.f32.mrb[0].mxu0
      %v1662 = vadd.f32 %v578, %v1661
      %v1663 = vpop.f32.mrb[0].mxu0
      %1664 = vmatprep.mubr.f32.mxu0 0.0
      %1665 = vmatmul.mubr.f32.gmra.mrb[0].mxu0 %v963
      %v1666 = vpop.f32.mrb[0].mxu0
      %v1667 = vadd.f32 %v578, %v1666
      %v1668 = vpop.f32.mrb[0].mxu0
      %1669 = vdwg.mxu0
      %v1670 = vmax.f32 %v1032, 0.0
      %v1671 = vmax.f32 %v1037, 0.0
      %v1672 = vmax.f32 %v1042, 0.0
      %v1673 = vmax.f32 %v1047, 0.0
      %v1674 = vmax.f32 %v1052, 0.0
      %v1675 = vmax.f32 %v1057, 0.0
      %v1676 = vmax.f32 %v1062, 0.0
      %v1677 = vmax.f32 %v1067, 0.0
      %v1678 = vmax.f32 %v1072, 0.0
      %v1679 = vmax.f32 %v1077, 0.0
      %v1680 = vmax.f32 %v1082, 0.0
      %v1681 = vmax.f32 %v1087, 0.0
      %v1682 = vmax.f32 %v1092, 0.0
      %v1683 = vmax.f32 %v1097, 0.0
      %v1684 = vmax.f32 %v1102, 0.0
      %v1685 = vmax.f32 %v1107, 0.0
      %v1686 = vmax.f32 %v1112, 0.0
      %v1687 = vmax.f32 %v1117, 0.0
      %v1688 = vmax.f32 %v1122, 0.0
      %v1689 = vmax.f32 %v1127, 0.0
      %v1690 = vmax.f32 %v1132, 0.0
      %v1691 = vmax.f32 %v1137, 0.0
      %v1692 = vmax.f32 %v1142, 0.0
      %v1693 = vmax.f32 %v1147, 0.0
      %v1694 = vmax.f32 %v1152, 0.0
      %v1695 = vmax.f32 %v1157, 0.0
      %v1696 = vmax.f32 %v1162, 0.0
      %v1697 = vmax.f32 %v1167, 0.0
      %v1698 = vmax.f32 %v1172, 0.0
      %v1699 = vmax.f32 %v1177, 0.0
      %v1700 = vmax.f32 %v1182, 0.0
      %v1701 = vmax.f32 %v1187, 0.0
      %v1702 = vmax.f32 %v1192, 0.0
      %v1703 = vmax.f32 %v1197, 0.0
      %v1704 = vmax.f32 %v1202, 0.0
      %v1705 = vmax.f32 %v1207, 0.0
      %v1706 = vmax.f32 %v1212, 0.0
      %v1707 = vmax.f32 %v1217, 0.0
      %v1708 = vmax.f32 %v1222, 0.0
      %v1709 = vmax.f32 %v1227, 0.0
      %v1710 = vmax.f32 %v1232, 0.0
      %v1711 = vmax.f32 %v1237, 0.0
      %v1712 = vmax.f32 %v1242, 0.0
      %v1713 = vmax.f32 %v1247, 0.0
      %v1714 = vmax.f32 %v1252, 0.0
      %v1715 = vmax.f32 %v1257, 0.0
      %v1716 = vmax.f32 %v1262, 0.0
      %v1717 = vmax.f32 %v1267, 0.0
      %v1718 = vmax.f32 %v1272, 0.0
      %v1719 = vmax.f32 %v1277, 0.0
      %v1720 = vmax.f32 %v1282, 0.0
      %v1721 = vmax.f32 %v1287, 0.0
      %v1722 = vmax.f32 %v1292, 0.0
      %v1723 = vmax.f32 %v1297, 0.0
      %v1724 = vmax.f32 %v1302, 0.0
      %v1725 = vmax.f32 %v1307, 0.0
      %v1726 = vmax.f32 %v1312, 0.0
      %v1727 = vmax.f32 %v1317, 0.0
      %v1728 = vmax.f32 %v1322, 0.0
      %v1729 = vmax.f32 %v1327, 0.0
      %v1730 = vmax.f32 %v1332, 0.0
      %v1731 = vmax.f32 %v1337, 0.0
      %v1732 = vmax.f32 %v1342, 0.0
      %v1733 = vmax.f32 %v1347, 0.0
      %v1734 = vmax.f32 %v1352, 0.0
      %v1735 = vmax.f32 %v1357, 0.0
      %v1736 = vmax.f32 %v1362, 0.0
      %v1737 = vmax.f32 %v1367, 0.0
      %v1738 = vmax.f32 %v1372, 0.0
      %v1739 = vmax.f32 %v1377, 0.0
      %v1740 = vmax.f32 %v1382, 0.0
      %v1741 = vmax.f32 %v1387, 0.0
      %v1742 = vmax.f32 %v1392, 0.0
      %v1743 = vmax.f32 %v1397, 0.0
      %v1744 = vmax.f32 %v1402, 0.0
      %v1745 = vmax.f32 %v1407, 0.0
      %v1746 = vmax.f32 %v1412, 0.0
      %v1747 = vmax.f32 %v1417, 0.0
      %v1748 = vmax.f32 %v1422, 0.0
      %v1749 = vmax.f32 %v1427, 0.0
      %v1750 = vmax.f32 %v1432, 0.0
      %v1751 = vmax.f32 %v1437, 0.0
      %v1752 = vmax.f32 %v1442, 0.0
      %v1753 = vmax.f32 %v1447, 0.0
      %v1754 = vmax.f32 %v1452, 0.0
      %v1755 = vmax.f32 %v1457, 0.0
      %v1756 = vmax.f32 %v1462, 0.0
      %v1757 = vmax.f32 %v1467, 0.0
      %v1758 = vmax.f32 %v1472, 0.0
      %v1759 = vmax.f32 %v1477, 0.0
      %v1760 = vmax.f32 %v1482, 0.0
      %v1761 = vmax.f32 %v1487, 0.0
      %v1762 = vmax.f32 %v1492, 0.0
      %v1763 = vmax.f32 %v1497, 0.0
      %v1764 = vmax.f32 %v1502, 0.0
      %v1765 = vmax.f32 %v1507, 0.0
      %v1766 = vmax.f32 %v1512, 0.0
      %v1767 = vmax.f32 %v1517, 0.0
      %v1768 = vmax.f32 %v1522, 0.0
      %v1769 = vmax.f32 %v1527, 0.0
      %v1770 = vmax.f32 %v1532, 0.0
      %v1771 = vmax.f32 %v1537, 0.0
      %v1772 = vmax.f32 %v1542, 0.0
      %v1773 = vmax.f32 %v1547, 0.0
      %v1774 = vmax.f32 %v1552, 0.0
      %v1775 = vmax.f32 %v1557, 0.0
      %v1776 = vmax.f32 %v1562, 0.0
      %v1777 = vmax.f32 %v1567, 0.0
      %v1778 = vmax.f32 %v1572, 0.0
      %v1779 = vmax.f32 %v1577, 0.0
      %v1780 = vmax.f32 %v1582, 0.0
      %v1781 = vmax.f32 %v1587, 0.0
      %v1782 = vmax.f32 %v1592, 0.0
      %v1783 = vmax.f32 %v1597, 0.0
      %v1784 = vmax.f32 %v1602, 0.0
      %v1785 = vmax.f32 %v1607, 0.0
      %v1786 = vmax.f32 %v1612, 0.0
      %v1787 = vmax.f32 %v1617, 0.0
      %v1788 = vmax.f32 %v1622, 0.0
      %v1789 = vmax.f32 %v1627, 0.0
      %v1790 = vmax.f32 %v1632, 0.0
      %v1791 = vmax.f32 %v1637, 0.0
      %v1792 = vmax.f32 %v1642, 0.0
      %v1793 = vmax.f32 %v1647, 0.0
      %v1794 = vmax.f32 %v1652, 0.0
      %v1795 = vmax.f32 %v1657, 0.0
      %v1796 = vmax.f32 %v1662, 0.0
      %v1797 = vmax.f32 %v1667, 0.0
      %v1798 = vld [vmem:[%s4] sm:$0xff]
      %v1799 = vld [vmem:[%s4 + $0x8] sm:$0xff]
      %v1800 = vld [vmem:[%s4 + $0x10] sm:$0xff]
      %v1801 = vld [vmem:[%s4 + $0x18] sm:$0xff]
      %v1802 = vld [vmem:[%s4 + $0x20] sm:$0xff]
      %v1803 = vld [vmem:[%s4 + $0x28] sm:$0xff]
      %v1804 = vld [vmem:[%s4 + $0x30] sm:$0xff]
      %v1805 = vld [vmem:[%s4 + $0x38] sm:$0xff]
      %v1806 = vld [vmem:[%s5] sm:$0x1]
      %v1808 = vlaneseq
      %v1809 = vshrl.u32 %v1808, 7
      %v1810 = vsub.s32 0, %v1809
      %v1811 = vrot.slane %v1806, %v1810
      %vm1813 = vcmask 523264
      %v1815 = vsel %vm1813, %v1670, 0
      %v1818 = vsel %vm1813, %v1671, 0
      %v1821 = vsel %vm1813, %v1672, 0
      %v1824 = vsel %vm1813, %v1673, 0
      %v1827 = vsel %vm1813, %v1674, 0
      %v1830 = vsel %vm1813, %v1675, 0
      %v1833 = vsel %vm1813, %v1676, 0
      %v1836 = vsel %vm1813, %v1677, 0
      %v1839 = vsel %vm1813, %v1678, 0
      %v1842 = vsel %vm1813, %v1679, 0
      %v1845 = vsel %vm1813, %v1680, 0
      %v1848 = vsel %vm1813, %v1681, 0
      %v1851 = vsel %vm1813, %v1682, 0
      %v1854 = vsel %vm1813, %v1683, 0
      %v1857 = vsel %vm1813, %v1684, 0
      %v1860 = vsel %vm1813, %v1685, 0
      %v1863 = vsel %vm1813, %v1686, 0
      %v1866 = vsel %vm1813, %v1687, 0
      %v1869 = vsel %vm1813, %v1688, 0
      %v1872 = vsel %vm1813, %v1689, 0
      %v1875 = vsel %vm1813, %v1690, 0
      %v1878 = vsel %vm1813, %v1691, 0
      %v1881 = vsel %vm1813, %v1692, 0
      %v1884 = vsel %vm1813, %v1693, 0
      %v1887 = vsel %vm1813, %v1694, 0
      %v1890 = vsel %vm1813, %v1695, 0
      %v1893 = vsel %vm1813, %v1696, 0
      %v1896 = vsel %vm1813, %v1697, 0
      %v1899 = vsel %vm1813, %v1698, 0
      %v1902 = vsel %vm1813, %v1699, 0
      %v1905 = vsel %vm1813, %v1700, 0
      %v1908 = vsel %vm1813, %v1701, 0
      %v1911 = vsel %vm1813, %v1702, 0
      %v1914 = vsel %vm1813, %v1703, 0
      %v1917 = vsel %vm1813, %v1704, 0
      %v1920 = vsel %vm1813, %v1705, 0
      %v1923 = vsel %vm1813, %v1706, 0
      %v1926 = vsel %vm1813, %v1707, 0
      %v1929 = vsel %vm1813, %v1708, 0
      %v1932 = vsel %vm1813, %v1709, 0
      %v1935 = vsel %vm1813, %v1710, 0
      %v1938 = vsel %vm1813, %v1711, 0
      %v1941 = vsel %vm1813, %v1712, 0
      %v1944 = vsel %vm1813, %v1713, 0
      %v1947 = vsel %vm1813, %v1714, 0
      %v1950 = vsel %vm1813, %v1715, 0
      %v1953 = vsel %vm1813, %v1716, 0
      %v1956 = vsel %vm1813, %v1717, 0
      %v1959 = vsel %vm1813, %v1718, 0
      %v1962 = vsel %vm1813, %v1719, 0
      %v1965 = vsel %vm1813, %v1720, 0
      %v1968 = vsel %vm1813, %v1721, 0
      %v1971 = vsel %vm1813, %v1722, 0
      %v1974 = vsel %vm1813, %v1723, 0
      %v1977 = vsel %vm1813, %v1724, 0
      %v1980 = vsel %vm1813, %v1725, 0
      %v1983 = vsel %vm1813, %v1726, 0
      %v1986 = vsel %vm1813, %v1727, 0
      %v1989 = vsel %vm1813, %v1728, 0
      %v1992 = vsel %vm1813, %v1729, 0
      %v1995 = vsel %vm1813, %v1730, 0
      %v1998 = vsel %vm1813, %v1731, 0
      %v2001 = vsel %vm1813, %v1732, 0
      %v2004 = vsel %vm1813, %v1733, 0
      %v2007 = vsel %vm1813, %v1734, 0
      %v2010 = vsel %vm1813, %v1735, 0
      %v2013 = vsel %vm1813, %v1736, 0
      %v2016 = vsel %vm1813, %v1737, 0
      %v2019 = vsel %vm1813, %v1738, 0
      %v2022 = vsel %vm1813, %v1739, 0
      %v2025 = vsel %vm1813, %v1740, 0
      %v2028 = vsel %vm1813, %v1741, 0
      %v2031 = vsel %vm1813, %v1742, 0
      %v2034 = vsel %vm1813, %v1743, 0
      %v2037 = vsel %vm1813, %v1744, 0
      %v2040 = vsel %vm1813, %v1745, 0
      %v2043 = vsel %vm1813, %v1746, 0
      %v2046 = vsel %vm1813, %v1747, 0
      %v2049 = vsel %vm1813, %v1748, 0
      %v2052 = vsel %vm1813, %v1749, 0
      %v2055 = vsel %vm1813, %v1750, 0
      %v2058 = vsel %vm1813, %v1751, 0
      %v2061 = vsel %vm1813, %v1752, 0
      %v2064 = vsel %vm1813, %v1753, 0
      %v2067 = vsel %vm1813, %v1754, 0
      %v2070 = vsel %vm1813, %v1755, 0
      %v2073 = vsel %vm1813, %v1756, 0
      %v2076 = vsel %vm1813, %v1757, 0
      %v2079 = vsel %vm1813, %v1758, 0
      %v2082 = vsel %vm1813, %v1759, 0
      %v2085 = vsel %vm1813, %v1760, 0
      %v2088 = vsel %vm1813, %v1761, 0
      %v2091 = vsel %vm1813, %v1762, 0
      %v2094 = vsel %vm1813, %v1763, 0
      %v2097 = vsel %vm1813, %v1764, 0
      %v2100 = vsel %vm1813, %v1765, 0
      %v2103 = vsel %vm1813, %v1766, 0
      %v2106 = vsel %vm1813, %v1767, 0
      %v2109 = vsel %vm1813, %v1768, 0
      %v2112 = vsel %vm1813, %v1769, 0
      %v2115 = vsel %vm1813, %v1770, 0
      %v2118 = vsel %vm1813, %v1771, 0
      %v2121 = vsel %vm1813, %v1772, 0
      %v2124 = vsel %vm1813, %v1773, 0
      %v2127 = vsel %vm1813, %v1774, 0
      %v2130 = vsel %vm1813, %v1775, 0
      %v2133 = vsel %vm1813, %v1776, 0
      %v2136 = vsel %vm1813, %v1777, 0
      %v2139 = vsel %vm1813, %v1778, 0
      %v2142 = vsel %vm1813, %v1779, 0
      %v2145 = vsel %vm1813, %v1780, 0
      %v2148 = vsel %vm1813, %v1781, 0
      %v2151 = vsel %vm1813, %v1782, 0
      %v2154 = vsel %vm1813, %v1783, 0
      %v2157 = vsel %vm1813, %v1784, 0
      %v2160 = vsel %vm1813, %v1785, 0
      %v2163 = vsel %vm1813, %v1786, 0
      %v2166 = vsel %vm1813, %v1787, 0
      %v2169 = vsel %vm1813, %v1788, 0
      %v2172 = vsel %vm1813, %v1789, 0
      %v2175 = vsel %vm1813, %v1790, 0
      %v2178 = vsel %vm1813, %v1791, 0
      %v2181 = vsel %vm1813, %v1792, 0
      %v2184 = vsel %vm1813, %v1793, 0
      %v2187 = vsel %vm1813, %v1794, 0
      %v2190 = vsel %vm1813, %v1795, 0
      %v2193 = vsel %vm1813, %v1796, 0
      %v2196 = vsel %vm1813, %v1797, 0
      %2198 = vmatprep.subr.mxu0 0.0
      %2199 = vmatpush1.msra.mxu0 %v1798
      %2200 = vmatprep.subr.mxu0 0.0
      %2201 = vmatpush1.msra.mxu0 %v1799
      %2202 = vmatprep.subr.mxu0 0.0
      %2203 = vmatpush1.msra.mxu0 %v1800
      %2204 = vmatprep.subr.mxu0 0.0
      %2205 = vmatpush1.msra.mxu0 %v1801
      %2206 = vmatprep.subr.mxu0 0.0
      %2207 = vmatpush1.msra.mxu0 %v1802
      %2208 = vmatprep.subr.mxu0 0.0
      %2209 = vmatpush1.msra.mxu0 %v1803
      %2210 = vmatprep.subr.mxu0 0.0
      %2211 = vmatpush1.msra.mxu0 %v1804
      %2212 = vmatprep.subr.mxu0 0.0
      %2213 = vmatpush1.msra.mxu0 %v1805
      %2214 = vmatprep.subr.mxu0 0.0
      %2215 = vmatpush1.msra.mxu0 0.0
      %2216 = vmatprep.subr.mxu0 0.0
      %2217 = vmatpush1.msra.mxu0 0.0
      %2218 = vmatprep.subr.mxu0 0.0
      %2219 = vmatpush1.msra.mxu0 0.0
      %2220 = vmatprep.subr.mxu0 0.0
      %2221 = vmatpush1.msra.mxu0 0.0
      %2222 = vmatprep.subr.mxu0 0.0
      %2223 = vmatpush1.msra.mxu0 0.0
      %2224 = vmatprep.subr.mxu0 0.0
      %2225 = vmatpush1.msra.mxu0 0.0
      %2226 = vmatprep.subr.mxu0 0.0
      %2227 = vmatpush1.msra.mxu0 0.0
      %2228 = vmatprep.subr.mxu0 0.0
      %2229 = vmatpush1.msra.mxu0 0.0
      %2230 = vmatprep.subr.mxu0 0.0
      %2231 = vmatpush1.msra.mxu0 0.0
      %2232 = vmatprep.subr.mxu0 0.0
      %2233 = vmatpush1.msra.mxu0 0.0
      %2234 = vmatprep.subr.mxu0 0.0
      %2235 = vmatpush1.msra.mxu0 0.0
      %2236 = vmatprep.subr.mxu0 0.0
      %2237 = vmatpush1.msra.mxu0 0.0
      %2238 = vmatprep.subr.mxu0 0.0
      %2239 = vmatpush1.msra.mxu0 0.0
      %2240 = vmatprep.subr.mxu0 0.0
      %2241 = vmatpush1.msra.mxu0 0.0
      %2242 = vmatprep.subr.mxu0 0.0
      %2243 = vmatpush1.msra.mxu0 0.0
      %2244 = vmatprep.subr.mxu0 0.0
      %2245 = vmatpush1.msra.mxu0 0.0
      %2246 = vmatprep.subr.mxu0 0.0
      %2247 = vmatpush1.msra.mxu0 0.0
      %2248 = vmatprep.subr.mxu0 0.0
      %2249 = vmatpush1.msra.mxu0 0.0
      %2250 = vmatprep.subr.mxu0 0.0
      %2251 = vmatpush1.msra.mxu0 0.0
      %2252 = vmatprep.subr.mxu0 0.0
      %2253 = vmatpush1.msra.mxu0 0.0
      %2254 = vmatprep.subr.mxu0 0.0
      %2255 = vmatpush1.msra.mxu0 0.0
      %2256 = vmatprep.subr.mxu0 0.0
      %2257 = vmatpush1.msra.mxu0 0.0
      %2258 = vmatprep.subr.mxu0 0.0
      %2259 = vmatpush1.msra.mxu0 0.0
      %2260 = vmatprep.subr.mxu0 0.0
      %2261 = vmatpush1.msra.mxu0 0.0
      %2262 = vmatprep.mubr.f32.mxu0 0.0
      %2263 = vmatmul.mubr.f32.gmra.mrb[0].mxu0 %v1815
      %v2264 = vpop.f32.mrb[0].mxu0
      %v2265 = vadd.f32 %v1811, %v2264
      %v2266 = vpop.f32.mrb[0].mxu0
      %2267 = vmatprep.mubr.f32.mxu0 0.0
      %2268 = vmatmul.mubr.f32.gmra.mrb[0].mxu0 %v1818
      %v2269 = vpop.f32.mrb[0].mxu0
      %v2270 = vadd.f32 %v1811, %v2269
      %v2271 = vpop.f32.mrb[0].mxu0
      %2272 = vmatprep.mubr.f32.mxu0 0.0
      %2273 = vmatmul.mubr.f32.gmra.mrb[0].mxu0 %v1821
      %v2274 = vpop.f32.mrb[0].mxu0
      %v2275 = vadd.f32 %v1811, %v2274
      %v2276 = vpop.f32.mrb[0].mxu0
      %2277 = vmatprep.mubr.f32.mxu0 0.0
      %2278 = vmatmul.mubr.f32.gmra.mrb[0].mxu0 %v1824
      %v2279 = vpop.f32.mrb[0].mxu0
      %v2280 = vadd.f32 %v1811, %v2279
      %v2281 = vpop.f32.mrb[0].mxu0
      %2282 = vmatprep.mubr.f32.mxu0 0.0
      %2283 = vmatmul.mubr.f32.gmra.mrb[0].mxu0 %v1827
      %v2284 = vpop.f32.mrb[0].mxu0
      %v2285 = vadd.f32 %v1811, %v2284
      %v2286 = vpop.f32.mrb[0].mxu0
      %2287 = vmatprep.mubr.f32.mxu0 0.0
      %2288 = vmatmul.mubr.f32.gmra.mrb[0].mxu0 %v1830
      %v2289 = vpop.f32.mrb[0].mxu0
      %v2290 = vadd.f32 %v1811, %v2289
      %v2291 = vpop.f32.mrb[0].mxu0
      %2292 = vmatprep.mubr.f32.mxu0 0.0
      %2293 = vmatmul.mubr.f32.gmra.mrb[0].mxu0 %v1833
      %v2294 = vpop.f32.mrb[0].mxu0
      %v2295 = vadd.f32 %v1811, %v2294
      %v2296 = vpop.f32.mrb[0].mxu0
      %2297 = vmatprep.mubr.f32.mxu0 0.0
      %2298 = vmatmul.mubr.f32.gmra.mrb[0].mxu0 %v1836
      %v2299 = vpop.f32.mrb[0].mxu0
      %v2300 = vadd.f32 %v1811, %v2299
      %v2301 = vpop.f32.mrb[0].mxu0
      %2302 = vmatprep.mubr.f32.mxu0 0.0
      %2303 = vmatmul.mubr.f32.gmra.mrb[0].mxu0 %v1839
      %v2304 = vpop.f32.mrb[0].mxu0
      %v2305 = vadd.f32 %v1811, %v2304
      %v2306 = vpop.f32.mrb[0].mxu0
      %2307 = vmatprep.mubr.f32.mxu0 0.0
      %2308 = vmatmul.mubr.f32.gmra.mrb[0].mxu0 %v1842
      %v2309 = vpop.f32.mrb[0].mxu0
      %v2310 = vadd.f32 %v1811, %v2309
      %v2311 = vpop.f32.mrb[0].mxu0
      %2312 = vmatprep.mubr.f32.mxu0 0.0
      %2313 = vmatmul.mubr.f32.gmra.mrb[0].mxu0 %v1845
      %v2314 = vpop.f32.mrb[0].mxu0
      %v2315 = vadd.f32 %v1811, %v2314
      %v2316 = vpop.f32.mrb[0].mxu0
      %2317 = vmatprep.mubr.f32.mxu0 0.0
      %2318 = vmatmul.mubr.f32.gmra.mrb[0].mxu0 %v1848
      %v2319 = vpop.f32.mrb[0].mxu0
      %v2320 = vadd.f32 %v1811, %v2319
      %v2321 = vpop.f32.mrb[0].mxu0
      %2322 = vmatprep.mubr.f32.mxu0 0.0
      %2323 = vmatmul.mubr.f32.gmra.mrb[0].mxu0 %v1851
      %v2324 = vpop.f32.mrb[0].mxu0
      %v2325 = vadd.f32 %v1811, %v2324
      %v2326 = vpop.f32.mrb[0].mxu0
      %2327 = vmatprep.mubr.f32.mxu0 0.0
      %2328 = vmatmul.mubr.f32.gmra.mrb[0].mxu0 %v1854
      %v2329 = vpop.f32.mrb[0].mxu0
      %v2330 = vadd.f32 %v1811, %v2329
      %v2331 = vpop.f32.mrb[0].mxu0
      %2332 = vmatprep.mubr.f32.mxu0 0.0
      %2333 = vmatmul.mubr.f32.gmra.mrb[0].mxu0 %v1857
      %v2334 = vpop.f32.mrb[0].mxu0
      %v2335 = vadd.f32 %v1811, %v2334
      %v2336 = vpop.f32.mrb[0].mxu0
      %2337 = vmatprep.mubr.f32.mxu0 0.0
      %2338 = vmatmul.mubr.f32.gmra.mrb[0].mxu0 %v1860
      %v2339 = vpop.f32.mrb[0].mxu0
      %v2340 = vadd.f32 %v1811, %v2339
      %v2341 = vpop.f32.mrb[0].mxu0
      %2342 = vmatprep.mubr.f32.mxu0 0.0
      %2343 = vmatmul.mubr.f32.gmra.mrb[0].mxu0 %v1863
      %v2344 = vpop.f32.mrb[0].mxu0
      %v2345 = vadd.f32 %v1811, %v2344
      %v2346 = vpop.f32.mrb[0].mxu0
      %2347 = vmatprep.mubr.f32.mxu0 0.0
      %2348 = vmatmul.mubr.f32.gmra.mrb[0].mxu0 %v1866
      %v2349 = vpop.f32.mrb[0].mxu0
      %v2350 = vadd.f32 %v1811, %v2349
      %v2351 = vpop.f32.mrb[0].mxu0
      %2352 = vmatprep.mubr.f32.mxu0 0.0
      %2353 = vmatmul.mubr.f32.gmra.mrb[0].mxu0 %v1869
      %v2354 = vpop.f32.mrb[0].mxu0
      %v2355 = vadd.f32 %v1811, %v2354
      %v2356 = vpop.f32.mrb[0].mxu0
      %2357 = vmatprep.mubr.f32.mxu0 0.0
      %2358 = vmatmul.mubr.f32.gmra.mrb[0].mxu0 %v1872
      %v2359 = vpop.f32.mrb[0].mxu0
      %v2360 = vadd.f32 %v1811, %v2359
      %v2361 = vpop.f32.mrb[0].mxu0
      %2362 = vmatprep.mubr.f32.mxu0 0.0
      %2363 = vmatmul.mubr.f32.gmra.mrb[0].mxu0 %v1875
      %v2364 = vpop.f32.mrb[0].mxu0
      %v2365 = vadd.f32 %v1811, %v2364
      %v2366 = vpop.f32.mrb[0].mxu0
      %2367 = vmatprep.mubr.f32.mxu0 0.0
      %2368 = vmatmul.mubr.f32.gmra.mrb[0].mxu0 %v1878
      %v2369 = vpop.f32.mrb[0].mxu0
      %v2370 = vadd.f32 %v1811, %v2369
      %v2371 = vpop.f32.mrb[0].mxu0
      %2372 = vmatprep.mubr.f32.mxu0 0.0
      %2373 = vmatmul.mubr.f32.gmra.mrb[0].mxu0 %v1881
      %v2374 = vpop.f32.mrb[0].mxu0
      %v2375 = vadd.f32 %v1811, %v2374
      %v2376 = vpop.f32.mrb[0].mxu0
      %2377 = vmatprep.mubr.f32.mxu0 0.0
      %2378 = vmatmul.mubr.f32.gmra.mrb[0].mxu0 %v1884
      %v2379 = vpop.f32.mrb[0].mxu0
      %v2380 = vadd.f32 %v1811, %v2379
      %v2381 = vpop.f32.mrb[0].mxu0
      %2382 = vmatprep.mubr.f32.mxu0 0.0
      %2383 = vmatmul.mubr.f32.gmra.mrb[0].mxu0 %v1887
      %v2384 = vpop.f32.mrb[0].mxu0
      %v2385 = vadd.f32 %v1811, %v2384
      %v2386 = vpop.f32.mrb[0].mxu0
      %2387 = vmatprep.mubr.f32.mxu0 0.0
      %2388 = vmatmul.mubr.f32.gmra.mrb[0].mxu0 %v1890
      %v2389 = vpop.f32.mrb[0].mxu0
      %v2390 = vadd.f32 %v1811, %v2389
      %v2391 = vpop.f32.mrb[0].mxu0
      %2392 = vmatprep.mubr.f32.mxu0 0.0
      %2393 = vmatmul.mubr.f32.gmra.mrb[0].mxu0 %v1893
      %v2394 = vpop.f32.mrb[0].mxu0
      %v2395 = vadd.f32 %v1811, %v2394
      %v2396 = vpop.f32.mrb[0].mxu0
      %2397 = vmatprep.mubr.f32.mxu0 0.0
      %2398 = vmatmul.mubr.f32.gmra.mrb[0].mxu0 %v1896
      %v2399 = vpop.f32.mrb[0].mxu0
      %v2400 = vadd.f32 %v1811, %v2399
      %v2401 = vpop.f32.mrb[0].mxu0
      %2402 = vmatprep.mubr.f32.mxu0 0.0
      %2403 = vmatmul.mubr.f32.gmra.mrb[0].mxu0 %v1899
      %v2404 = vpop.f32.mrb[0].mxu0
      %v2405 = vadd.f32 %v1811, %v2404
      %v2406 = vpop.f32.mrb[0].mxu0
      %2407 = vmatprep.mubr.f32.mxu0 0.0
      %2408 = vmatmul.mubr.f32.gmra.mrb[0].mxu0 %v1902
      %v2409 = vpop.f32.mrb[0].mxu0
      %v2410 = vadd.f32 %v1811, %v2409
      %v2411 = vpop.f32.mrb[0].mxu0
      %2412 = vmatprep.mubr.f32.mxu0 0.0
      %2413 = vmatmul.mubr.f32.gmra.mrb[0].mxu0 %v1905
      %v2414 = vpop.f32.mrb[0].mxu0
      %v2415 = vadd.f32 %v1811, %v2414
      %v2416 = vpop.f32.mrb[0].mxu0
      %2417 = vmatprep.mubr.f32.mxu0 0.0
      %2418 = vmatmul.mubr.f32.gmra.mrb[0].mxu0 %v1908
      %v2419 = vpop.f32.mrb[0].mxu0
      %v2420 = vadd.f32 %v1811, %v2419
      %v2421 = vpop.f32.mrb[0].mxu0
      %2422 = vmatprep.mubr.f32.mxu0 0.0
      %2423 = vmatmul.mubr.f32.gmra.mrb[0].mxu0 %v1911
      %v2424 = vpop.f32.mrb[0].mxu0
      %v2425 = vadd.f32 %v1811, %v2424
      %v2426 = vpop.f32.mrb[0].mxu0
      %2427 = vmatprep.mubr.f32.mxu0 0.0
      %2428 = vmatmul.mubr.f32.gmra.mrb[0].mxu0 %v1914
      %v2429 = vpop.f32.mrb[0].mxu0
      %v2430 = vadd.f32 %v1811, %v2429
      %v2431 = vpop.f32.mrb[0].mxu0
      %2432 = vmatprep.mubr.f32.mxu0 0.0
      %2433 = vmatmul.mubr.f32.gmra.mrb[0].mxu0 %v1917
      %v2434 = vpop.f32.mrb[0].mxu0
      %v2435 = vadd.f32 %v1811, %v2434
      %v2436 = vpop.f32.mrb[0].mxu0
      %2437 = vmatprep.mubr.f32.mxu0 0.0
      %2438 = vmatmul.mubr.f32.gmra.mrb[0].mxu0 %v1920
      %v2439 = vpop.f32.mrb[0].mxu0
      %v2440 = vadd.f32 %v1811, %v2439
      %v2441 = vpop.f32.mrb[0].mxu0
      %2442 = vmatprep.mubr.f32.mxu0 0.0
      %2443 = vmatmul.mubr.f32.gmra.mrb[0].mxu0 %v1923
      %v2444 = vpop.f32.mrb[0].mxu0
      %v2445 = vadd.f32 %v1811, %v2444
      %v2446 = vpop.f32.mrb[0].mxu0
      %2447 = vmatprep.mubr.f32.mxu0 0.0
      %2448 = vmatmul.mubr.f32.gmra.mrb[0].mxu0 %v1926
      %v2449 = vpop.f32.mrb[0].mxu0
      %v2450 = vadd.f32 %v1811, %v2449
      %v2451 = vpop.f32.mrb[0].mxu0
      %2452 = vmatprep.mubr.f32.mxu0 0.0
      %2453 = vmatmul.mubr.f32.gmra.mrb[0].mxu0 %v1929
      %v2454 = vpop.f32.mrb[0].mxu0
      %v2455 = vadd.f32 %v1811, %v2454
      %v2456 = vpop.f32.mrb[0].mxu0
      %2457 = vmatprep.mubr.f32.mxu0 0.0
      %2458 = vmatmul.mubr.f32.gmra.mrb[0].mxu0 %v1932
      %v2459 = vpop.f32.mrb[0].mxu0
      %v2460 = vadd.f32 %v1811, %v2459
      %v2461 = vpop.f32.mrb[0].mxu0
      %2462 = vmatprep.mubr.f32.mxu0 0.0
      %2463 = vmatmul.mubr.f32.gmra.mrb[0].mxu0 %v1935
      %v2464 = vpop.f32.mrb[0].mxu0
      %v2465 = vadd.f32 %v1811, %v2464
      %v2466 = vpop.f32.mrb[0].mxu0
      %2467 = vmatprep.mubr.f32.mxu0 0.0
      %2468 = vmatmul.mubr.f32.gmra.mrb[0].mxu0 %v1938
      %v2469 = vpop.f32.mrb[0].mxu0
      %v2470 = vadd.f32 %v1811, %v2469
      %v2471 = vpop.f32.mrb[0].mxu0
      %2472 = vmatprep.mubr.f32.mxu0 0.0
      %2473 = vmatmul.mubr.f32.gmra.mrb[0].mxu0 %v1941
      %v2474 = vpop.f32.mrb[0].mxu0
      %v2475 = vadd.f32 %v1811, %v2474
      %v2476 = vpop.f32.mrb[0].mxu0
      %2477 = vmatprep.mubr.f32.mxu0 0.0
      %2478 = vmatmul.mubr.f32.gmra.mrb[0].mxu0 %v1944
      %v2479 = vpop.f32.mrb[0].mxu0
      %v2480 = vadd.f32 %v1811, %v2479
      %v2481 = vpop.f32.mrb[0].mxu0
      %2482 = vmatprep.mubr.f32.mxu0 0.0
      %2483 = vmatmul.mubr.f32.gmra.mrb[0].mxu0 %v1947
      %v2484 = vpop.f32.mrb[0].mxu0
      %v2485 = vadd.f32 %v1811, %v2484
      %v2486 = vpop.f32.mrb[0].mxu0
      %2487 = vmatprep.mubr.f32.mxu0 0.0
      %2488 = vmatmul.mubr.f32.gmra.mrb[0].mxu0 %v1950
      %v2489 = vpop.f32.mrb[0].mxu0
      %v2490 = vadd.f32 %v1811, %v2489
      %v2491 = vpop.f32.mrb[0].mxu0
      %2492 = vmatprep.mubr.f32.mxu0 0.0
      %2493 = vmatmul.mubr.f32.gmra.mrb[0].mxu0 %v1953
      %v2494 = vpop.f32.mrb[0].mxu0
      %v2495 = vadd.f32 %v1811, %v2494
      %v2496 = vpop.f32.mrb[0].mxu0
      %2497 = vmatprep.mubr.f32.mxu0 0.0
      %2498 = vmatmul.mubr.f32.gmra.mrb[0].mxu0 %v1956
      %v2499 = vpop.f32.mrb[0].mxu0
      %v2500 = vadd.f32 %v1811, %v2499
      %v2501 = vpop.f32.mrb[0].mxu0
      %2502 = vmatprep.mubr.f32.mxu0 0.0
      %2503 = vmatmul.mubr.f32.gmra.mrb[0].mxu0 %v1959
      %v2504 = vpop.f32.mrb[0].mxu0
      %v2505 = vadd.f32 %v1811, %v2504
      %v2506 = vpop.f32.mrb[0].mxu0
      %2507 = vmatprep.mubr.f32.mxu0 0.0
      %2508 = vmatmul.mubr.f32.gmra.mrb[0].mxu0 %v1962
      %v2509 = vpop.f32.mrb[0].mxu0
      %v2510 = vadd.f32 %v1811, %v2509
      %v2511 = vpop.f32.mrb[0].mxu0
      %2512 = vmatprep.mubr.f32.mxu0 0.0
      %2513 = vmatmul.mubr.f32.gmra.mrb[0].mxu0 %v1965
      %v2514 = vpop.f32.mrb[0].mxu0
      %v2515 = vadd.f32 %v1811, %v2514
      %v2516 = vpop.f32.mrb[0].mxu0
      %2517 = vmatprep.mubr.f32.mxu0 0.0
      %2518 = vmatmul.mubr.f32.gmra.mrb[0].mxu0 %v1968
      %v2519 = vpop.f32.mrb[0].mxu0
      %v2520 = vadd.f32 %v1811, %v2519
      %v2521 = vpop.f32.mrb[0].mxu0
      %2522 = vmatprep.mubr.f32.mxu0 0.0
      %2523 = vmatmul.mubr.f32.gmra.mrb[0].mxu0 %v1971
      %v2524 = vpop.f32.mrb[0].mxu0
      %v2525 = vadd.f32 %v1811, %v2524
      %v2526 = vpop.f32.mrb[0].mxu0
      %2527 = vmatprep.mubr.f32.mxu0 0.0
      %2528 = vmatmul.mubr.f32.gmra.mrb[0].mxu0 %v1974
      %v2529 = vpop.f32.mrb[0].mxu0
      %v2530 = vadd.f32 %v1811, %v2529
      %v2531 = vpop.f32.mrb[0].mxu0
      %2532 = vmatprep.mubr.f32.mxu0 0.0
      %2533 = vmatmul.mubr.f32.gmra.mrb[0].mxu0 %v1977
      %v2534 = vpop.f32.mrb[0].mxu0
      %v2535 = vadd.f32 %v1811, %v2534
      %v2536 = vpop.f32.mrb[0].mxu0
      %2537 = vmatprep.mubr.f32.mxu0 0.0
      %2538 = vmatmul.mubr.f32.gmra.mrb[0].mxu0 %v1980
      %v2539 = vpop.f32.mrb[0].mxu0
      %v2540 = vadd.f32 %v1811, %v2539
      %v2541 = vpop.f32.mrb[0].mxu0
      %2542 = vmatprep.mubr.f32.mxu0 0.0
      %2543 = vmatmul.mubr.f32.gmra.mrb[0].mxu0 %v1983
      %v2544 = vpop.f32.mrb[0].mxu0
      %v2545 = vadd.f32 %v1811, %v2544
      %v2546 = vpop.f32.mrb[0].mxu0
      %2547 = vmatprep.mubr.f32.mxu0 0.0
      %2548 = vmatmul.mubr.f32.gmra.mrb[0].mxu0 %v1986
      %v2549 = vpop.f32.mrb[0].mxu0
      %v2550 = vadd.f32 %v1811, %v2549
      %v2551 = vpop.f32.mrb[0].mxu0
      %2552 = vmatprep.mubr.f32.mxu0 0.0
      %2553 = vmatmul.mubr.f32.gmra.mrb[0].mxu0 %v1989
      %v2554 = vpop.f32.mrb[0].mxu0
      %v2555 = vadd.f32 %v1811, %v2554
      %v2556 = vpop.f32.mrb[0].mxu0
      %2557 = vmatprep.mubr.f32.mxu0 0.0
      %2558 = vmatmul.mubr.f32.gmra.mrb[0].mxu0 %v1992
      %v2559 = vpop.f32.mrb[0].mxu0
      %v2560 = vadd.f32 %v1811, %v2559
      %v2561 = vpop.f32.mrb[0].mxu0
      %2562 = vmatprep.mubr.f32.mxu0 0.0
      %2563 = vmatmul.mubr.f32.gmra.mrb[0].mxu0 %v1995
      %v2564 = vpop.f32.mrb[0].mxu0
      %v2565 = vadd.f32 %v1811, %v2564
      %v2566 = vpop.f32.mrb[0].mxu0
      %2567 = vmatprep.mubr.f32.mxu0 0.0
      %2568 = vmatmul.mubr.f32.gmra.mrb[0].mxu0 %v1998
      %v2569 = vpop.f32.mrb[0].mxu0
      %v2570 = vadd.f32 %v1811, %v2569
      %v2571 = vpop.f32.mrb[0].mxu0
      %2572 = vmatprep.mubr.f32.mxu0 0.0
      %2573 = vmatmul.mubr.f32.gmra.mrb[0].mxu0 %v2001
      %v2574 = vpop.f32.mrb[0].mxu0
      %v2575 = vadd.f32 %v1811, %v2574
      %v2576 = vpop.f32.mrb[0].mxu0
      %2577 = vmatprep.mubr.f32.mxu0 0.0
      %2578 = vmatmul.mubr.f32.gmra.mrb[0].mxu0 %v2004
      %v2579 = vpop.f32.mrb[0].mxu0
      %v2580 = vadd.f32 %v1811, %v2579
      %v2581 = vpop.f32.mrb[0].mxu0
      %2582 = vmatprep.mubr.f32.mxu0 0.0
      %2583 = vmatmul.mubr.f32.gmra.mrb[0].mxu0 %v2007
      %v2584 = vpop.f32.mrb[0].mxu0
      %v2585 = vadd.f32 %v1811, %v2584
      %v2586 = vpop.f32.mrb[0].mxu0
      %2587 = vmatprep.mubr.f32.mxu0 0.0
      %2588 = vmatmul.mubr.f32.gmra.mrb[0].mxu0 %v2010
      %v2589 = vpop.f32.mrb[0].mxu0
      %v2590 = vadd.f32 %v1811, %v2589
      %v2591 = vpop.f32.mrb[0].mxu0
      %2592 = vmatprep.mubr.f32.mxu0 0.0
      %2593 = vmatmul.mubr.f32.gmra.mrb[0].mxu0 %v2013
      %v2594 = vpop.f32.mrb[0].mxu0
      %v2595 = vadd.f32 %v1811, %v2594
      %v2596 = vpop.f32.mrb[0].mxu0
      %2597 = vmatprep.mubr.f32.mxu0 0.0
      %2598 = vmatmul.mubr.f32.gmra.mrb[0].mxu0 %v2016
      %v2599 = vpop.f32.mrb[0].mxu0
      %v2600 = vadd.f32 %v1811, %v2599
      %v2601 = vpop.f32.mrb[0].mxu0
      %2602 = vmatprep.mubr.f32.mxu0 0.0
      %2603 = vmatmul.mubr.f32.gmra.mrb[0].mxu0 %v2019
      %v2604 = vpop.f32.mrb[0].mxu0
      %v2605 = vadd.f32 %v1811, %v2604
      %v2606 = vpop.f32.mrb[0].mxu0
      %2607 = vmatprep.mubr.f32.mxu0 0.0
      %2608 = vmatmul.mubr.f32.gmra.mrb[0].mxu0 %v2022
      %v2609 = vpop.f32.mrb[0].mxu0
      %v2610 = vadd.f32 %v1811, %v2609
      %v2611 = vpop.f32.mrb[0].mxu0
      %2612 = vmatprep.mubr.f32.mxu0 0.0
      %2613 = vmatmul.mubr.f32.gmra.mrb[0].mxu0 %v2025
      %v2614 = vpop.f32.mrb[0].mxu0
      %v2615 = vadd.f32 %v1811, %v2614
      %v2616 = vpop.f32.mrb[0].mxu0
      %2617 = vmatprep.mubr.f32.mxu0 0.0
      %2618 = vmatmul.mubr.f32.gmra.mrb[0].mxu0 %v2028
      %v2619 = vpop.f32.mrb[0].mxu0
      %v2620 = vadd.f32 %v1811, %v2619
      %v2621 = vpop.f32.mrb[0].mxu0
      %2622 = vmatprep.mubr.f32.mxu0 0.0
      %2623 = vmatmul.mubr.f32.gmra.mrb[0].mxu0 %v2031
      %v2624 = vpop.f32.mrb[0].mxu0
      %v2625 = vadd.f32 %v1811, %v2624
      %v2626 = vpop.f32.mrb[0].mxu0
      %2627 = vmatprep.mubr.f32.mxu0 0.0
      %2628 = vmatmul.mubr.f32.gmra.mrb[0].mxu0 %v2034
      %v2629 = vpop.f32.mrb[0].mxu0
      %v2630 = vadd.f32 %v1811, %v2629
      %v2631 = vpop.f32.mrb[0].mxu0
      %2632 = vmatprep.mubr.f32.mxu0 0.0
      %2633 = vmatmul.mubr.f32.gmra.mrb[0].mxu0 %v2037
      %v2634 = vpop.f32.mrb[0].mxu0
      %v2635 = vadd.f32 %v1811, %v2634
      %v2636 = vpop.f32.mrb[0].mxu0
      %2637 = vmatprep.mubr.f32.mxu0 0.0
      %2638 = vmatmul.mubr.f32.gmra.mrb[0].mxu0 %v2040
      %v2639 = vpop.f32.mrb[0].mxu0
      %v2640 = vadd.f32 %v1811, %v2639
      %v2641 = vpop.f32.mrb[0].mxu0
      %2642 = vmatprep.mubr.f32.mxu0 0.0
      %2643 = vmatmul.mubr.f32.gmra.mrb[0].mxu0 %v2043
      %v2644 = vpop.f32.mrb[0].mxu0
      %v2645 = vadd.f32 %v1811, %v2644
      %v2646 = vpop.f32.mrb[0].mxu0
      %2647 = vmatprep.mubr.f32.mxu0 0.0
      %2648 = vmatmul.mubr.f32.gmra.mrb[0].mxu0 %v2046
      %v2649 = vpop.f32.mrb[0].mxu0
      %v2650 = vadd.f32 %v1811, %v2649
      %v2651 = vpop.f32.mrb[0].mxu0
      %2652 = vmatprep.mubr.f32.mxu0 0.0
      %2653 = vmatmul.mubr.f32.gmra.mrb[0].mxu0 %v2049
      %v2654 = vpop.f32.mrb[0].mxu0
      %v2655 = vadd.f32 %v1811, %v2654
      %v2656 = vpop.f32.mrb[0].mxu0
      %2657 = vmatprep.mubr.f32.mxu0 0.0
      %2658 = vmatmul.mubr.f32.gmra.mrb[0].mxu0 %v2052
      %v2659 = vpop.f32.mrb[0].mxu0
      %v2660 = vadd.f32 %v1811, %v2659
      %v2661 = vpop.f32.mrb[0].mxu0
      %2662 = vmatprep.mubr.f32.mxu0 0.0
      %2663 = vmatmul.mubr.f32.gmra.mrb[0].mxu0 %v2055
      %v2664 = vpop.f32.mrb[0].mxu0
      %v2665 = vadd.f32 %v1811, %v2664
      %v2666 = vpop.f32.mrb[0].mxu0
      %2667 = vmatprep.mubr.f32.mxu0 0.0
      %2668 = vmatmul.mubr.f32.gmra.mrb[0].mxu0 %v2058
      %v2669 = vpop.f32.mrb[0].mxu0
      %v2670 = vadd.f32 %v1811, %v2669
      %v2671 = vpop.f32.mrb[0].mxu0
      %2672 = vmatprep.mubr.f32.mxu0 0.0
      %2673 = vmatmul.mubr.f32.gmra.mrb[0].mxu0 %v2061
      %v2674 = vpop.f32.mrb[0].mxu0
      %v2675 = vadd.f32 %v1811, %v2674
      %v2676 = vpop.f32.mrb[0].mxu0
      %2677 = vmatprep.mubr.f32.mxu0 0.0
      %2678 = vmatmul.mubr.f32.gmra.mrb[0].mxu0 %v2064
      %v2679 = vpop.f32.mrb[0].mxu0
      %v2680 = vadd.f32 %v1811, %v2679
      %v2681 = vpop.f32.mrb[0].mxu0
      %2682 = vmatprep.mubr.f32.mxu0 0.0
      %2683 = vmatmul.mubr.f32.gmra.mrb[0].mxu0 %v2067
      %v2684 = vpop.f32.mrb[0].mxu0
      %v2685 = vadd.f32 %v1811, %v2684
      %v2686 = vpop.f32.mrb[0].mxu0
      %2687 = vmatprep.mubr.f32.mxu0 0.0
      %2688 = vmatmul.mubr.f32.gmra.mrb[0].mxu0 %v2070
      %v2689 = vpop.f32.mrb[0].mxu0
      %v2690 = vadd.f32 %v1811, %v2689
      %v2691 = vpop.f32.mrb[0].mxu0
      %2692 = vmatprep.mubr.f32.mxu0 0.0
      %2693 = vmatmul.mubr.f32.gmra.mrb[0].mxu0 %v2073
      %v2694 = vpop.f32.mrb[0].mxu0
      %v2695 = vadd.f32 %v1811, %v2694
      %v2696 = vpop.f32.mrb[0].mxu0
      %2697 = vmatprep.mubr.f32.mxu0 0.0
      %2698 = vmatmul.mubr.f32.gmra.mrb[0].mxu0 %v2076
      %v2699 = vpop.f32.mrb[0].mxu0
      %v2700 = vadd.f32 %v1811, %v2699
      %v2701 = vpop.f32.mrb[0].mxu0
      %2702 = vmatprep.mubr.f32.mxu0 0.0
      %2703 = vmatmul.mubr.f32.gmra.mrb[0].mxu0 %v2079
      %v2704 = vpop.f32.mrb[0].mxu0
      %v2705 = vadd.f32 %v1811, %v2704
      %v2706 = vpop.f32.mrb[0].mxu0
      %2707 = vmatprep.mubr.f32.mxu0 0.0
      %2708 = vmatmul.mubr.f32.gmra.mrb[0].mxu0 %v2082
      %v2709 = vpop.f32.mrb[0].mxu0
      %v2710 = vadd.f32 %v1811, %v2709
      %v2711 = vpop.f32.mrb[0].mxu0
      %2712 = vmatprep.mubr.f32.mxu0 0.0
      %2713 = vmatmul.mubr.f32.gmra.mrb[0].mxu0 %v2085
      %v2714 = vpop.f32.mrb[0].mxu0
      %v2715 = vadd.f32 %v1811, %v2714
      %v2716 = vpop.f32.mrb[0].mxu0
      %2717 = vmatprep.mubr.f32.mxu0 0.0
      %2718 = vmatmul.mubr.f32.gmra.mrb[0].mxu0 %v2088
      %v2719 = vpop.f32.mrb[0].mxu0
      %v2720 = vadd.f32 %v1811, %v2719
      %v2721 = vpop.f32.mrb[0].mxu0
      %2722 = vmatprep.mubr.f32.mxu0 0.0
      %2723 = vmatmul.mubr.f32.gmra.mrb[0].mxu0 %v2091
      %v2724 = vpop.f32.mrb[0].mxu0
      %v2725 = vadd.f32 %v1811, %v2724
      %v2726 = vpop.f32.mrb[0].mxu0
      %2727 = vmatprep.mubr.f32.mxu0 0.0
      %2728 = vmatmul.mubr.f32.gmra.mrb[0].mxu0 %v2094
      %v2729 = vpop.f32.mrb[0].mxu0
      %v2730 = vadd.f32 %v1811, %v2729
      %v2731 = vpop.f32.mrb[0].mxu0
      %2732 = vmatprep.mubr.f32.mxu0 0.0
      %2733 = vmatmul.mubr.f32.gmra.mrb[0].mxu0 %v2097
      %v2734 = vpop.f32.mrb[0].mxu0
      %v2735 = vadd.f32 %v1811, %v2734
      %v2736 = vpop.f32.mrb[0].mxu0
      %2737 = vmatprep.mubr.f32.mxu0 0.0
      %2738 = vmatmul.mubr.f32.gmra.mrb[0].mxu0 %v2100
      %v2739 = vpop.f32.mrb[0].mxu0
      %v2740 = vadd.f32 %v1811, %v2739
      %v2741 = vpop.f32.mrb[0].mxu0
      %2742 = vmatprep.mubr.f32.mxu0 0.0
      %2743 = vmatmul.mubr.f32.gmra.mrb[0].mxu0 %v2103
      %v2744 = vpop.f32.mrb[0].mxu0
      %v2745 = vadd.f32 %v1811, %v2744
      %v2746 = vpop.f32.mrb[0].mxu0
      %2747 = vmatprep.mubr.f32.mxu0 0.0
      %2748 = vmatmul.mubr.f32.gmra.mrb[0].mxu0 %v2106
      %v2749 = vpop.f32.mrb[0].mxu0
      %v2750 = vadd.f32 %v1811, %v2749
      %v2751 = vpop.f32.mrb[0].mxu0
      %2752 = vmatprep.mubr.f32.mxu0 0.0
      %2753 = vmatmul.mubr.f32.gmra.mrb[0].mxu0 %v2109
      %v2754 = vpop.f32.mrb[0].mxu0
      %v2755 = vadd.f32 %v1811, %v2754
      %v2756 = vpop.f32.mrb[0].mxu0
      %2757 = vmatprep.mubr.f32.mxu0 0.0
      %2758 = vmatmul.mubr.f32.gmra.mrb[0].mxu0 %v2112
      %v2759 = vpop.f32.mrb[0].mxu0
      %v2760 = vadd.f32 %v1811, %v2759
      %v2761 = vpop.f32.mrb[0].mxu0
      %2762 = vmatprep.mubr.f32.mxu0 0.0
      %2763 = vmatmul.mubr.f32.gmra.mrb[0].mxu0 %v2115
      %v2764 = vpop.f32.mrb[0].mxu0
      %v2765 = vadd.f32 %v1811, %v2764
      %v2766 = vpop.f32.mrb[0].mxu0
      %2767 = vmatprep.mubr.f32.mxu0 0.0
      %2768 = vmatmul.mubr.f32.gmra.mrb[0].mxu0 %v2118
      %v2769 = vpop.f32.mrb[0].mxu0
      %v2770 = vadd.f32 %v1811, %v2769
      %v2771 = vpop.f32.mrb[0].mxu0
      %2772 = vmatprep.mubr.f32.mxu0 0.0
      %2773 = vmatmul.mubr.f32.gmra.mrb[0].mxu0 %v2121
      %v2774 = vpop.f32.mrb[0].mxu0
      %v2775 = vadd.f32 %v1811, %v2774
      %v2776 = vpop.f32.mrb[0].mxu0
      %2777 = vmatprep.mubr.f32.mxu0 0.0
      %2778 = vmatmul.mubr.f32.gmra.mrb[0].mxu0 %v2124
      %v2779 = vpop.f32.mrb[0].mxu0
      %v2780 = vadd.f32 %v1811, %v2779
      %v2781 = vpop.f32.mrb[0].mxu0
      %2782 = vmatprep.mubr.f32.mxu0 0.0
      %2783 = vmatmul.mubr.f32.gmra.mrb[0].mxu0 %v2127
      %v2784 = vpop.f32.mrb[0].mxu0
      %v2785 = vadd.f32 %v1811, %v2784
      %v2786 = vpop.f32.mrb[0].mxu0
      %2787 = vmatprep.mubr.f32.mxu0 0.0
      %2788 = vmatmul.mubr.f32.gmra.mrb[0].mxu0 %v2130
      %v2789 = vpop.f32.mrb[0].mxu0
      %v2790 = vadd.f32 %v1811, %v2789
      %v2791 = vpop.f32.mrb[0].mxu0
      %2792 = vmatprep.mubr.f32.mxu0 0.0
      %2793 = vmatmul.mubr.f32.gmra.mrb[0].mxu0 %v2133
      %v2794 = vpop.f32.mrb[0].mxu0
      %v2795 = vadd.f32 %v1811, %v2794
      %v2796 = vpop.f32.mrb[0].mxu0
      %2797 = vmatprep.mubr.f32.mxu0 0.0
      %2798 = vmatmul.mubr.f32.gmra.mrb[0].mxu0 %v2136
      %v2799 = vpop.f32.mrb[0].mxu0
      %v2800 = vadd.f32 %v1811, %v2799
      %v2801 = vpop.f32.mrb[0].mxu0
      %2802 = vmatprep.mubr.f32.mxu0 0.0
      %2803 = vmatmul.mubr.f32.gmra.mrb[0].mxu0 %v2139
      %v2804 = vpop.f32.mrb[0].mxu0
      %v2805 = vadd.f32 %v1811, %v2804
      %v2806 = vpop.f32.mrb[0].mxu0
      %2807 = vmatprep.mubr.f32.mxu0 0.0
      %2808 = vmatmul.mubr.f32.gmra.mrb[0].mxu0 %v2142
      %v2809 = vpop.f32.mrb[0].mxu0
      %v2810 = vadd.f32 %v1811, %v2809
      %v2811 = vpop.f32.mrb[0].mxu0
      %2812 = vmatprep.mubr.f32.mxu0 0.0
      %2813 = vmatmul.mubr.f32.gmra.mrb[0].mxu0 %v2145
      %v2814 = vpop.f32.mrb[0].mxu0
      %v2815 = vadd.f32 %v1811, %v2814
      %v2816 = vpop.f32.mrb[0].mxu0
      %2817 = vmatprep.mubr.f32.mxu0 0.0
      %2818 = vmatmul.mubr.f32.gmra.mrb[0].mxu0 %v2148
      %v2819 = vpop.f32.mrb[0].mxu0
      %v2820 = vadd.f32 %v1811, %v2819
      %v2821 = vpop.f32.mrb[0].mxu0
      %2822 = vmatprep.mubr.f32.mxu0 0.0
      %2823 = vmatmul.mubr.f32.gmra.mrb[0].mxu0 %v2151
      %v2824 = vpop.f32.mrb[0].mxu0
      %v2825 = vadd.f32 %v1811, %v2824
      %v2826 = vpop.f32.mrb[0].mxu0
      %2827 = vmatprep.mubr.f32.mxu0 0.0
      %2828 = vmatmul.mubr.f32.gmra.mrb[0].mxu0 %v2154
      %v2829 = vpop.f32.mrb[0].mxu0
      %v2830 = vadd.f32 %v1811, %v2829
      %v2831 = vpop.f32.mrb[0].mxu0
      %2832 = vmatprep.mubr.f32.mxu0 0.0
      %2833 = vmatmul.mubr.f32.gmra.mrb[0].mxu0 %v2157
      %v2834 = vpop.f32.mrb[0].mxu0
      %v2835 = vadd.f32 %v1811, %v2834
      %v2836 = vpop.f32.mrb[0].mxu0
      %2837 = vmatprep.mubr.f32.mxu0 0.0
      %2838 = vmatmul.mubr.f32.gmra.mrb[0].mxu0 %v2160
      %v2839 = vpop.f32.mrb[0].mxu0
      %v2840 = vadd.f32 %v1811, %v2839
      %v2841 = vpop.f32.mrb[0].mxu0
      %2842 = vmatprep.mubr.f32.mxu0 0.0
      %2843 = vmatmul.mubr.f32.gmra.mrb[0].mxu0 %v2163
      %v2844 = vpop.f32.mrb[0].mxu0
      %v2845 = vadd.f32 %v1811, %v2844
      %v2846 = vpop.f32.mrb[0].mxu0
      %2847 = vmatprep.mubr.f32.mxu0 0.0
      %2848 = vmatmul.mubr.f32.gmra.mrb[0].mxu0 %v2166
      %v2849 = vpop.f32.mrb[0].mxu0
      %v2850 = vadd.f32 %v1811, %v2849
      %v2851 = vpop.f32.mrb[0].mxu0
      %2852 = vmatprep.mubr.f32.mxu0 0.0
      %2853 = vmatmul.mubr.f32.gmra.mrb[0].mxu0 %v2169
      %v2854 = vpop.f32.mrb[0].mxu0
      %v2855 = vadd.f32 %v1811, %v2854
      %v2856 = vpop.f32.mrb[0].mxu0
      %2857 = vmatprep.mubr.f32.mxu0 0.0
      %2858 = vmatmul.mubr.f32.gmra.mrb[0].mxu0 %v2172
      %v2859 = vpop.f32.mrb[0].mxu0
      %v2860 = vadd.f32 %v1811, %v2859
      %v2861 = vpop.f32.mrb[0].mxu0
      %2862 = vmatprep.mubr.f32.mxu0 0.0
      %2863 = vmatmul.mubr.f32.gmra.mrb[0].mxu0 %v2175
      %v2864 = vpop.f32.mrb[0].mxu0
      %v2865 = vadd.f32 %v1811, %v2864
      %v2866 = vpop.f32.mrb[0].mxu0
      %2867 = vmatprep.mubr.f32.mxu0 0.0
      %2868 = vmatmul.mubr.f32.gmra.mrb[0].mxu0 %v2178
      %v2869 = vpop.f32.mrb[0].mxu0
      %v2870 = vadd.f32 %v1811, %v2869
      %v2871 = vpop.f32.mrb[0].mxu0
      %2872 = vmatprep.mubr.f32.mxu0 0.0
      %2873 = vmatmul.mubr.f32.gmra.mrb[0].mxu0 %v2181
      %v2874 = vpop.f32.mrb[0].mxu0
      %v2875 = vadd.f32 %v1811, %v2874
      %v2876 = vpop.f32.mrb[0].mxu0
      %2877 = vmatprep.mubr.f32.mxu0 0.0
      %2878 = vmatmul.mubr.f32.gmra.mrb[0].mxu0 %v2184
      %v2879 = vpop.f32.mrb[0].mxu0
      %v2880 = vadd.f32 %v1811, %v2879
      %v2881 = vpop.f32.mrb[0].mxu0
      %2882 = vmatprep.mubr.f32.mxu0 0.0
      %2883 = vmatmul.mubr.f32.gmra.mrb[0].mxu0 %v2187
      %v2884 = vpop.f32.mrb[0].mxu0
      %v2885 = vadd.f32 %v1811, %v2884
      %v2886 = vpop.f32.mrb[0].mxu0
      %2887 = vmatprep.mubr.f32.mxu0 0.0
      %2888 = vmatmul.mubr.f32.gmra.mrb[0].mxu0 %v2190
      %v2889 = vpop.f32.mrb[0].mxu0
      %v2890 = vadd.f32 %v1811, %v2889
      %v2891 = vpop.f32.mrb[0].mxu0
      %2892 = vmatprep.mubr.f32.mxu0 0.0
      %2893 = vmatmul.mubr.f32.gmra.mrb[0].mxu0 %v2193
      %v2894 = vpop.f32.mrb[0].mxu0
      %v2895 = vadd.f32 %v1811, %v2894
      %v2896 = vpop.f32.mrb[0].mxu0
      %2897 = vmatprep.mubr.f32.mxu0 0.0
      %2898 = vmatmul.mubr.f32.gmra.mrb[0].mxu0 %v2196
      %v2899 = vpop.f32.mrb[0].mxu0
      %v2900 = vadd.f32 %v1811, %v2899
      %v2901 = vpop.f32.mrb[0].mxu0
      %2902 = vdwg.mxu0
      %3031 = vrot.lane.b32.xlu0 %v2265, 120
      %v3032 = vpop.permute.xlu0 %3031
      %3033 = vrot.lane.b32.xlu0 %v2270, 120
      %v3034 = vpop.permute.xlu0 %3033
      %3035 = vrot.lane.b32.xlu0 %v2275, 120
      %v3036 = vpop.permute.xlu0 %3035
      %3037 = vrot.lane.b32.xlu0 %v2280, 120
      %v3038 = vpop.permute.xlu0 %3037
      %3039 = vrot.lane.b32.xlu0 %v2285, 120
      %v3040 = vpop.permute.xlu0 %3039
      %3041 = vrot.lane.b32.xlu0 %v2290, 120
      %v3042 = vpop.permute.xlu0 %3041
      %3043 = vrot.lane.b32.xlu0 %v2295, 120
      %v3044 = vpop.permute.xlu0 %3043
      %3045 = vrot.lane.b32.xlu0 %v2300, 120
      %v3046 = vpop.permute.xlu0 %3045
      %3047 = vrot.lane.b32.xlu0 %v2305, 120
      %v3048 = vpop.permute.xlu0 %3047
      %3049 = vrot.lane.b32.xlu0 %v2310, 120
      %v3050 = vpop.permute.xlu0 %3049
      %3051 = vrot.lane.b32.xlu0 %v2315, 120
      %v3052 = vpop.permute.xlu0 %3051
      %3053 = vrot.lane.b32.xlu0 %v2320, 120
      %v3054 = vpop.permute.xlu0 %3053
      %3055 = vrot.lane.b32.xlu0 %v2325, 120
      %v3056 = vpop.permute.xlu0 %3055
      %3057 = vrot.lane.b32.xlu0 %v2330, 120
      %v3058 = vpop.permute.xlu0 %3057
      %3059 = vrot.lane.b32.xlu0 %v2335, 120
      %v3060 = vpop.permute.xlu0 %3059
      %3061 = vrot.lane.b32.xlu0 %v2340, 120
      %v3062 = vpop.permute.xlu0 %3061
      %3063 = vrot.lane.b32.xlu0 %v2345, 120
      %v3064 = vpop.permute.xlu0 %3063
      %3065 = vrot.lane.b32.xlu0 %v2350, 120
      %v3066 = vpop.permute.xlu0 %3065
      %3067 = vrot.lane.b32.xlu0 %v2355, 120
      %v3068 = vpop.permute.xlu0 %3067
      %3069 = vrot.lane.b32.xlu0 %v2360, 120
      %v3070 = vpop.permute.xlu0 %3069
      %3071 = vrot.lane.b32.xlu0 %v2365, 120
      %v3072 = vpop.permute.xlu0 %3071
      %3073 = vrot.lane.b32.xlu0 %v2370, 120
      %v3074 = vpop.permute.xlu0 %3073
      %3075 = vrot.lane.b32.xlu0 %v2375, 120
      %v3076 = vpop.permute.xlu0 %3075
      %3077 = vrot.lane.b32.xlu0 %v2380, 120
      %v3078 = vpop.permute.xlu0 %3077
      %3079 = vrot.lane.b32.xlu0 %v2385, 120
      %v3080 = vpop.permute.xlu0 %3079
      %3081 = vrot.lane.b32.xlu0 %v2390, 120
      %v3082 = vpop.permute.xlu0 %3081
      %3083 = vrot.lane.b32.xlu0 %v2395, 120
      %v3084 = vpop.permute.xlu0 %3083
      %3085 = vrot.lane.b32.xlu0 %v2400, 120
      %v3086 = vpop.permute.xlu0 %3085
      %3087 = vrot.lane.b32.xlu0 %v2405, 120
      %v3088 = vpop.permute.xlu0 %3087
      %3089 = vrot.lane.b32.xlu0 %v2410, 120
      %v3090 = vpop.permute.xlu0 %3089
      %3091 = vrot.lane.b32.xlu0 %v2415, 120
      %v3092 = vpop.permute.xlu0 %3091
      %3093 = vrot.lane.b32.xlu0 %v2420, 120
      %v3094 = vpop.permute.xlu0 %3093
      %3095 = vrot.lane.b32.xlu0 %v2425, 120
      %v3096 = vpop.permute.xlu0 %3095
      %3097 = vrot.lane.b32.xlu0 %v2430, 120
      %v3098 = vpop.permute.xlu0 %3097
      %3099 = vrot.lane.b32.xlu0 %v2435, 120
      %v3100 = vpop.permute.xlu0 %3099
      %3101 = vrot.lane.b32.xlu0 %v2440, 120
      %v3102 = vpop.permute.xlu0 %3101
      %3103 = vrot.lane.b32.xlu0 %v2445, 120
      %v3104 = vpop.permute.xlu0 %3103
      %3105 = vrot.lane.b32.xlu0 %v2450, 120
      %v3106 = vpop.permute.xlu0 %3105
      %3107 = vrot.lane.b32.xlu0 %v2455, 120
      %v3108 = vpop.permute.xlu0 %3107
      %3109 = vrot.lane.b32.xlu0 %v2460, 120
      %v3110 = vpop.permute.xlu0 %3109
      %3111 = vrot.lane.b32.xlu0 %v2465, 120
      %v3112 = vpop.permute.xlu0 %3111
      %3113 = vrot.lane.b32.xlu0 %v2470, 120
      %v3114 = vpop.permute.xlu0 %3113
      %3115 = vrot.lane.b32.xlu0 %v2475, 120
      %v3116 = vpop.permute.xlu0 %3115
      %3117 = vrot.lane.b32.xlu0 %v2480, 120
      %v3118 = vpop.permute.xlu0 %3117
      %3119 = vrot.lane.b32.xlu0 %v2485, 120
      %v3120 = vpop.permute.xlu0 %3119
      %3121 = vrot.lane.b32.xlu0 %v2490, 120
      %v3122 = vpop.permute.xlu0 %3121
      %3123 = vrot.lane.b32.xlu0 %v2495, 120
      %v3124 = vpop.permute.xlu0 %3123
      %3125 = vrot.lane.b32.xlu0 %v2500, 120
      %v3126 = vpop.permute.xlu0 %3125
      %3127 = vrot.lane.b32.xlu0 %v2505, 120
      %v3128 = vpop.permute.xlu0 %3127
      %3129 = vrot.lane.b32.xlu0 %v2510, 120
      %v3130 = vpop.permute.xlu0 %3129
      %3131 = vrot.lane.b32.xlu0 %v2515, 120
      %v3132 = vpop.permute.xlu0 %3131
      %3133 = vrot.lane.b32.xlu0 %v2520, 120
      %v3134 = vpop.permute.xlu0 %3133
      %3135 = vrot.lane.b32.xlu0 %v2525, 120
      %v3136 = vpop.permute.xlu0 %3135
      %3137 = vrot.lane.b32.xlu0 %v2530, 120
      %v3138 = vpop.permute.xlu0 %3137
      %3139 = vrot.lane.b32.xlu0 %v2535, 120
      %v3140 = vpop.permute.xlu0 %3139
      %3141 = vrot.lane.b32.xlu0 %v2540, 120
      %v3142 = vpop.permute.xlu0 %3141
      %3143 = vrot.lane.b32.xlu0 %v2545, 120
      %v3144 = vpop.permute.xlu0 %3143
      %3145 = vrot.lane.b32.xlu0 %v2550, 120
      %v3146 = vpop.permute.xlu0 %3145
      %3147 = vrot.lane.b32.xlu0 %v2555, 120
      %v3148 = vpop.permute.xlu0 %3147
      %3149 = vrot.lane.b32.xlu0 %v2560, 120
      %v3150 = vpop.permute.xlu0 %3149
      %3151 = vrot.lane.b32.xlu0 %v2565, 120
      %v3152 = vpop.permute.xlu0 %3151
      %3153 = vrot.lane.b32.xlu0 %v2570, 120
      %v3154 = vpop.permute.xlu0 %3153
      %3155 = vrot.lane.b32.xlu0 %v2575, 120
      %v3156 = vpop.permute.xlu0 %3155
      %3157 = vrot.lane.b32.xlu0 %v2580, 120
      %v3158 = vpop.permute.xlu0 %3157
      %3159 = vrot.lane.b32.xlu0 %v2585, 120
      %v3160 = vpop.permute.xlu0 %3159
      %3161 = vrot.lane.b32.xlu0 %v2590, 120
      %v3162 = vpop.permute.xlu0 %3161
      %3163 = vrot.lane.b32.xlu0 %v2595, 120
      %v3164 = vpop.permute.xlu0 %3163
      %3165 = vrot.lane.b32.xlu0 %v2600, 120
      %v3166 = vpop.permute.xlu0 %3165
      %3167 = vrot.lane.b32.xlu0 %v2605, 120
      %v3168 = vpop.permute.xlu0 %3167
      %3169 = vrot.lane.b32.xlu0 %v2610, 120
      %v3170 = vpop.permute.xlu0 %3169
      %3171 = vrot.lane.b32.xlu0 %v2615, 120
      %v3172 = vpop.permute.xlu0 %3171
      %3173 = vrot.lane.b32.xlu0 %v2620, 120
      %v3174 = vpop.permute.xlu0 %3173
      %3175 = vrot.lane.b32.xlu0 %v2625, 120
      %v3176 = vpop.permute.xlu0 %3175
      %3177 = vrot.lane.b32.xlu0 %v2630, 120
      %v3178 = vpop.permute.xlu0 %3177
      %3179 = vrot.lane.b32.xlu0 %v2635, 120
      %v3180 = vpop.permute.xlu0 %3179
      %3181 = vrot.lane.b32.xlu0 %v2640, 120
      %v3182 = vpop.permute.xlu0 %3181
      %3183 = vrot.lane.b32.xlu0 %v2645, 120
      %v3184 = vpop.permute.xlu0 %3183
      %3185 = vrot.lane.b32.xlu0 %v2650, 120
      %v3186 = vpop.permute.xlu0 %3185
      %3187 = vrot.lane.b32.xlu0 %v2655, 120
      %v3188 = vpop.permute.xlu0 %3187
      %3189 = vrot.lane.b32.xlu0 %v2660, 120
      %v3190 = vpop.permute.xlu0 %3189
      %3191 = vrot.lane.b32.xlu0 %v2665, 120
      %v3192 = vpop.permute.xlu0 %3191
      %3193 = vrot.lane.b32.xlu0 %v2670, 120
      %v3194 = vpop.permute.xlu0 %3193
      %3195 = vrot.lane.b32.xlu0 %v2675, 120
      %v3196 = vpop.permute.xlu0 %3195
      %3197 = vrot.lane.b32.xlu0 %v2680, 120
      %v3198 = vpop.permute.xlu0 %3197
      %3199 = vrot.lane.b32.xlu0 %v2685, 120
      %v3200 = vpop.permute.xlu0 %3199
      %3201 = vrot.lane.b32.xlu0 %v2690, 120
      %v3202 = vpop.permute.xlu0 %3201
      %3203 = vrot.lane.b32.xlu0 %v2695, 120
      %v3204 = vpop.permute.xlu0 %3203
      %3205 = vrot.lane.b32.xlu0 %v2700, 120
      %v3206 = vpop.permute.xlu0 %3205
      %3207 = vrot.lane.b32.xlu0 %v2705, 120
      %v3208 = vpop.permute.xlu0 %3207
      %3209 = vrot.lane.b32.xlu0 %v2710, 120
      %v3210 = vpop.permute.xlu0 %3209
      %3211 = vrot.lane.b32.xlu0 %v2715, 120
      %v3212 = vpop.permute.xlu0 %3211
      %3213 = vrot.lane.b32.xlu0 %v2720, 120
      %v3214 = vpop.permute.xlu0 %3213
      %3215 = vrot.lane.b32.xlu0 %v2725, 120
      %v3216 = vpop.permute.xlu0 %3215
      %3217 = vrot.lane.b32.xlu0 %v2730, 120
      %v3218 = vpop.permute.xlu0 %3217
      %3219 = vrot.lane.b32.xlu0 %v2735, 120
      %v3220 = vpop.permute.xlu0 %3219
      %3221 = vrot.lane.b32.xlu0 %v2740, 120
      %v3222 = vpop.permute.xlu0 %3221
      %3223 = vrot.lane.b32.xlu0 %v2745, 120
      %v3224 = vpop.permute.xlu0 %3223
      %3225 = vrot.lane.b32.xlu0 %v2750, 120
      %v3226 = vpop.permute.xlu0 %3225
      %3227 = vrot.lane.b32.xlu0 %v2755, 120
      %v3228 = vpop.permute.xlu0 %3227
      %3229 = vrot.lane.b32.xlu0 %v2760, 120
      %v3230 = vpop.permute.xlu0 %3229
      %3231 = vrot.lane.b32.xlu0 %v2765, 120
      %v3232 = vpop.permute.xlu0 %3231
      %3233 = vrot.lane.b32.xlu0 %v2770, 120
      %v3234 = vpop.permute.xlu0 %3233
      %3235 = vrot.lane.b32.xlu0 %v2775, 120
      %v3236 = vpop.permute.xlu0 %3235
      %3237 = vrot.lane.b32.xlu0 %v2780, 120
      %v3238 = vpop.permute.xlu0 %3237
      %3239 = vrot.lane.b32.xlu0 %v2785, 120
      %v3240 = vpop.permute.xlu0 %3239
      %3241 = vrot.lane.b32.xlu0 %v2790, 120
      %v3242 = vpop.permute.xlu0 %3241
      %3243 = vrot.lane.b32.xlu0 %v2795, 120
      %v3244 = vpop.permute.xlu0 %3243
      %3245 = vrot.lane.b32.xlu0 %v2800, 120
      %v3246 = vpop.permute.xlu0 %3245
      %3247 = vrot.lane.b32.xlu0 %v2805, 120
      %v3248 = vpop.permute.xlu0 %3247
      %3249 = vrot.lane.b32.xlu0 %v2810, 120
      %v3250 = vpop.permute.xlu0 %3249
      %3251 = vrot.lane.b32.xlu0 %v2815, 120
      %v3252 = vpop.permute.xlu0 %3251
      %3253 = vrot.lane.b32.xlu0 %v2820, 120
      %v3254 = vpop.permute.xlu0 %3253
      %3255 = vrot.lane.b32.xlu0 %v2825, 120
      %v3256 = vpop.permute.xlu0 %3255
      %3257 = vrot.lane.b32.xlu0 %v2830, 120
      %v3258 = vpop.permute.xlu0 %3257
      %3259 = vrot.lane.b32.xlu0 %v2835, 120
      %v3260 = vpop.permute.xlu0 %3259
      %3261 = vrot.lane.b32.xlu0 %v2840, 120
      %v3262 = vpop.permute.xlu0 %3261
      %3263 = vrot.lane.b32.xlu0 %v2845, 120
      %v3264 = vpop.permute.xlu0 %3263
      %3265 = vrot.lane.b32.xlu0 %v2850, 120
      %v3266 = vpop.permute.xlu0 %3265
      %3267 = vrot.lane.b32.xlu0 %v2855, 120
      %v3268 = vpop.permute.xlu0 %3267
      %3269 = vrot.lane.b32.xlu0 %v2860, 120
      %v3270 = vpop.permute.xlu0 %3269
      %3271 = vrot.lane.b32.xlu0 %v2865, 120
      %v3272 = vpop.permute.xlu0 %3271
      %3273 = vrot.lane.b32.xlu0 %v2870, 120
      %v3274 = vpop.permute.xlu0 %3273
      %3275 = vrot.lane.b32.xlu0 %v2875, 120
      %v3276 = vpop.permute.xlu0 %3275
      %3277 = vrot.lane.b32.xlu0 %v2880, 120
      %v3278 = vpop.permute.xlu0 %3277
      %3279 = vrot.lane.b32.xlu0 %v2885, 120
      %v3280 = vpop.permute.xlu0 %3279
      %3281 = vrot.lane.b32.xlu0 %v2890, 120
      %v3282 = vpop.permute.xlu0 %3281
      %3283 = vrot.lane.b32.xlu0 %v2895, 120
      %v3284 = vpop.permute.xlu0 %3283
      %3285 = vrot.lane.b32.xlu0 %v2900, 120
      %v3286 = vpop.permute.xlu0 %3285
      %v3415 = vsub.f32 %v315, %v3032
      %v3416 = vsub.f32 %v316, %v3034
      %v3417 = vsub.f32 %v317, %v3036
      %v3418 = vsub.f32 %v318, %v3038
      %v3419 = vsub.f32 %v319, %v3040
      %v3420 = vsub.f32 %v320, %v3042
      %v3421 = vsub.f32 %v321, %v3044
      %v3422 = vsub.f32 %v322, %v3046
      %v3423 = vsub.f32 %v323, %v3048
      %v3424 = vsub.f32 %v324, %v3050
      %v3425 = vsub.f32 %v325, %v3052
      %v3426 = vsub.f32 %v326, %v3054
      %v3427 = vsub.f32 %v327, %v3056
      %v3428 = vsub.f32 %v328, %v3058
      %v3429 = vsub.f32 %v329, %v3060
      %v3430 = vsub.f32 %v330, %v3062
      %v3431 = vsub.f32 %v331, %v3064
      %v3432 = vsub.f32 %v332, %v3066
      %v3433 = vsub.f32 %v333, %v3068
      %v3434 = vsub.f32 %v334, %v3070
      %v3435 = vsub.f32 %v335, %v3072
      %v3436 = vsub.f32 %v336, %v3074
      %v3437 = vsub.f32 %v337, %v3076
      %v3438 = vsub.f32 %v338, %v3078
      %v3439 = vsub.f32 %v339, %v3080
      %v3440 = vsub.f32 %v340, %v3082
      %v3441 = vsub.f32 %v341, %v3084
      %v3442 = vsub.f32 %v342, %v3086
      %v3443 = vsub.f32 %v343, %v3088
      %v3444 = vsub.f32 %v344, %v3090
      %v3445 = vsub.f32 %v345, %v3092
      %v3446 = vsub.f32 %v346, %v3094
      %v3447 = vsub.f32 %v347, %v3096
      %v3448 = vsub.f32 %v348, %v3098
      %v3449 = vsub.f32 %v349, %v3100
      %v3450 = vsub.f32 %v350, %v3102
      %v3451 = vsub.f32 %v351, %v3104
      %v3452 = vsub.f32 %v352, %v3106
      %v3453 = vsub.f32 %v353, %v3108
      %v3454 = vsub.f32 %v354, %v3110
      %v3455 = vsub.f32 %v355, %v3112
      %v3456 = vsub.f32 %v356, %v3114
      %v3457 = vsub.f32 %v357, %v3116
      %v3458 = vsub.f32 %v358, %v3118
      %v3459 = vsub.f32 %v359, %v3120
      %v3460 = vsub.f32 %v360, %v3122
      %v3461 = vsub.f32 %v361, %v3124
      %v3462 = vsub.f32 %v362, %v3126
      %v3463 = vsub.f32 %v363, %v3128
      %v3464 = vsub.f32 %v364, %v3130
      %v3465 = vsub.f32 %v365, %v3132
      %v3466 = vsub.f32 %v366, %v3134
      %v3467 = vsub.f32 %v367, %v3136
      %v3468 = vsub.f32 %v368, %v3138
      %v3469 = vsub.f32 %v369, %v3140
      %v3470 = vsub.f32 %v370, %v3142
      %v3471 = vsub.f32 %v371, %v3144
      %v3472 = vsub.f32 %v372, %v3146
      %v3473 = vsub.f32 %v373, %v3148
      %v3474 = vsub.f32 %v374, %v3150
      %v3475 = vsub.f32 %v375, %v3152
      %v3476 = vsub.f32 %v376, %v3154
      %v3477 = vsub.f32 %v377, %v3156
      %v3478 = vsub.f32 %v378, %v3158
      %v3479 = vsub.f32 %v379, %v3160
      %v3480 = vsub.f32 %v380, %v3162
      %v3481 = vsub.f32 %v381, %v3164
      %v3482 = vsub.f32 %v382, %v3166
      %v3483 = vsub.f32 %v383, %v3168
      %v3484 = vsub.f32 %v384, %v3170
      %v3485 = vsub.f32 %v385, %v3172
      %v3486 = vsub.f32 %v386, %v3174
      %v3487 = vsub.f32 %v387, %v3176
      %v3488 = vsub.f32 %v388, %v3178
      %v3489 = vsub.f32 %v389, %v3180
      %v3490 = vsub.f32 %v390, %v3182
      %v3491 = vsub.f32 %v391, %v3184
      %v3492 = vsub.f32 %v392, %v3186
      %v3493 = vsub.f32 %v393, %v3188
      %v3494 = vsub.f32 %v394, %v3190
      %v3495 = vsub.f32 %v395, %v3192
      %v3496 = vsub.f32 %v396, %v3194
      %v3497 = vsub.f32 %v397, %v3196
      %v3498 = vsub.f32 %v398, %v3198
      %v3499 = vsub.f32 %v399, %v3200
      %v3500 = vsub.f32 %v400, %v3202
      %v3501 = vsub.f32 %v401, %v3204
      %v3502 = vsub.f32 %v402, %v3206
      %v3503 = vsub.f32 %v403, %v3208
      %v3504 = vsub.f32 %v404, %v3210
      %v3505 = vsub.f32 %v405, %v3212
      %v3506 = vsub.f32 %v406, %v3214
      %v3507 = vsub.f32 %v407, %v3216
      %v3508 = vsub.f32 %v408, %v3218
      %v3509 = vsub.f32 %v409, %v3220
      %v3510 = vsub.f32 %v410, %v3222
      %v3511 = vsub.f32 %v411, %v3224
      %v3512 = vsub.f32 %v412, %v3226
      %v3513 = vsub.f32 %v413, %v3228
      %v3514 = vsub.f32 %v414, %v3230
      %v3515 = vsub.f32 %v415, %v3232
      %v3516 = vsub.f32 %v416, %v3234
      %v3517 = vsub.f32 %v417, %v3236
      %v3518 = vsub.f32 %v418, %v3238
      %v3519 = vsub.f32 %v419, %v3240
      %v3520 = vsub.f32 %v420, %v3242
      %v3521 = vsub.f32 %v421, %v3244
      %v3522 = vsub.f32 %v422, %v3246
      %v3523 = vsub.f32 %v423, %v3248
      %v3524 = vsub.f32 %v424, %v3250
      %v3525 = vsub.f32 %v425, %v3252
      %v3526 = vsub.f32 %v426, %v3254
      %v3527 = vsub.f32 %v427, %v3256
      %v3528 = vsub.f32 %v428, %v3258
      %v3529 = vsub.f32 %v429, %v3260
      %v3530 = vsub.f32 %v430, %v3262
      %v3531 = vsub.f32 %v431, %v3264
      %v3532 = vsub.f32 %v432, %v3266
      %v3533 = vsub.f32 %v433, %v3268
      %v3534 = vsub.f32 %v434, %v3270
      %v3535 = vsub.f32 %v435, %v3272
      %v3536 = vsub.f32 %v436, %v3274
      %v3537 = vsub.f32 %v437, %v3276
      %v3538 = vsub.f32 %v438, %v3278
      %v3539 = vsub.f32 %v439, %v3280
      %v3540 = vsub.f32 %v440, %v3282
      %v3541 = vsub.f32 %v441, %v3284
      %v3542 = vsub.f32 %v442, %v3286
      %v3543 = vmul.f32 %v2265, 1.442695
      %v3544 = vpow.pop %v3543
      %v3545 = vmul.f32 %v2270, 1.442695
      %v3546 = vpow.pop %v3545
      %v3547 = vmul.f32 %v2275, 1.442695
      %v3548 = vpow.pop %v3547
      %v3549 = vmul.f32 %v2280, 1.442695
      %v3550 = vpow.pop %v3549
      %v3551 = vmul.f32 %v2285, 1.442695
      %v3552 = vpow.pop %v3551
      %v3553 = vmul.f32 %v2290, 1.442695
      %v3554 = vpow.pop %v3553
      %v3555 = vmul.f32 %v2295, 1.442695
      %v3556 = vpow.pop %v3555
      %v3557 = vmul.f32 %v2300, 1.442695
      %v3558 = vpow.pop %v3557
      %v3559 = vmul.f32 %v2305, 1.442695
      %v3560 = vpow.pop %v3559
      %v3561 = vmul.f32 %v2310, 1.442695
      %v3562 = vpow.pop %v3561
      %v3563 = vmul.f32 %v2315, 1.442695
      %v3564 = vpow.pop %v3563
      %v3565 = vmul.f32 %v2320, 1.442695
      %v3566 = vpow.pop %v3565
      %v3567 = vmul.f32 %v2325, 1.442695
      %v3568 = vpow.pop %v3567
      %v3569 = vmul.f32 %v2330, 1.442695
      %v3570 = vpow.pop %v3569
      %v3571 = vmul.f32 %v2335, 1.442695
      %v3572 = vpow.pop %v3571
      %v3573 = vmul.f32 %v2340, 1.442695
      %v3574 = vpow.pop %v3573
      %v3575 = vmul.f32 %v2345, 1.442695
      %v3576 = vpow.pop %v3575
      %v3577 = vmul.f32 %v2350, 1.442695
      %v3578 = vpow.pop %v3577
      %v3579 = vmul.f32 %v2355, 1.442695
      %v3580 = vpow.pop %v3579
      %v3581 = vmul.f32 %v2360, 1.442695
      %v3582 = vpow.pop %v3581
      %v3583 = vmul.f32 %v2365, 1.442695
      %v3584 = vpow.pop %v3583
      %v3585 = vmul.f32 %v2370, 1.442695
      %v3586 = vpow.pop %v3585
      %v3587 = vmul.f32 %v2375, 1.442695
      %v3588 = vpow.pop %v3587
      %v3589 = vmul.f32 %v2380, 1.442695
      %v3590 = vpow.pop %v3589
      %v3591 = vmul.f32 %v2385, 1.442695
      %v3592 = vpow.pop %v3591
      %v3593 = vmul.f32 %v2390, 1.442695
      %v3594 = vpow.pop %v3593
      %v3595 = vmul.f32 %v2395, 1.442695
      %v3596 = vpow.pop %v3595
      %v3597 = vmul.f32 %v2400, 1.442695
      %v3598 = vpow.pop %v3597
      %v3599 = vmul.f32 %v2405, 1.442695
      %v3600 = vpow.pop %v3599
      %v3601 = vmul.f32 %v2410, 1.442695
      %v3602 = vpow.pop %v3601
      %v3603 = vmul.f32 %v2415, 1.442695
      %v3604 = vpow.pop %v3603
      %v3605 = vmul.f32 %v2420, 1.442695
      %v3606 = vpow.pop %v3605
      %v3607 = vmul.f32 %v2425, 1.442695
      %v3608 = vpow.pop %v3607
      %v3609 = vmul.f32 %v2430, 1.442695
      %v3610 = vpow.pop %v3609
      %v3611 = vmul.f32 %v2435, 1.442695
      %v3612 = vpow.pop %v3611
      %v3613 = vmul.f32 %v2440, 1.442695
      %v3614 = vpow.pop %v3613
      %v3615 = vmul.f32 %v2445, 1.442695
      %v3616 = vpow.pop %v3615
      %v3617 = vmul.f32 %v2450, 1.442695
      %v3618 = vpow.pop %v3617
      %v3619 = vmul.f32 %v2455, 1.442695
      %v3620 = vpow.pop %v3619
      %v3621 = vmul.f32 %v2460, 1.442695
      %v3622 = vpow.pop %v3621
      %v3623 = vmul.f32 %v2465, 1.442695
      %v3624 = vpow.pop %v3623
      %v3625 = vmul.f32 %v2470, 1.442695
      %v3626 = vpow.pop %v3625
      %v3627 = vmul.f32 %v2475, 1.442695
      %v3628 = vpow.pop %v3627
      %v3629 = vmul.f32 %v2480, 1.442695
      %v3630 = vpow.pop %v3629
      %v3631 = vmul.f32 %v2485, 1.442695
      %v3632 = vpow.pop %v3631
      %v3633 = vmul.f32 %v2490, 1.442695
      %v3634 = vpow.pop %v3633
      %v3635 = vmul.f32 %v2495, 1.442695
      %v3636 = vpow.pop %v3635
      %v3637 = vmul.f32 %v2500, 1.442695
      %v3638 = vpow.pop %v3637
      %v3639 = vmul.f32 %v2505, 1.442695
      %v3640 = vpow.pop %v3639
      %v3641 = vmul.f32 %v2510, 1.442695
      %v3642 = vpow.pop %v3641
      %v3643 = vmul.f32 %v2515, 1.442695
      %v3644 = vpow.pop %v3643
      %v3645 = vmul.f32 %v2520, 1.442695
      %v3646 = vpow.pop %v3645
      %v3647 = vmul.f32 %v2525, 1.442695
      %v3648 = vpow.pop %v3647
      %v3649 = vmul.f32 %v2530, 1.442695
      %v3650 = vpow.pop %v3649
      %v3651 = vmul.f32 %v2535, 1.442695
      %v3652 = vpow.pop %v3651
      %v3653 = vmul.f32 %v2540, 1.442695
      %v3654 = vpow.pop %v3653
      %v3655 = vmul.f32 %v2545, 1.442695
      %v3656 = vpow.pop %v3655
      %v3657 = vmul.f32 %v2550, 1.442695
      %v3658 = vpow.pop %v3657
      %v3659 = vmul.f32 %v2555, 1.442695
      %v3660 = vpow.pop %v3659
      %v3661 = vmul.f32 %v2560, 1.442695
      %v3662 = vpow.pop %v3661
      %v3663 = vmul.f32 %v2565, 1.442695
      %v3664 = vpow.pop %v3663
      %v3665 = vmul.f32 %v2570, 1.442695
      %v3666 = vpow.pop %v3665
      %v3667 = vmul.f32 %v2575, 1.442695
      %v3668 = vpow.pop %v3667
      %v3669 = vmul.f32 %v2580, 1.442695
      %v3670 = vpow.pop %v3669
      %v3671 = vmul.f32 %v2585, 1.442695
      %v3672 = vpow.pop %v3671
      %v3673 = vmul.f32 %v2590, 1.442695
      %v3674 = vpow.pop %v3673
      %v3675 = vmul.f32 %v2595, 1.442695
      %v3676 = vpow.pop %v3675
      %v3677 = vmul.f32 %v2600, 1.442695
      %v3678 = vpow.pop %v3677
      %v3679 = vmul.f32 %v2605, 1.442695
      %v3680 = vpow.pop %v3679
      %v3681 = vmul.f32 %v2610, 1.442695
      %v3682 = vpow.pop %v3681
      %v3683 = vmul.f32 %v2615, 1.442695
      %v3684 = vpow.pop %v3683
      %v3685 = vmul.f32 %v2620, 1.442695
      %v3686 = vpow.pop %v3685
      %v3687 = vmul.f32 %v2625, 1.442695
      %v3688 = vpow.pop %v3687
      %v3689 = vmul.f32 %v2630, 1.442695
      %v3690 = vpow.pop %v3689
      %v3691 = vmul.f32 %v2635, 1.442695
      %v3692 = vpow.pop %v3691
      %v3693 = vmul.f32 %v2640, 1.442695
      %v3694 = vpow.pop %v3693
      %v3695 = vmul.f32 %v2645, 1.442695
      %v3696 = vpow.pop %v3695
      %v3697 = vmul.f32 %v2650, 1.442695
      %v3698 = vpow.pop %v3697
      %v3699 = vmul.f32 %v2655, 1.442695
      %v3700 = vpow.pop %v3699
      %v3701 = vmul.f32 %v2660, 1.442695
      %v3702 = vpow.pop %v3701
      %v3703 = vmul.f32 %v2665, 1.442695
      %v3704 = vpow.pop %v3703
      %v3705 = vmul.f32 %v2670, 1.442695
      %v3706 = vpow.pop %v3705
      %v3707 = vmul.f32 %v2675, 1.442695
      %v3708 = vpow.pop %v3707
      %v3709 = vmul.f32 %v2680, 1.442695
      %v3710 = vpow.pop %v3709
      %v3711 = vmul.f32 %v2685, 1.442695
      %v3712 = vpow.pop %v3711
      %v3713 = vmul.f32 %v2690, 1.442695
      %v3714 = vpow.pop %v3713
      %v3715 = vmul.f32 %v2695, 1.442695
      %v3716 = vpow.pop %v3715
      %v3717 = vmul.f32 %v2700, 1.442695
      %v3718 = vpow.pop %v3717
      %v3719 = vmul.f32 %v2705, 1.442695
      %v3720 = vpow.pop %v3719
      %v3721 = vmul.f32 %v2710, 1.442695
      %v3722 = vpow.pop %v3721
      %v3723 = vmul.f32 %v2715, 1.442695
      %v3724 = vpow.pop %v3723
      %v3725 = vmul.f32 %v2720, 1.442695
      %v3726 = vpow.pop %v3725
      %v3727 = vmul.f32 %v2725, 1.442695
      %v3728 = vpow.pop %v3727
      %v3729 = vmul.f32 %v2730, 1.442695
      %v3730 = vpow.pop %v3729
      %v3731 = vmul.f32 %v2735, 1.442695
      %v3732 = vpow.pop %v3731
      %v3733 = vmul.f32 %v2740, 1.442695
      %v3734 = vpow.pop %v3733
      %v3735 = vmul.f32 %v2745, 1.442695
      %v3736 = vpow.pop %v3735
      %v3737 = vmul.f32 %v2750, 1.442695
      %v3738 = vpow.pop %v3737
      %v3739 = vmul.f32 %v2755, 1.442695
      %v3740 = vpow.pop %v3739
      %v3741 = vmul.f32 %v2760, 1.442695
      %v3742 = vpow.pop %v3741
      %v3743 = vmul.f32 %v2765, 1.442695
      %v3744 = vpow.pop %v3743
      %v3745 = vmul.f32 %v2770, 1.442695
      %v3746 = vpow.pop %v3745
      %v3747 = vmul.f32 %v2775, 1.442695
      %v3748 = vpow.pop %v3747
      %v3749 = vmul.f32 %v2780, 1.442695
      %v3750 = vpow.pop %v3749
      %v3751 = vmul.f32 %v2785, 1.442695
      %v3752 = vpow.pop %v3751
      %v3753 = vmul.f32 %v2790, 1.442695
      %v3754 = vpow.pop %v3753
      %v3755 = vmul.f32 %v2795, 1.442695
      %v3756 = vpow.pop %v3755
      %v3757 = vmul.f32 %v2800, 1.442695
      %v3758 = vpow.pop %v3757
      %v3759 = vmul.f32 %v2805, 1.442695
      %v3760 = vpow.pop %v3759
      %v3761 = vmul.f32 %v2810, 1.442695
      %v3762 = vpow.pop %v3761
      %v3763 = vmul.f32 %v2815, 1.442695
      %v3764 = vpow.pop %v3763
      %v3765 = vmul.f32 %v2820, 1.442695
      %v3766 = vpow.pop %v3765
      %v3767 = vmul.f32 %v2825, 1.442695
      %v3768 = vpow.pop %v3767
      %v3769 = vmul.f32 %v2830, 1.442695
      %v3770 = vpow.pop %v3769
      %v3771 = vmul.f32 %v2835, 1.442695
      %v3772 = vpow.pop %v3771
      %v3773 = vmul.f32 %v2840, 1.442695
      %v3774 = vpow.pop %v3773
      %v3775 = vmul.f32 %v2845, 1.442695
      %v3776 = vpow.pop %v3775
      %v3777 = vmul.f32 %v2850, 1.442695
      %v3778 = vpow.pop %v3777
      %v3779 = vmul.f32 %v2855, 1.442695
      %v3780 = vpow.pop %v3779
      %v3781 = vmul.f32 %v2860, 1.442695
      %v3782 = vpow.pop %v3781
      %v3783 = vmul.f32 %v2865, 1.442695
      %v3784 = vpow.pop %v3783
      %v3785 = vmul.f32 %v2870, 1.442695
      %v3786 = vpow.pop %v3785
      %v3787 = vmul.f32 %v2875, 1.442695
      %v3788 = vpow.pop %v3787
      %v3789 = vmul.f32 %v2880, 1.442695
      %v3790 = vpow.pop %v3789
      %v3791 = vmul.f32 %v2885, 1.442695
      %v3792 = vpow.pop %v3791
      %v3793 = vmul.f32 %v2890, 1.442695
      %v3794 = vpow.pop %v3793
      %v3795 = vmul.f32 %v2895, 1.442695
      %v3796 = vpow.pop %v3795
      %v3797 = vmul.f32 %v2900, 1.442695
      %v3798 = vpow.pop %v3797
      %v3799 = vmul.f32 %v3415, %v3544
      %v3800 = vmul.f32 %v3416, %v3546
      %v3801 = vmul.f32 %v3417, %v3548
      %v3802 = vmul.f32 %v3418, %v3550
      %v3803 = vmul.f32 %v3419, %v3552
      %v3804 = vmul.f32 %v3420, %v3554
      %v3805 = vmul.f32 %v3421, %v3556
      %v3806 = vmul.f32 %v3422, %v3558
      %v3807 = vmul.f32 %v3423, %v3560
      %v3808 = vmul.f32 %v3424, %v3562
      %v3809 = vmul.f32 %v3425, %v3564
      %v3810 = vmul.f32 %v3426, %v3566
      %v3811 = vmul.f32 %v3427, %v3568
      %v3812 = vmul.f32 %v3428, %v3570
      %v3813 = vmul.f32 %v3429, %v3572
      %v3814 = vmul.f32 %v3430, %v3574
      %v3815 = vmul.f32 %v3431, %v3576
      %v3816 = vmul.f32 %v3432, %v3578
      %v3817 = vmul.f32 %v3433, %v3580
      %v3818 = vmul.f32 %v3434, %v3582
      %v3819 = vmul.f32 %v3435, %v3584
      %v3820 = vmul.f32 %v3436, %v3586
      %v3821 = vmul.f32 %v3437, %v3588
      %v3822 = vmul.f32 %v3438, %v3590
      %v3823 = vmul.f32 %v3439, %v3592
      %v3824 = vmul.f32 %v3440, %v3594
      %v3825 = vmul.f32 %v3441, %v3596
      %v3826 = vmul.f32 %v3442, %v3598
      %v3827 = vmul.f32 %v3443, %v3600
      %v3828 = vmul.f32 %v3444, %v3602
      %v3829 = vmul.f32 %v3445, %v3604
      %v3830 = vmul.f32 %v3446, %v3606
      %v3831 = vmul.f32 %v3447, %v3608
      %v3832 = vmul.f32 %v3448, %v3610
      %v3833 = vmul.f32 %v3449, %v3612
      %v3834 = vmul.f32 %v3450, %v3614
      %v3835 = vmul.f32 %v3451, %v3616
      %v3836 = vmul.f32 %v3452, %v3618
      %v3837 = vmul.f32 %v3453, %v3620
      %v3838 = vmul.f32 %v3454, %v3622
      %v3839 = vmul.f32 %v3455, %v3624
      %v3840 = vmul.f32 %v3456, %v3626
      %v3841 = vmul.f32 %v3457, %v3628
      %v3842 = vmul.f32 %v3458, %v3630
      %v3843 = vmul.f32 %v3459, %v3632
      %v3844 = vmul.f32 %v3460, %v3634
      %v3845 = vmul.f32 %v3461, %v3636
      %v3846 = vmul.f32 %v3462, %v3638
      %v3847 = vmul.f32 %v3463, %v3640
      %v3848 = vmul.f32 %v3464, %v3642
      %v3849 = vmul.f32 %v3465, %v3644
      %v3850 = vmul.f32 %v3466, %v3646
      %v3851 = vmul.f32 %v3467, %v3648
      %v3852 = vmul.f32 %v3468, %v3650
      %v3853 = vmul.f32 %v3469, %v3652
      %v3854 = vmul.f32 %v3470, %v3654
      %v3855 = vmul.f32 %v3471, %v3656
      %v3856 = vmul.f32 %v3472, %v3658
      %v3857 = vmul.f32 %v3473, %v3660
      %v3858 = vmul.f32 %v3474, %v3662
      %v3859 = vmul.f32 %v3475, %v3664
      %v3860 = vmul.f32 %v3476, %v3666
      %v3861 = vmul.f32 %v3477, %v3668
      %v3862 = vmul.f32 %v3478, %v3670
      %v3863 = vmul.f32 %v3479, %v3672
      %v3864 = vmul.f32 %v3480, %v3674
      %v3865 = vmul.f32 %v3481, %v3676
      %v3866 = vmul.f32 %v3482, %v3678
      %v3867 = vmul.f32 %v3483, %v3680
      %v3868 = vmul.f32 %v3484, %v3682
      %v3869 = vmul.f32 %v3485, %v3684
      %v3870 = vmul.f32 %v3486, %v3686
      %v3871 = vmul.f32 %v3487, %v3688
      %v3872 = vmul.f32 %v3488, %v3690
      %v3873 = vmul.f32 %v3489, %v3692
      %v3874 = vmul.f32 %v3490, %v3694
      %v3875 = vmul.f32 %v3491, %v3696
      %v3876 = vmul.f32 %v3492, %v3698
      %v3877 = vmul.f32 %v3493, %v3700
      %v3878 = vmul.f32 %v3494, %v3702
      %v3879 = vmul.f32 %v3495, %v3704
      %v3880 = vmul.f32 %v3496, %v3706
      %v3881 = vmul.f32 %v3497, %v3708
      %v3882 = vmul.f32 %v3498, %v3710
      %v3883 = vmul.f32 %v3499, %v3712
      %v3884 = vmul.f32 %v3500, %v3714
      %v3885 = vmul.f32 %v3501, %v3716
      %v3886 = vmul.f32 %v3502, %v3718
      %v3887 = vmul.f32 %v3503, %v3720
      %v3888 = vmul.f32 %v3504, %v3722
      %v3889 = vmul.f32 %v3505, %v3724
      %v3890 = vmul.f32 %v3506, %v3726
      %v3891 = vmul.f32 %v3507, %v3728
      %v3892 = vmul.f32 %v3508, %v3730
      %v3893 = vmul.f32 %v3509, %v3732
      %v3894 = vmul.f32 %v3510, %v3734
      %v3895 = vmul.f32 %v3511, %v3736
      %v3896 = vmul.f32 %v3512, %v3738
      %v3897 = vmul.f32 %v3513, %v3740
      %v3898 = vmul.f32 %v3514, %v3742
      %v3899 = vmul.f32 %v3515, %v3744
      %v3900 = vmul.f32 %v3516, %v3746
      %v3901 = vmul.f32 %v3517, %v3748
      %v3902 = vmul.f32 %v3518, %v3750
      %v3903 = vmul.f32 %v3519, %v3752
      %v3904 = vmul.f32 %v3520, %v3754
      %v3905 = vmul.f32 %v3521, %v3756
      %v3906 = vmul.f32 %v3522, %v3758
      %v3907 = vmul.f32 %v3523, %v3760
      %v3908 = vmul.f32 %v3524, %v3762
      %v3909 = vmul.f32 %v3525, %v3764
      %v3910 = vmul.f32 %v3526, %v3766
      %v3911 = vmul.f32 %v3527, %v3768
      %v3912 = vmul.f32 %v3528, %v3770
      %v3913 = vmul.f32 %v3529, %v3772
      %v3914 = vmul.f32 %v3530, %v3774
      %v3915 = vmul.f32 %v3531, %v3776
      %v3916 = vmul.f32 %v3532, %v3778
      %v3917 = vmul.f32 %v3533, %v3780
      %v3918 = vmul.f32 %v3534, %v3782
      %v3919 = vmul.f32 %v3535, %v3784
      %v3920 = vmul.f32 %v3536, %v3786
      %v3921 = vmul.f32 %v3537, %v3788
      %v3922 = vmul.f32 %v3538, %v3790
      %v3923 = vmul.f32 %v3539, %v3792
      %v3924 = vmul.f32 %v3540, %v3794
      %v3925 = vmul.f32 %v3541, %v3796
      %v3926 = vmul.f32 %v3542, %v3798
      %vm3927 = vcmask 64512
      %3928 = vst.msk [vmem:[%s309] sm:$0xff] %vm3927, %v3799
      %3929 = vst.msk [vmem:[%s309 + $0x8] sm:$0xff] %vm3927, %v3800
      %3930 = vst.msk [vmem:[%s309 + $0x10] sm:$0xff] %vm3927, %v3801
      %3931 = vst.msk [vmem:[%s309 + $0x18] sm:$0xff] %vm3927, %v3802
      %3932 = vst.msk [vmem:[%s309 + $0x20] sm:$0xff] %vm3927, %v3803
      %3933 = vst.msk [vmem:[%s309 + $0x28] sm:$0xff] %vm3927, %v3804
      %3934 = vst.msk [vmem:[%s309 + $0x30] sm:$0xff] %vm3927, %v3805
      %3935 = vst.msk [vmem:[%s309 + $0x38] sm:$0xff] %vm3927, %v3806
      %3936 = vst.msk [vmem:[%s309 + $0x40] sm:$0xff] %vm3927, %v3807
      %3937 = vst.msk [vmem:[%s309 + $0x48] sm:$0xff] %vm3927, %v3808
      %3938 = vst.msk [vmem:[%s309 + $0x50] sm:$0xff] %vm3927, %v3809
      %3939 = vst.msk [vmem:[%s309 + $0x58] sm:$0xff] %vm3927, %v3810
      %3940 = vst.msk [vmem:[%s309 + $0x60] sm:$0xff] %vm3927, %v3811
      %3941 = vst.msk [vmem:[%s309 + $0x68] sm:$0xff] %vm3927, %v3812
      %3942 = vst.msk [vmem:[%s309 + $0x70] sm:$0xff] %vm3927, %v3813
      %3943 = vst.msk [vmem:[%s309 + $0x78] sm:$0xff] %vm3927, %v3814
      %3944 = vst.msk [vmem:[%s309 + $0x80] sm:$0xff] %vm3927, %v3815
      %3945 = vst.msk [vmem:[%s309 + $0x88] sm:$0xff] %vm3927, %v3816
      %3946 = vst.msk [vmem:[%s309 + $0x90] sm:$0xff] %vm3927, %v3817
      %3947 = vst.msk [vmem:[%s309 + $0x98] sm:$0xff] %vm3927, %v3818
      %3948 = vst.msk [vmem:[%s309 + $0xa0] sm:$0xff] %vm3927, %v3819
      %3949 = vst.msk [vmem:[%s309 + $0xa8] sm:$0xff] %vm3927, %v3820
      %3950 = vst.msk [vmem:[%s309 + $0xb0] sm:$0xff] %vm3927, %v3821
      %3951 = vst.msk [vmem:[%s309 + $0xb8] sm:$0xff] %vm3927, %v3822
      %3952 = vst.msk [vmem:[%s309 + $0xc0] sm:$0xff] %vm3927, %v3823
      %3953 = vst.msk [vmem:[%s309 + $0xc8] sm:$0xff] %vm3927, %v3824
      %3954 = vst.msk [vmem:[%s309 + $0xd0] sm:$0xff] %vm3927, %v3825
      %3955 = vst.msk [vmem:[%s309 + $0xd8] sm:$0xff] %vm3927, %v3826
      %3956 = vst.msk [vmem:[%s309 + $0xe0] sm:$0xff] %vm3927, %v3827
      %3957 = vst.msk [vmem:[%s309 + $0xe8] sm:$0xff] %vm3927, %v3828
      %3958 = vst.msk [vmem:[%s309 + $0xf0] sm:$0xff] %vm3927, %v3829
      %3959 = vst.msk [vmem:[%s309 + $0xf8] sm:$0xff] %vm3927, %v3830
      %3960 = vst.msk [vmem:[%s309 + $0x100] sm:$0xff] %vm3927, %v3831
      %3961 = vst.msk [vmem:[%s309 + $0x108] sm:$0xff] %vm3927, %v3832
      %3962 = vst.msk [vmem:[%s309 + $0x110] sm:$0xff] %vm3927, %v3833
      %3963 = vst.msk [vmem:[%s309 + $0x118] sm:$0xff] %vm3927, %v3834
      %3964 = vst.msk [vmem:[%s309 + $0x120] sm:$0xff] %vm3927, %v3835
      %3965 = vst.msk [vmem:[%s309 + $0x128] sm:$0xff] %vm3927, %v3836
      %3966 = vst.msk [vmem:[%s309 + $0x130] sm:$0xff] %vm3927, %v3837
      %3967 = vst.msk [vmem:[%s309 + $0x138] sm:$0xff] %vm3927, %v3838
      %3968 = vst.msk [vmem:[%s309 + $0x140] sm:$0xff] %vm3927, %v3839
      %3969 = vst.msk [vmem:[%s309 + $0x148] sm:$0xff] %vm3927, %v3840
      %3970 = vst.msk [vmem:[%s309 + $0x150] sm:$0xff] %vm3927, %v3841
      %3971 = vst.msk [vmem:[%s309 + $0x158] sm:$0xff] %vm3927, %v3842
      %3972 = vst.msk [vmem:[%s309 + $0x160] sm:$0xff] %vm3927, %v3843
      %3973 = vst.msk [vmem:[%s309 + $0x168] sm:$0xff] %vm3927, %v3844
      %3974 = vst.msk [vmem:[%s309 + $0x170] sm:$0xff] %vm3927, %v3845
      %3975 = vst.msk [vmem:[%s309 + $0x178] sm:$0xff] %vm3927, %v3846
      %3976 = vst.msk [vmem:[%s309 + $0x180] sm:$0xff] %vm3927, %v3847
      %3977 = vst.msk [vmem:[%s309 + $0x188] sm:$0xff] %vm3927, %v3848
      %3978 = vst.msk [vmem:[%s309 + $0x190] sm:$0xff] %vm3927, %v3849
      %3979 = vst.msk [vmem:[%s309 + $0x198] sm:$0xff] %vm3927, %v3850
      %3980 = vst.msk [vmem:[%s309 + $0x1a0] sm:$0xff] %vm3927, %v3851
      %3981 = vst.msk [vmem:[%s309 + $0x1a8] sm:$0xff] %vm3927, %v3852
      %3982 = vst.msk [vmem:[%s309 + $0x1b0] sm:$0xff] %vm3927, %v3853
      %3983 = vst.msk [vmem:[%s309 + $0x1b8] sm:$0xff] %vm3927, %v3854
      %3984 = vst.msk [vmem:[%s309 + $0x1c0] sm:$0xff] %vm3927, %v3855
      %3985 = vst.msk [vmem:[%s309 + $0x1c8] sm:$0xff] %vm3927, %v3856
      %3986 = vst.msk [vmem:[%s309 + $0x1d0] sm:$0xff] %vm3927, %v3857
      %3987 = vst.msk [vmem:[%s309 + $0x1d8] sm:$0xff] %vm3927, %v3858
      %3988 = vst.msk [vmem:[%s309 + $0x1e0] sm:$0xff] %vm3927, %v3859
      %3989 = vst.msk [vmem:[%s309 + $0x1e8] sm:$0xff] %vm3927, %v3860
      %3990 = vst.msk [vmem:[%s309 + $0x1f0] sm:$0xff] %vm3927, %v3861
      %3991 = vst.msk [vmem:[%s309 + $0x1f8] sm:$0xff] %vm3927, %v3862
      %3992 = vst.msk [vmem:[%s309 + $0x200] sm:$0xff] %vm3927, %v3863
      %3993 = vst.msk [vmem:[%s309 + $0x208] sm:$0xff] %vm3927, %v3864
      %3994 = vst.msk [vmem:[%s309 + $0x210] sm:$0xff] %vm3927, %v3865
      %3995 = vst.msk [vmem:[%s309 + $0x218] sm:$0xff] %vm3927, %v3866
      %3996 = vst.msk [vmem:[%s309 + $0x220] sm:$0xff] %vm3927, %v3867
      %3997 = vst.msk [vmem:[%s309 + $0x228] sm:$0xff] %vm3927, %v3868
      %3998 = vst.msk [vmem:[%s309 + $0x230] sm:$0xff] %vm3927, %v3869
      %3999 = vst.msk [vmem:[%s309 + $0x238] sm:$0xff] %vm3927, %v3870
      %4000 = vst.msk [vmem:[%s309 + $0x240] sm:$0xff] %vm3927, %v3871
      %4001 = vst.msk [vmem:[%s309 + $0x248] sm:$0xff] %vm3927, %v3872
      %4002 = vst.msk [vmem:[%s309 + $0x250] sm:$0xff] %vm3927, %v3873
      %4003 = vst.msk [vmem:[%s309 + $0x258] sm:$0xff] %vm3927, %v3874
      %4004 = vst.msk [vmem:[%s309 + $0x260] sm:$0xff] %vm3927, %v3875
      %4005 = vst.msk [vmem:[%s309 + $0x268] sm:$0xff] %vm3927, %v3876
      %4006 = vst.msk [vmem:[%s309 + $0x270] sm:$0xff] %vm3927, %v3877
      %4007 = vst.msk [vmem:[%s309 + $0x278] sm:$0xff] %vm3927, %v3878
      %4008 = vst.msk [vmem:[%s309 + $0x280] sm:$0xff] %vm3927, %v3879
      %4009 = vst.msk [vmem:[%s309 + $0x288] sm:$0xff] %vm3927, %v3880
      %4010 = vst.msk [vmem:[%s309 + $0x290] sm:$0xff] %vm3927, %v3881
      %4011 = vst.msk [vmem:[%s309 + $0x298] sm:$0xff] %vm3927, %v3882
      %4012 = vst.msk [vmem:[%s309 + $0x2a0] sm:$0xff] %vm3927, %v3883
      %4013 = vst.msk [vmem:[%s309 + $0x2a8] sm:$0xff] %vm3927, %v3884
      %4014 = vst.msk [vmem:[%s309 + $0x2b0] sm:$0xff] %vm3927, %v3885
      %4015 = vst.msk [vmem:[%s309 + $0x2b8] sm:$0xff] %vm3927, %v3886
      %4016 = vst.msk [vmem:[%s309 + $0x2c0] sm:$0xff] %vm3927, %v3887
      %4017 = vst.msk [vmem:[%s309 + $0x2c8] sm:$0xff] %vm3927, %v3888
      %4018 = vst.msk [vmem:[%s309 + $0x2d0] sm:$0xff] %vm3927, %v3889
      %4019 = vst.msk [vmem:[%s309 + $0x2d8] sm:$0xff] %vm3927, %v3890
      %4020 = vst.msk [vmem:[%s309 + $0x2e0] sm:$0xff] %vm3927, %v3891
      %4021 = vst.msk [vmem:[%s309 + $0x2e8] sm:$0xff] %vm3927, %v3892
      %4022 = vst.msk [vmem:[%s309 + $0x2f0] sm:$0xff] %vm3927, %v3893
      %4023 = vst.msk [vmem:[%s309 + $0x2f8] sm:$0xff] %vm3927, %v3894
      %4024 = vst.msk [vmem:[%s309 + $0x300] sm:$0xff] %vm3927, %v3895
      %4025 = vst.msk [vmem:[%s309 + $0x308] sm:$0xff] %vm3927, %v3896
      %4026 = vst.msk [vmem:[%s309 + $0x310] sm:$0xff] %vm3927, %v3897
      %4027 = vst.msk [vmem:[%s309 + $0x318] sm:$0xff] %vm3927, %v3898
      %4028 = vst.msk [vmem:[%s309 + $0x320] sm:$0xff] %vm3927, %v3899
      %4029 = vst.msk [vmem:[%s309 + $0x328] sm:$0xff] %vm3927, %v3900
      %4030 = vst.msk [vmem:[%s309 + $0x330] sm:$0xff] %vm3927, %v3901
      %4031 = vst.msk [vmem:[%s309 + $0x338] sm:$0xff] %vm3927, %v3902
      %4032 = vst.msk [vmem:[%s309 + $0x340] sm:$0xff] %vm3927, %v3903
      %4033 = vst.msk [vmem:[%s309 + $0x348] sm:$0xff] %vm3927, %v3904
      %4034 = vst.msk [vmem:[%s309 + $0x350] sm:$0xff] %vm3927, %v3905
      %4035 = vst.msk [vmem:[%s309 + $0x358] sm:$0xff] %vm3927, %v3906
      %4036 = vst.msk [vmem:[%s309 + $0x360] sm:$0xff] %vm3927, %v3907
      %4037 = vst.msk [vmem:[%s309 + $0x368] sm:$0xff] %vm3927, %v3908
      %4038 = vst.msk [vmem:[%s309 + $0x370] sm:$0xff] %vm3927, %v3909
      %4039 = vst.msk [vmem:[%s309 + $0x378] sm:$0xff] %vm3927, %v3910
      %4040 = vst.msk [vmem:[%s309 + $0x380] sm:$0xff] %vm3927, %v3911
      %4041 = vst.msk [vmem:[%s309 + $0x388] sm:$0xff] %vm3927, %v3912
      %4042 = vst.msk [vmem:[%s309 + $0x390] sm:$0xff] %vm3927, %v3913
      %4043 = vst.msk [vmem:[%s309 + $0x398] sm:$0xff] %vm3927, %v3914
      %4044 = vst.msk [vmem:[%s309 + $0x3a0] sm:$0xff] %vm3927, %v3915
      %4045 = vst.msk [vmem:[%s309 + $0x3a8] sm:$0xff] %vm3927, %v3916
      %4046 = vst.msk [vmem:[%s309 + $0x3b0] sm:$0xff] %vm3927, %v3917
      %4047 = vst.msk [vmem:[%s309 + $0x3b8] sm:$0xff] %vm3927, %v3918
      %4048 = vst.msk [vmem:[%s309 + $0x3c0] sm:$0xff] %vm3927, %v3919
      %4049 = vst.msk [vmem:[%s309 + $0x3c8] sm:$0xff] %vm3927, %v3920
      %4050 = vst.msk [vmem:[%s309 + $0x3d0] sm:$0xff] %vm3927, %v3921
      %4051 = vst.msk [vmem:[%s309 + $0x3d8] sm:$0xff] %vm3927, %v3922
      %4052 = vst.msk [vmem:[%s309 + $0x3e0] sm:$0xff] %vm3927, %v3923
      %4053 = vst.msk [vmem:[%s309 + $0x3e8] sm:$0xff] %vm3927, %v3924
      %4054 = vst.msk [vmem:[%s309 + $0x3f0] sm:$0xff] %vm3927, %v3925
      %4055 = vst.msk [vmem:[%s309 + $0x3f8] sm:$0xff] %vm3927, %v3926
      %v4056 = vsel %vm3927, %v2265, 0.0
      %4057 = vadd.xlane.f32.xlu0 %v4056
      %v4058 = vpop.xlane.xlu0 %4057
      %v4059 = vsel %vm3927, %v2270, 0.0
      %4060 = vadd.xlane.f32.xlu0 %v4059
      %v4061 = vpop.xlane.xlu0 %4060
      %v4062 = vsel %vm3927, %v2275, 0.0
      %4063 = vadd.xlane.f32.xlu0 %v4062
      %v4064 = vpop.xlane.xlu0 %4063
      %v4065 = vsel %vm3927, %v2280, 0.0
      %4066 = vadd.xlane.f32.xlu0 %v4065
      %v4067 = vpop.xlane.xlu0 %4066
      %v4068 = vsel %vm3927, %v2285, 0.0
      %4069 = vadd.xlane.f32.xlu0 %v4068
      %v4070 = vpop.xlane.xlu0 %4069
      %v4071 = vsel %vm3927, %v2290, 0.0
      %4072 = vadd.xlane.f32.xlu0 %v4071
      %v4073 = vpop.xlane.xlu0 %4072
      %v4074 = vsel %vm3927, %v2295, 0.0
      %4075 = vadd.xlane.f32.xlu0 %v4074
      %v4076 = vpop.xlane.xlu0 %4075
      %v4077 = vsel %vm3927, %v2300, 0.0
      %4078 = vadd.xlane.f32.xlu0 %v4077
      %v4079 = vpop.xlane.xlu0 %4078
      %v4080 = vsel %vm3927, %v2305, 0.0
      %4081 = vadd.xlane.f32.xlu0 %v4080
      %v4082 = vpop.xlane.xlu0 %4081
      %v4083 = vsel %vm3927, %v2310, 0.0
      %4084 = vadd.xlane.f32.xlu0 %v4083
      %v4085 = vpop.xlane.xlu0 %4084
      %v4086 = vsel %vm3927, %v2315, 0.0
      %4087 = vadd.xlane.f32.xlu0 %v4086
      %v4088 = vpop.xlane.xlu0 %4087
      %v4089 = vsel %vm3927, %v2320, 0.0
      %4090 = vadd.xlane.f32.xlu0 %v4089
      %v4091 = vpop.xlane.xlu0 %4090
      %v4092 = vsel %vm3927, %v2325, 0.0
      %4093 = vadd.xlane.f32.xlu0 %v4092
      %v4094 = vpop.xlane.xlu0 %4093
      %v4095 = vsel %vm3927, %v2330, 0.0
      %4096 = vadd.xlane.f32.xlu0 %v4095
      %v4097 = vpop.xlane.xlu0 %4096
      %v4098 = vsel %vm3927, %v2335, 0.0
      %4099 = vadd.xlane.f32.xlu0 %v4098
      %v4100 = vpop.xlane.xlu0 %4099
      %v4101 = vsel %vm3927, %v2340, 0.0
      %4102 = vadd.xlane.f32.xlu0 %v4101
      %v4103 = vpop.xlane.xlu0 %4102
      %v4104 = vsel %vm3927, %v2345, 0.0
      %4105 = vadd.xlane.f32.xlu0 %v4104
      %v4106 = vpop.xlane.xlu0 %4105
      %v4107 = vsel %vm3927, %v2350, 0.0
      %4108 = vadd.xlane.f32.xlu0 %v4107
      %v4109 = vpop.xlane.xlu0 %4108
      %v4110 = vsel %vm3927, %v2355, 0.0
      %4111 = vadd.xlane.f32.xlu0 %v4110
      %v4112 = vpop.xlane.xlu0 %4111
      %v4113 = vsel %vm3927, %v2360, 0.0
      %4114 = vadd.xlane.f32.xlu0 %v4113
      %v4115 = vpop.xlane.xlu0 %4114
      %v4116 = vsel %vm3927, %v2365, 0.0
      %4117 = vadd.xlane.f32.xlu0 %v4116
      %v4118 = vpop.xlane.xlu0 %4117
      %v4119 = vsel %vm3927, %v2370, 0.0
      %4120 = vadd.xlane.f32.xlu0 %v4119
      %v4121 = vpop.xlane.xlu0 %4120
      %v4122 = vsel %vm3927, %v2375, 0.0
      %4123 = vadd.xlane.f32.xlu0 %v4122
      %v4124 = vpop.xlane.xlu0 %4123
      %v4125 = vsel %vm3927, %v2380, 0.0
      %4126 = vadd.xlane.f32.xlu0 %v4125
      %v4127 = vpop.xlane.xlu0 %4126
      %v4128 = vsel %vm3927, %v2385, 0.0
      %4129 = vadd.xlane.f32.xlu0 %v4128
      %v4130 = vpop.xlane.xlu0 %4129
      %v4131 = vsel %vm3927, %v2390, 0.0
      %4132 = vadd.xlane.f32.xlu0 %v4131
      %v4133 = vpop.xlane.xlu0 %4132
      %v4134 = vsel %vm3927, %v2395, 0.0
      %4135 = vadd.xlane.f32.xlu0 %v4134
      %v4136 = vpop.xlane.xlu0 %4135
      %v4137 = vsel %vm3927, %v2400, 0.0
      %4138 = vadd.xlane.f32.xlu0 %v4137
      %v4139 = vpop.xlane.xlu0 %4138
      %v4140 = vsel %vm3927, %v2405, 0.0
      %4141 = vadd.xlane.f32.xlu0 %v4140
      %v4142 = vpop.xlane.xlu0 %4141
      %v4143 = vsel %vm3927, %v2410, 0.0
      %4144 = vadd.xlane.f32.xlu0 %v4143
      %v4145 = vpop.xlane.xlu0 %4144
      %v4146 = vsel %vm3927, %v2415, 0.0
      %4147 = vadd.xlane.f32.xlu0 %v4146
      %v4148 = vpop.xlane.xlu0 %4147
      %v4149 = vsel %vm3927, %v2420, 0.0
      %4150 = vadd.xlane.f32.xlu0 %v4149
      %v4151 = vpop.xlane.xlu0 %4150
      %v4152 = vsel %vm3927, %v2425, 0.0
      %4153 = vadd.xlane.f32.xlu0 %v4152
      %v4154 = vpop.xlane.xlu0 %4153
      %v4155 = vsel %vm3927, %v2430, 0.0
      %4156 = vadd.xlane.f32.xlu0 %v4155
      %v4157 = vpop.xlane.xlu0 %4156
      %v4158 = vsel %vm3927, %v2435, 0.0
      %4159 = vadd.xlane.f32.xlu0 %v4158
      %v4160 = vpop.xlane.xlu0 %4159
      %v4161 = vsel %vm3927, %v2440, 0.0
      %4162 = vadd.xlane.f32.xlu0 %v4161
      %v4163 = vpop.xlane.xlu0 %4162
      %v4164 = vsel %vm3927, %v2445, 0.0
      %4165 = vadd.xlane.f32.xlu0 %v4164
      %v4166 = vpop.xlane.xlu0 %4165
      %v4167 = vsel %vm3927, %v2450, 0.0
      %4168 = vadd.xlane.f32.xlu0 %v4167
      %v4169 = vpop.xlane.xlu0 %4168
      %v4170 = vsel %vm3927, %v2455, 0.0
      %4171 = vadd.xlane.f32.xlu0 %v4170
      %v4172 = vpop.xlane.xlu0 %4171
      %v4173 = vsel %vm3927, %v2460, 0.0
      %4174 = vadd.xlane.f32.xlu0 %v4173
      %v4175 = vpop.xlane.xlu0 %4174
      %v4176 = vsel %vm3927, %v2465, 0.0
      %4177 = vadd.xlane.f32.xlu0 %v4176
      %v4178 = vpop.xlane.xlu0 %4177
      %v4179 = vsel %vm3927, %v2470, 0.0
      %4180 = vadd.xlane.f32.xlu0 %v4179
      %v4181 = vpop.xlane.xlu0 %4180
      %v4182 = vsel %vm3927, %v2475, 0.0
      %4183 = vadd.xlane.f32.xlu0 %v4182
      %v4184 = vpop.xlane.xlu0 %4183
      %v4185 = vsel %vm3927, %v2480, 0.0
      %4186 = vadd.xlane.f32.xlu0 %v4185
      %v4187 = vpop.xlane.xlu0 %4186
      %v4188 = vsel %vm3927, %v2485, 0.0
      %4189 = vadd.xlane.f32.xlu0 %v4188
      %v4190 = vpop.xlane.xlu0 %4189
      %v4191 = vsel %vm3927, %v2490, 0.0
      %4192 = vadd.xlane.f32.xlu0 %v4191
      %v4193 = vpop.xlane.xlu0 %4192
      %v4194 = vsel %vm3927, %v2495, 0.0
      %4195 = vadd.xlane.f32.xlu0 %v4194
      %v4196 = vpop.xlane.xlu0 %4195
      %v4197 = vsel %vm3927, %v2500, 0.0
      %4198 = vadd.xlane.f32.xlu0 %v4197
      %v4199 = vpop.xlane.xlu0 %4198
      %v4200 = vsel %vm3927, %v2505, 0.0
      %4201 = vadd.xlane.f32.xlu0 %v4200
      %v4202 = vpop.xlane.xlu0 %4201
      %v4203 = vsel %vm3927, %v2510, 0.0
      %4204 = vadd.xlane.f32.xlu0 %v4203
      %v4205 = vpop.xlane.xlu0 %4204
      %v4206 = vsel %vm3927, %v2515, 0.0
      %4207 = vadd.xlane.f32.xlu0 %v4206
      %v4208 = vpop.xlane.xlu0 %4207
      %v4209 = vsel %vm3927, %v2520, 0.0
      %4210 = vadd.xlane.f32.xlu0 %v4209
      %v4211 = vpop.xlane.xlu0 %4210
      %v4212 = vsel %vm3927, %v2525, 0.0
      %4213 = vadd.xlane.f32.xlu0 %v4212
      %v4214 = vpop.xlane.xlu0 %4213
      %v4215 = vsel %vm3927, %v2530, 0.0
      %4216 = vadd.xlane.f32.xlu0 %v4215
      %v4217 = vpop.xlane.xlu0 %4216
      %v4218 = vsel %vm3927, %v2535, 0.0
      %4219 = vadd.xlane.f32.xlu0 %v4218
      %v4220 = vpop.xlane.xlu0 %4219
      %v4221 = vsel %vm3927, %v2540, 0.0
      %4222 = vadd.xlane.f32.xlu0 %v4221
      %v4223 = vpop.xlane.xlu0 %4222
      %v4224 = vsel %vm3927, %v2545, 0.0
      %4225 = vadd.xlane.f32.xlu0 %v4224
      %v4226 = vpop.xlane.xlu0 %4225
      %v4227 = vsel %vm3927, %v2550, 0.0
      %4228 = vadd.xlane.f32.xlu0 %v4227
      %v4229 = vpop.xlane.xlu0 %4228
      %v4230 = vsel %vm3927, %v2555, 0.0
      %4231 = vadd.xlane.f32.xlu0 %v4230
      %v4232 = vpop.xlane.xlu0 %4231
      %v4233 = vsel %vm3927, %v2560, 0.0
      %4234 = vadd.xlane.f32.xlu0 %v4233
      %v4235 = vpop.xlane.xlu0 %4234
      %v4236 = vsel %vm3927, %v2565, 0.0
      %4237 = vadd.xlane.f32.xlu0 %v4236
      %v4238 = vpop.xlane.xlu0 %4237
      %v4239 = vsel %vm3927, %v2570, 0.0
      %4240 = vadd.xlane.f32.xlu0 %v4239
      %v4241 = vpop.xlane.xlu0 %4240
      %v4242 = vsel %vm3927, %v2575, 0.0
      %4243 = vadd.xlane.f32.xlu0 %v4242
      %v4244 = vpop.xlane.xlu0 %4243
      %v4245 = vsel %vm3927, %v2580, 0.0
      %4246 = vadd.xlane.f32.xlu0 %v4245
      %v4247 = vpop.xlane.xlu0 %4246
      %v4248 = vsel %vm3927, %v2585, 0.0
      %4249 = vadd.xlane.f32.xlu0 %v4248
      %v4250 = vpop.xlane.xlu0 %4249
      %v4251 = vsel %vm3927, %v2590, 0.0
      %4252 = vadd.xlane.f32.xlu0 %v4251
      %v4253 = vpop.xlane.xlu0 %4252
      %v4254 = vsel %vm3927, %v2595, 0.0
      %4255 = vadd.xlane.f32.xlu0 %v4254
      %v4256 = vpop.xlane.xlu0 %4255
      %v4257 = vsel %vm3927, %v2600, 0.0
      %4258 = vadd.xlane.f32.xlu0 %v4257
      %v4259 = vpop.xlane.xlu0 %4258
      %v4260 = vsel %vm3927, %v2605, 0.0
      %4261 = vadd.xlane.f32.xlu0 %v4260
      %v4262 = vpop.xlane.xlu0 %4261
      %v4263 = vsel %vm3927, %v2610, 0.0
      %4264 = vadd.xlane.f32.xlu0 %v4263
      %v4265 = vpop.xlane.xlu0 %4264
      %v4266 = vsel %vm3927, %v2615, 0.0
      %4267 = vadd.xlane.f32.xlu0 %v4266
      %v4268 = vpop.xlane.xlu0 %4267
      %v4269 = vsel %vm3927, %v2620, 0.0
      %4270 = vadd.xlane.f32.xlu0 %v4269
      %v4271 = vpop.xlane.xlu0 %4270
      %v4272 = vsel %vm3927, %v2625, 0.0
      %4273 = vadd.xlane.f32.xlu0 %v4272
      %v4274 = vpop.xlane.xlu0 %4273
      %v4275 = vsel %vm3927, %v2630, 0.0
      %4276 = vadd.xlane.f32.xlu0 %v4275
      %v4277 = vpop.xlane.xlu0 %4276
      %v4278 = vsel %vm3927, %v2635, 0.0
      %4279 = vadd.xlane.f32.xlu0 %v4278
      %v4280 = vpop.xlane.xlu0 %4279
      %v4281 = vsel %vm3927, %v2640, 0.0
      %4282 = vadd.xlane.f32.xlu0 %v4281
      %v4283 = vpop.xlane.xlu0 %4282
      %v4284 = vsel %vm3927, %v2645, 0.0
      %4285 = vadd.xlane.f32.xlu0 %v4284
      %v4286 = vpop.xlane.xlu0 %4285
      %v4287 = vsel %vm3927, %v2650, 0.0
      %4288 = vadd.xlane.f32.xlu0 %v4287
      %v4289 = vpop.xlane.xlu0 %4288
      %v4290 = vsel %vm3927, %v2655, 0.0
      %4291 = vadd.xlane.f32.xlu0 %v4290
      %v4292 = vpop.xlane.xlu0 %4291
      %v4293 = vsel %vm3927, %v2660, 0.0
      %4294 = vadd.xlane.f32.xlu0 %v4293
      %v4295 = vpop.xlane.xlu0 %4294
      %v4296 = vsel %vm3927, %v2665, 0.0
      %4297 = vadd.xlane.f32.xlu0 %v4296
      %v4298 = vpop.xlane.xlu0 %4297
      %v4299 = vsel %vm3927, %v2670, 0.0
      %4300 = vadd.xlane.f32.xlu0 %v4299
      %v4301 = vpop.xlane.xlu0 %4300
      %v4302 = vsel %vm3927, %v2675, 0.0
      %4303 = vadd.xlane.f32.xlu0 %v4302
      %v4304 = vpop.xlane.xlu0 %4303
      %v4305 = vsel %vm3927, %v2680, 0.0
      %4306 = vadd.xlane.f32.xlu0 %v4305
      %v4307 = vpop.xlane.xlu0 %4306
      %v4308 = vsel %vm3927, %v2685, 0.0
      %4309 = vadd.xlane.f32.xlu0 %v4308
      %v4310 = vpop.xlane.xlu0 %4309
      %v4311 = vsel %vm3927, %v2690, 0.0
      %4312 = vadd.xlane.f32.xlu0 %v4311
      %v4313 = vpop.xlane.xlu0 %4312
      %v4314 = vsel %vm3927, %v2695, 0.0
      %4315 = vadd.xlane.f32.xlu0 %v4314
      %v4316 = vpop.xlane.xlu0 %4315
      %v4317 = vsel %vm3927, %v2700, 0.0
      %4318 = vadd.xlane.f32.xlu0 %v4317
      %v4319 = vpop.xlane.xlu0 %4318
      %v4320 = vsel %vm3927, %v2705, 0.0
      %4321 = vadd.xlane.f32.xlu0 %v4320
      %v4322 = vpop.xlane.xlu0 %4321
      %v4323 = vsel %vm3927, %v2710, 0.0
      %4324 = vadd.xlane.f32.xlu0 %v4323
      %v4325 = vpop.xlane.xlu0 %4324
      %v4326 = vsel %vm3927, %v2715, 0.0
      %4327 = vadd.xlane.f32.xlu0 %v4326
      %v4328 = vpop.xlane.xlu0 %4327
      %v4329 = vsel %vm3927, %v2720, 0.0
      %4330 = vadd.xlane.f32.xlu0 %v4329
      %v4331 = vpop.xlane.xlu0 %4330
      %v4332 = vsel %vm3927, %v2725, 0.0
      %4333 = vadd.xlane.f32.xlu0 %v4332
      %v4334 = vpop.xlane.xlu0 %4333
      %v4335 = vsel %vm3927, %v2730, 0.0
      %4336 = vadd.xlane.f32.xlu0 %v4335
      %v4337 = vpop.xlane.xlu0 %4336
      %v4338 = vsel %vm3927, %v2735, 0.0
      %4339 = vadd.xlane.f32.xlu0 %v4338
      %v4340 = vpop.xlane.xlu0 %4339
      %v4341 = vsel %vm3927, %v2740, 0.0
      %4342 = vadd.xlane.f32.xlu0 %v4341
      %v4343 = vpop.xlane.xlu0 %4342
      %v4344 = vsel %vm3927, %v2745, 0.0
      %4345 = vadd.xlane.f32.xlu0 %v4344
      %v4346 = vpop.xlane.xlu0 %4345
      %v4347 = vsel %vm3927, %v2750, 0.0
      %4348 = vadd.xlane.f32.xlu0 %v4347
      %v4349 = vpop.xlane.xlu0 %4348
      %v4350 = vsel %vm3927, %v2755, 0.0
      %4351 = vadd.xlane.f32.xlu0 %v4350
      %v4352 = vpop.xlane.xlu0 %4351
      %v4353 = vsel %vm3927, %v2760, 0.0
      %4354 = vadd.xlane.f32.xlu0 %v4353
      %v4355 = vpop.xlane.xlu0 %4354
      %v4356 = vsel %vm3927, %v2765, 0.0
      %4357 = vadd.xlane.f32.xlu0 %v4356
      %v4358 = vpop.xlane.xlu0 %4357
      %v4359 = vsel %vm3927, %v2770, 0.0
      %4360 = vadd.xlane.f32.xlu0 %v4359
      %v4361 = vpop.xlane.xlu0 %4360
      %v4362 = vsel %vm3927, %v2775, 0.0
      %4363 = vadd.xlane.f32.xlu0 %v4362
      %v4364 = vpop.xlane.xlu0 %4363
      %v4365 = vsel %vm3927, %v2780, 0.0
      %4366 = vadd.xlane.f32.xlu0 %v4365
      %v4367 = vpop.xlane.xlu0 %4366
      %v4368 = vsel %vm3927, %v2785, 0.0
      %4369 = vadd.xlane.f32.xlu0 %v4368
      %v4370 = vpop.xlane.xlu0 %4369
      %v4371 = vsel %vm3927, %v2790, 0.0
      %4372 = vadd.xlane.f32.xlu0 %v4371
      %v4373 = vpop.xlane.xlu0 %4372
      %v4374 = vsel %vm3927, %v2795, 0.0
      %4375 = vadd.xlane.f32.xlu0 %v4374
      %v4376 = vpop.xlane.xlu0 %4375
      %v4377 = vsel %vm3927, %v2800, 0.0
      %4378 = vadd.xlane.f32.xlu0 %v4377
      %v4379 = vpop.xlane.xlu0 %4378
      %v4380 = vsel %vm3927, %v2805, 0.0
      %4381 = vadd.xlane.f32.xlu0 %v4380
      %v4382 = vpop.xlane.xlu0 %4381
      %v4383 = vsel %vm3927, %v2810, 0.0
      %4384 = vadd.xlane.f32.xlu0 %v4383
      %v4385 = vpop.xlane.xlu0 %4384
      %v4386 = vsel %vm3927, %v2815, 0.0
      %4387 = vadd.xlane.f32.xlu0 %v4386
      %v4388 = vpop.xlane.xlu0 %4387
      %v4389 = vsel %vm3927, %v2820, 0.0
      %4390 = vadd.xlane.f32.xlu0 %v4389
      %v4391 = vpop.xlane.xlu0 %4390
      %v4392 = vsel %vm3927, %v2825, 0.0
      %4393 = vadd.xlane.f32.xlu0 %v4392
      %v4394 = vpop.xlane.xlu0 %4393
      %v4395 = vsel %vm3927, %v2830, 0.0
      %4396 = vadd.xlane.f32.xlu0 %v4395
      %v4397 = vpop.xlane.xlu0 %4396
      %v4398 = vsel %vm3927, %v2835, 0.0
      %4399 = vadd.xlane.f32.xlu0 %v4398
      %v4400 = vpop.xlane.xlu0 %4399
      %v4401 = vsel %vm3927, %v2840, 0.0
      %4402 = vadd.xlane.f32.xlu0 %v4401
      %v4403 = vpop.xlane.xlu0 %4402
      %v4404 = vsel %vm3927, %v2845, 0.0
      %4405 = vadd.xlane.f32.xlu0 %v4404
      %v4406 = vpop.xlane.xlu0 %4405
      %v4407 = vsel %vm3927, %v2850, 0.0
      %4408 = vadd.xlane.f32.xlu0 %v4407
      %v4409 = vpop.xlane.xlu0 %4408
      %v4410 = vsel %vm3927, %v2855, 0.0
      %4411 = vadd.xlane.f32.xlu0 %v4410
      %v4412 = vpop.xlane.xlu0 %4411
      %v4413 = vsel %vm3927, %v2860, 0.0
      %4414 = vadd.xlane.f32.xlu0 %v4413
      %v4415 = vpop.xlane.xlu0 %4414
      %v4416 = vsel %vm3927, %v2865, 0.0
      %4417 = vadd.xlane.f32.xlu0 %v4416
      %v4418 = vpop.xlane.xlu0 %4417
      %v4419 = vsel %vm3927, %v2870, 0.0
      %4420 = vadd.xlane.f32.xlu0 %v4419
      %v4421 = vpop.xlane.xlu0 %4420
      %v4422 = vsel %vm3927, %v2875, 0.0
      %4423 = vadd.xlane.f32.xlu0 %v4422
      %v4424 = vpop.xlane.xlu0 %4423
      %v4425 = vsel %vm3927, %v2880, 0.0
      %4426 = vadd.xlane.f32.xlu0 %v4425
      %v4427 = vpop.xlane.xlu0 %4426
      %v4428 = vsel %vm3927, %v2885, 0.0
      %4429 = vadd.xlane.f32.xlu0 %v4428
      %v4430 = vpop.xlane.xlu0 %4429
      %v4431 = vsel %vm3927, %v2890, 0.0
      %4432 = vadd.xlane.f32.xlu0 %v4431
      %v4433 = vpop.xlane.xlu0 %4432
      %v4434 = vsel %vm3927, %v2895, 0.0
      %4435 = vadd.xlane.f32.xlu0 %v4434
      %v4436 = vpop.xlane.xlu0 %4435
      %v4437 = vsel %vm3927, %v2900, 0.0
      %4438 = vadd.xlane.f32.xlu0 %v4437
      %v4439 = vpop.xlane.xlu0 %4438
      %v4440 = vadd.f32 %v4058, %v4061
      %v4441 = vadd.f32 %v4440, %v4064
      %v4442 = vadd.f32 %v4441, %v4067
      %v4443 = vadd.f32 %v4442, %v4070
      %v4444 = vadd.f32 %v4443, %v4073
      %v4445 = vadd.f32 %v4444, %v4076
      %v4446 = vadd.f32 %v4445, %v4079
      %v4447 = vadd.f32 %v4446, %v4082
      %v4448 = vadd.f32 %v4447, %v4085
      %v4449 = vadd.f32 %v4448, %v4088
      %v4450 = vadd.f32 %v4449, %v4091
      %v4451 = vadd.f32 %v4450, %v4094
      %v4452 = vadd.f32 %v4451, %v4097
      %v4453 = vadd.f32 %v4452, %v4100
      %v4454 = vadd.f32 %v4453, %v4103
      %v4455 = vadd.f32 %v4454, %v4106
      %v4456 = vadd.f32 %v4455, %v4109
      %v4457 = vadd.f32 %v4456, %v4112
      %v4458 = vadd.f32 %v4457, %v4115
      %v4459 = vadd.f32 %v4458, %v4118
      %v4460 = vadd.f32 %v4459, %v4121
      %v4461 = vadd.f32 %v4460, %v4124
      %v4462 = vadd.f32 %v4461, %v4127
      %v4463 = vadd.f32 %v4462, %v4130
      %v4464 = vadd.f32 %v4463, %v4133
      %v4465 = vadd.f32 %v4464, %v4136
      %v4466 = vadd.f32 %v4465, %v4139
      %v4467 = vadd.f32 %v4466, %v4142
      %v4468 = vadd.f32 %v4467, %v4145
      %v4469 = vadd.f32 %v4468, %v4148
      %v4470 = vadd.f32 %v4469, %v4151
      %v4471 = vadd.f32 %v4470, %v4154
      %v4472 = vadd.f32 %v4471, %v4157
      %v4473 = vadd.f32 %v4472, %v4160
      %v4474 = vadd.f32 %v4473, %v4163
      %v4475 = vadd.f32 %v4474, %v4166
      %v4476 = vadd.f32 %v4475, %v4169
      %v4477 = vadd.f32 %v4476, %v4172
      %v4478 = vadd.f32 %v4477, %v4175
      %v4479 = vadd.f32 %v4478, %v4178
      %v4480 = vadd.f32 %v4479, %v4181
      %v4481 = vadd.f32 %v4480, %v4184
      %v4482 = vadd.f32 %v4481, %v4187
      %v4483 = vadd.f32 %v4482, %v4190
      %v4484 = vadd.f32 %v4483, %v4193
      %v4485 = vadd.f32 %v4484, %v4196
      %v4486 = vadd.f32 %v4485, %v4199
      %v4487 = vadd.f32 %v4486, %v4202
      %v4488 = vadd.f32 %v4487, %v4205
      %v4489 = vadd.f32 %v4488, %v4208
      %v4490 = vadd.f32 %v4489, %v4211
      %v4491 = vadd.f32 %v4490, %v4214
      %v4492 = vadd.f32 %v4491, %v4217
      %v4493 = vadd.f32 %v4492, %v4220
      %v4494 = vadd.f32 %v4493, %v4223
      %v4495 = vadd.f32 %v4494, %v4226
      %v4496 = vadd.f32 %v4495, %v4229
      %v4497 = vadd.f32 %v4496, %v4232
      %v4498 = vadd.f32 %v4497, %v4235
      %v4499 = vadd.f32 %v4498, %v4238
      %v4500 = vadd.f32 %v4499, %v4241
      %v4501 = vadd.f32 %v4500, %v4244
      %v4502 = vadd.f32 %v4501, %v4247
      %v4503 = vadd.f32 %v4502, %v4250
      %v4504 = vadd.f32 %v4503, %v4253
      %v4505 = vadd.f32 %v4504, %v4256
      %v4506 = vadd.f32 %v4505, %v4259
      %v4507 = vadd.f32 %v4506, %v4262
      %v4508 = vadd.f32 %v4507, %v4265
      %v4509 = vadd.f32 %v4508, %v4268
      %v4510 = vadd.f32 %v4509, %v4271
      %v4511 = vadd.f32 %v4510, %v4274
      %v4512 = vadd.f32 %v4511, %v4277
      %v4513 = vadd.f32 %v4512, %v4280
      %v4514 = vadd.f32 %v4513, %v4283
      %v4515 = vadd.f32 %v4514, %v4286
      %v4516 = vadd.f32 %v4515, %v4289
      %v4517 = vadd.f32 %v4516, %v4292
      %v4518 = vadd.f32 %v4517, %v4295
      %v4519 = vadd.f32 %v4518, %v4298
      %v4520 = vadd.f32 %v4519, %v4301
      %v4521 = vadd.f32 %v4520, %v4304
      %v4522 = vadd.f32 %v4521, %v4307
      %v4523 = vadd.f32 %v4522, %v4310
      %v4524 = vadd.f32 %v4523, %v4313
      %v4525 = vadd.f32 %v4524, %v4316
      %v4526 = vadd.f32 %v4525, %v4319
      %v4527 = vadd.f32 %v4526, %v4322
      %v4528 = vadd.f32 %v4527, %v4325
      %v4529 = vadd.f32 %v4528, %v4328
      %v4530 = vadd.f32 %v4529, %v4331
      %v4531 = vadd.f32 %v4530, %v4334
      %v4532 = vadd.f32 %v4531, %v4337
      %v4533 = vadd.f32 %v4532, %v4340
      %v4534 = vadd.f32 %v4533, %v4343
      %v4535 = vadd.f32 %v4534, %v4346
      %v4536 = vadd.f32 %v4535, %v4349
      %v4537 = vadd.f32 %v4536, %v4352
      %v4538 = vadd.f32 %v4537, %v4355
      %v4539 = vadd.f32 %v4538, %v4358
      %v4540 = vadd.f32 %v4539, %v4361
      %v4541 = vadd.f32 %v4540, %v4364
      %v4542 = vadd.f32 %v4541, %v4367
      %v4543 = vadd.f32 %v4542, %v4370
      %v4544 = vadd.f32 %v4543, %v4373
      %v4545 = vadd.f32 %v4544, %v4376
      %v4546 = vadd.f32 %v4545, %v4379
      %v4547 = vadd.f32 %v4546, %v4382
      %v4548 = vadd.f32 %v4547, %v4385
      %v4549 = vadd.f32 %v4548, %v4388
      %v4550 = vadd.f32 %v4549, %v4391
      %v4551 = vadd.f32 %v4550, %v4394
      %v4552 = vadd.f32 %v4551, %v4397
      %v4553 = vadd.f32 %v4552, %v4400
      %v4554 = vadd.f32 %v4553, %v4403
      %v4555 = vadd.f32 %v4554, %v4406
      %v4556 = vadd.f32 %v4555, %v4409
      %v4557 = vadd.f32 %v4556, %v4412
      %v4558 = vadd.f32 %v4557, %v4415
      %v4559 = vadd.f32 %v4558, %v4418
      %v4560 = vadd.f32 %v4559, %v4421
      %v4561 = vadd.f32 %v4560, %v4424
      %v4562 = vadd.f32 %v4561, %v4427
      %v4563 = vadd.f32 %v4562, %v4430
      %v4564 = vadd.f32 %v4563, %v4433
      %v4565 = vadd.f32 %v4564, %v4436
      %v4566 = vadd.f32 %v4565, %v4439
      %v4567 = vrot.slane %v4566, 4
      %v4568 = vadd.f32 %v4566, %v4567
      %v4569 = vrot.slane %v4568, 2
      %v4570 = vadd.f32 %v4568, %v4569
      %v4571 = vrot.slane %v4570, 1
      %v4572 = vadd.f32 %v4570, %v4571
      %4573 = vst [vmem:[%s314] sm:$0xff] %v4572
      %s4574 = smul.u32 128, %s19
      %p4575 = scmp.lt.s32.totalorder %s4574, 255
      %s4576 = scalar_select %p4575, %s4574, 255
      %s4577 = smul.addr %s4576, 8
      %s4578 = scalar_lea.vmem %s6, %s4577
      %p4579 = scmp.lt.s32.totalorder %s19, 1
      %s4580 = scalar_select %p4579, %s19, 1
      %s4581 = smul.addr %s4580, 8
      %s4582 = scalar_lea.vmem %s7, %s4581
      // Predicated region
      $region45: #{affine_injector_forward.1} parent=43 // pred_check
        %p4583 = pneg %p173
      $region46: #{affine_injector_forward.1} parent=43 // pred_check_branch
        %4585 = sbr.rel (%p4583) target = $region48
      $region47: #{affine_injector_forward.1} parent=43 // pred_region
        %s4586 = smul.u32 128, %s19
      $region48: #{affine_injector_forward.1} parent=43 // pred_fallthru
        _
      // Predicated region
      $region49: #{affine_injector_forward.1} parent=43 // pred_check
        %p4587 = pneg %p199
      $region50: #{affine_injector_forward.1} parent=43 // pred_check_branch
        %4589 = sbr.rel (%p4587) target = $region52
      $region51: #{affine_injector_forward.1} parent=43 // pred_region
        _
      $region52: #{affine_injector_forward.1} parent=43 // pred_fallthru
        _
    $region44: #{affine_injector_forward.1} parent=5 // pred_fallthru
      _
    %p4590 = scmp.le.s32.totalorder 2, %s14
    // Predicated region
    $region53: #{affine_injector_forward.1} parent=5 // pred_check
      %p4591 = pneg %p4590
    $region54: #{affine_injector_forward.1} parent=5 // pred_check_branch
      %4593 = sbr.rel (%p4591) target = $region56
    $region55: #{affine_injector_forward.1} parent=5 // pred_region
      %s4594 = ssub.s32 %s14, 2
      // Predicated region
      $region57: #{affine_injector_forward.1} parent=55 // pred_check
        %p4595 = pneg %p179
      $region58: #{affine_injector_forward.1} parent=55 // pred_check_branch
        %4597 = sbr.rel (%p4595) target = $region60
      $region59: #{affine_injector_forward.1} parent=55 // pred_region
        %s4598 = smul.u32 128, %s20
        %p4599 = scmp.lt.s32.totalorder %s4598, 255
        %s4600 = scalar_select %p4599, %s4598, 255
        %s4601 = smul.addr %s4600, 8
        %s4602 = scalar_lea.vmem %s6, %s4601
      $region60: #{affine_injector_forward.1} parent=55 // pred_fallthru
        _
      // Predicated region
      $region61: #{affine_injector_forward.1} parent=55 // pred_check
        %p4603 = pneg %p205
      $region62: #{affine_injector_forward.1} parent=55 // pred_check_branch
        %4605 = sbr.rel (%p4603) target = $region64
      $region63: #{affine_injector_forward.1} parent=55 // pred_region
        %p4606 = scmp.lt.s32.totalorder %s20, 1
        %s4607 = scalar_select %p4606, %s20, 1
        %s4608 = smul.addr %s4607, 8
        %s4609 = scalar_lea.vmem %s7, %s4608
      $region64: #{affine_injector_forward.1} parent=55 // pred_fallthru
        _
    $region56: #{affine_injector_forward.1} parent=5 // pred_fallthru
      _
  $region6: #{affine_injector_forward.1} parent=0 // loop_footer
    %s18 = sadd.s32 1, %s14
  $region7: #{affine_injector_forward.1} parent=0 // loop_footer_branch
    %13 = sbr.rel target = $region3
  $region8: #{affine_injector_forward.1} parent=0 // loop_exit
    _

</llo_original>
